<compile_context>
chip_gen: v7x
topology: tpu7x:2x2x1
jax: 0.10.0
libtpu: 0.0.40
codegen_flags: <defaults>
</compile_context>

<pallas_src>
import functools

import jax
import jax.numpy as jnp
from jax import lax
from jax.experimental import pallas as pl
from jax.experimental.pallas import tpu as pltpu

EPS = 1e-5
C1_PAD = 128   # conv1 output channels padded 64 -> 128 (lane-dense stores)
K1_PAD = 128   # conv1 contraction padded 48 -> 128 (MXU aligned)


# ----------------------------- conv1 kernel -------------------------------- #

def _conv_bias_relu_kernel(p_ref, w_ref, b_ref, o_ref):
    # p: (tm, K) im2col patches, w: (K, C), b: (1, C)
    y = jnp.dot(p_ref[...], w_ref[...], preferred_element_type=jnp.float32)
    o_ref[...] = jnp.maximum(y + b_ref[...], 0.0)


def conv_bias_relu(p, w, b):
    M, K = p.shape
    C = w.shape[1]
    # Cap the row tile so the "parallel" grid has >= 2 steps (v7x megacore split).
    tm = M
    for cand in (256, 128, 64, 32, 16, 8):
        if M % cand == 0 and M // cand >= 2:
            tm = cand
            break
    return pl.pallas_call(
        _conv_bias_relu_kernel,
        out_shape=jax.ShapeDtypeStruct((M, C), jnp.float32),
        grid_spec=pltpu.PrefetchScalarGridSpec(
            num_scalar_prefetch=0,
            grid=(M // tm,),
            in_specs=[
                pl.BlockSpec((tm, K), lambda i: (i, 0)),
                pl.BlockSpec((K, C), lambda i: (0, 0)),
                pl.BlockSpec((1, C), lambda i: (0, 0)),
            ],
            out_specs=pl.BlockSpec((tm, C), lambda i: (i, 0)),
        ),
        compiler_params=pltpu.CompilerParams(dimension_semantics=("parallel",)),
    )(p, w, b)


# ------------------- fused conv2 + BN2d + ReLU + FC + BN1d + ReLU ----------- #

def _conv2_fc_bn_relu_kernel(p2_ref, w2_ref, b2_ref, g2_ref, bt2_ref,
                             wfc_ref, bfc_ref, gfc_ref, btfc_ref,
                             o_ref, y2_sc, acc_sc, *, n_batch, pos_per_step):
    # Grid: (j = FC output-column block [parallel], s = FC K block [arbitrary]).
    s = pl.program_id(1)

    @pl.when(s == 0)
    def _():
        # conv2 + bias + BatchNorm2d (training stats over ALL rows) + ReLU.
        # Rows of p2 / y2 are ordered (oh, ow, n) so the FC below can slice
        # position-major chunks straight out of VMEM (no relayout).
        y = jnp.dot(p2_ref[...], w2_ref[...],
                    preferred_element_type=jnp.float32) + b2_ref[...]
        mu = jnp.mean(y, axis=0, keepdims=True)
        var = jnp.mean((y - mu) ** 2, axis=0, keepdims=True)
        scale = g2_ref[...] * lax.rsqrt(var + EPS)
        shift = bt2_ref[...] - mu * scale
        y2_sc[...] = jnp.maximum(y * scale + shift, 0.0)
        # FC accumulator initialised with the broadcast bias (no epilogue add).
        acc_sc[...] = jnp.broadcast_to(bfc_ref[...], acc_sc.shape)

    # FC partial sum for this K tile: pos_per_step spatial positions x 128 ch.
    rows = pos_per_step * n_batch
    base = pl.multiple_of(s * rows, rows)
    blk = y2_sc[pl.ds(base, rows), :]                       # (rows, 128)
    acc = acc_sc[...]
    for p in range(pos_per_step):
        acc = acc + jnp.dot(blk[p * n_batch:(p + 1) * n_batch, :],
                            wfc_ref[p * 128:(p + 1) * 128, :],
                            preferred_element_type=jnp.float32)
    acc_sc[...] = acc

    @pl.when(s == pl.num_programs(1) - 1)
    def _():
        # BatchNorm1d (training stats over the batch rows) + ReLU, per column.
        mu = jnp.mean(acc, axis=0, keepdims=True)
        var = jnp.mean((acc - mu) ** 2, axis=0, keepdims=True)
        scale = gfc_ref[...] * lax.rsqrt(var + EPS)
        shift = btfc_ref[...] - mu * scale
        o_ref[...] = jnp.maximum(acc * scale + shift, 0.0)


def conv2_fc_fused(p2, w2f, b2, g2, beta2, wfc, bfc, gfc, betafc, *, n_batch):
    M2, K2 = p2.shape
    C2 = w2f.shape[1]                      # 128
    Kfc, Cfc = wfc.shape                   # (HW*128, 1024)
    assert Kfc % 128 == 0 and M2 == (Kfc // 128) * n_batch

    # Output-column split: 2 blocks so v7x's two TensorCores each stream half of
    # wfc.  Exact for BN1d (per-column stats).  Neutral on single-TC v5e/v6e.
    tn = Cfc // 2 if Cfc % 256 == 0 else Cfc

    # Largest K tile whose wfc block fits a 4 MiB budget (8 MiB double-buffered)
    # and whose per-step row count in the y2 scratch is sublane aligned.
    budget = 4 << 20
    tk = 128
    for cand in range(128, Kfc + 1, 128):
        if Kfc % cand or cand * tn * 4 > budget:
            continue
        if cand != Kfc and ((cand // 128) * n_batch) % 8 != 0:
            continue
        tk = cand
    nk = Kfc // tk
    pos_per_step = tk // 128

    vmem_limit = int(min(
        2 * (tk * tn + p2.size + w2f.size + 2 * n_batch * tn) * 4
        + M2 * C2 * 4 + (8 << 20),
        64 << 20))

    kernel = functools.partial(_conv2_fc_bn_relu_kernel,
                               n_batch=n_batch, pos_per_step=pos_per_step)
    return pl.pallas_call(
        kernel,
        out_shape=jax.ShapeDtypeStruct((n_batch, Cfc), jnp.float32),
        grid_spec=pltpu.PrefetchScalarGridSpec(
            num_scalar_prefetch=0,
            grid=(Cfc // tn, nk),
            in_specs=[
                pl.BlockSpec((M2, K2), lambda j, s: (0, 0)),   # conv2 patches
                pl.BlockSpec((K2, C2), lambda j, s: (0, 0)),   # conv2 weight
                pl.BlockSpec((1, C2), lambda j, s: (0, 0)),    # conv2 bias
                pl.BlockSpec((1, C2), lambda j, s: (0, 0)),    # BN2d gamma
                pl.BlockSpec((1, C2), lambda j, s: (0, 0)),    # BN2d beta
                pl.BlockSpec((tk, tn), lambda j, s: (s, j)),   # FC weight (streamed)
                pl.BlockSpec((1, tn), lambda j, s: (0, j)),    # FC bias
                pl.BlockSpec((1, tn), lambda j, s: (0, j)),    # BN1d gamma
                pl.BlockSpec((1, tn), lambda j, s: (0, j)),    # BN1d beta
            ],
            out_specs=pl.BlockSpec((n_batch, tn), lambda j, s: (0, j)),
            scratch_shapes=[
                pltpu.VMEM((M2, C2), jnp.float32),             # conv2 output
                pltpu.VMEM((n_batch, tn), jnp.float32),        # FC accumulator
            ],
        ),
        compiler_params=pltpu.CompilerParams(
            dimension_semantics=("parallel", "arbitrary"),
            vmem_limit_bytes=vmem_limit,
        ),
    )(p2, w2f, b2, g2, beta2, wfc, bfc, gfc, betafc)


# --------------------------------- glue ------------------------------------ #

def _im2col(x_nhwc, kh, kw, stride, pad, batch_major=True):
    """NHWC -> (rows, kh*kw*C) patches.  Row order (n, oh, ow) if batch_major,
    else (oh, ow, n) (position-major, needed by the fused conv2/FC kernel).
    Column order (kh, kw, cin)."""
    n, h, w, c = x_nhwc.shape
    xp = jnp.pad(x_nhwc, ((0, 0), (pad, pad), (pad, pad), (0, 0)))
    ho = (h + 2 * pad - kh) // stride + 1
    wo = (w + 2 * pad - kw) // stride + 1
    cols = []
    for i in range(kh):
        for j in range(kw):
            cols.append(xp[:, i:i + stride * ho:stride, j:j + stride * wo:stride, :])
    patches = jnp.stack(cols, axis=3)                      # (N, Ho, Wo, kh*kw, C)
    if not batch_major:
        patches = jnp.transpose(patches, (1, 2, 0, 3, 4))  # (Ho, Wo, N, kh*kw, C)
    return patches.reshape(n * ho * wo, kh * kw * c), (ho, wo)


def prepare_params(params, image_size):
    """One-time weight folding (outside the jitted forward): pad / permute /
    transpose so the runtime does no weight transposes and no activation
    layout transposes before the FC."""
    h2 = w2 = image_size // 4

    # conv1: OIHW -> (kh, kw, cin, cout) = (48, 64), zero-padded to (128, 128).
    w1f = jnp.transpose(params["w1"], (2, 3, 1, 0)).reshape(-1, 64)
    w1f = jnp.pad(w1f, ((0, K1_PAD - w1f.shape[0]), (0, C1_PAD - 64)))
    b1 = jnp.pad(params["b1"], (0, C1_PAD - 64)).reshape(1, C1_PAD)

    # conv2: real 64 input channels only (the padded conv1 lanes are sliced off
    # in XLA glue before the conv2 im2col).
    w2f = jnp.transpose(params["w2"], (2, 3, 1, 0)).reshape(-1, 128)   # (16*64, 128)

    # FC: PyTorch flattens NCHW; the fused kernel consumes the conv2 activation
    # per spatial position with a 128-channel lane dim, so fold the
    # (c,h,w)->(h,w,c) permutation and the transpose into the weight once.
    wfc = params["wfc"].reshape(1024, 128, h2, w2)
    wfc = jnp.transpose(wfc, (2, 3, 1, 0)).reshape(h2 * w2 * 128, 1024)

    return {
        "w1f": w1f, "b1": b1,
        "w2f": w2f,
        "b2": params["b2"].reshape(1, -1),
        "g2": params["g2"].reshape(1, -1),
        "beta2": params["beta2"].reshape(1, -1),
        "wfc": wfc,
        "bfc": params["bfc"].reshape(1, -1),
        "gfc": params["gfc"].reshape(1, -1),
        "betafc": params["betafc"].reshape(1, -1),
    }


@jax.jit
def encoder_forward(x_nchw, pp):
    n = x_nchw.shape[0]
    x = jnp.transpose(x_nchw, (0, 2, 3, 1))                 # NCHW -> NHWC

    # --- Conv2d(3, 64, 4, 2, 1) + ReLU (lane-dense 128-channel output) ---
    # TODO(synk): im2col is XLA glue fused under jit; an in-kernel 16-tap conv
    # would cut HBM traffic further at large image sizes.
    p1, (h1, w1) = _im2col(x, 4, 4, 2, 1)                   # (M1, 48)
    p1 = jnp.pad(p1, ((0, 0), (0, K1_PAD - p1.shape[1])))
    y1 = conv_bias_relu(p1, pp["w1f"], pp["b1"])            # (M1, 128)
    y1 = y1.reshape(n, h1, w1, C1_PAD)[..., :64]            # drop zero pad channels

    # --- fused Conv2d(64,128,4,2,1)+BN2d+ReLU  +  Linear+BN1d+ReLU ---
    # conv2 patches in position-major row order (oh, ow, n) so the fused kernel
    # feeds the FC straight from its VMEM scratch.
    p2, _ = _im2col(y1, 4, 4, 2, 1, batch_major=False)      # (h2*w2*n, 16*64)
    return conv2_fc_fused(p2, pp["w2f"], pp["b2"], pp["g2"], pp["beta2"],
                          pp["wfc"], pp["bfc"], pp["gfc"], pp["betafc"],
                          n_batch=n)


# ----------------------------- reference (JAX) ------------------------------ #

def _bn_train(x, g, b, axes):
    mu = jnp.mean(x, axis=axes, keepdims=True)
    var = jnp.mean((x - mu) ** 2, axis=axes, keepdims=True)
    return (x - mu) * lax.rsqrt(var + EPS) * g + b


@jax.jit
def encoder_reference(x_nchw, params):
    dn = ("NCHW", "OIHW", "NCHW")
    y = lax.conv_general_dilated(x_nchw, params["w1"], (2, 2), [(1, 1), (1, 1)],
                                 dimension_numbers=dn)
    y = jnp.maximum(y + params["b1"][None, :, None, None], 0.0)
    y = lax.conv_general_dilated(y, params["w2"], (2, 2), [(1, 1), (1, 1)],
                                 dimension_numbers=dn)
    y = y + params["b2"][None, :, None, None]
    y = _bn_train(y, params["g2"][None, :, None, None],
                  params["beta2"][None, :, None, None], axes=(0, 2, 3))
    y = jnp.maximum(y, 0.0)
    flat = y.reshape(y.shape[0], -1)
    z = flat @ params["wfc"].T + params["bfc"]
    z = _bn_train(z, params["gfc"], params["betafc"], axes=(0,))
    return jnp.maximum(z, 0.0)


# ---------------------------------- main ------------------------------------ #

if __name__ == "__main__":
    IMAGE_SIZE = 16          # args.image_size
    NUM_LATENT = 8           # args.num_latent (unused by forward: nz never applied)
    BATCH = 2

    key = jax.random.PRNGKey(0)
    k1, k2, k3, kx = jax.random.split(key, 4)

    fc_in = 128 * (IMAGE_SIZE // 4) * (IMAGE_SIZE // 4)
    params = {
        # initialize_weights: conv / linear weights ~ N(0, 0.02), biases zero;
        # BatchNorm keeps default gamma=1, beta=0.
        "w1": 0.02 * jax.random.normal(k1, (64, 3, 4, 4), jnp.float32),
        "b1": jnp.zeros((64,), jnp.float32),
        "w2": 0.02 * jax.random.normal(k2, (128, 64, 4, 4), jnp.float32),
        "b2": jnp.zeros((128,), jnp.float32),
        "g2": jnp.ones((128,), jnp.float32),
        "beta2": jnp.zeros((128,), jnp.float32),
        "wfc": 0.02 * jax.random.normal(k3, (1024, fc_in), jnp.float32),
        "bfc": jnp.zeros((1024,), jnp.float32),
        "gfc": jnp.ones((1024,), jnp.float32),
        "betafc": jnp.zeros((1024,), jnp.float32),
    }

    # One-time weight folding (padding, layout permutation, transpose).
    prepped = jax.tree_util.tree_map(jax.block_until_ready,
                                     prepare_params(params, IMAGE_SIZE))

    x = jax.random.normal(kx, (BATCH, 3, IMAGE_SIZE, IMAGE_SIZE), jnp.float32)

    out = jax.block_until_ready(encoder_forward(x, prepped))
    ref = jax.block_until_ready(encoder_reference(x, params))

    assert out.shape == (BATCH, 1024), out.shape
    assert jnp.allclose(out, ref, atol=1e-3, rtol=1e-3), float(jnp.max(jnp.abs(out - ref)))

    print("KERNEL_OK")
</pallas_src>

<mosaic_0001>
module attributes {stable_mosaic.version = 11 : i64} {
  func.func @_conv_bias_relu_kernel(%arg0: i32, %arg1: memref<64x128xf32, #tpu.memory_space<vmem>>, %arg2: memref<128x128xf32, #tpu.memory_space<vmem>>, %arg3: memref<1x128xf32, #tpu.memory_space<vmem>>, %arg4: memref<64x128xf32, #tpu.memory_space<vmem>>) attributes {dimension_semantics = [#tpu.dimension_semantics<parallel>], iteration_bounds = array<i64: 2>, scalar_prefetch = 0 : i64, scratch_operands = 0 : i64, tpu.core_type = #tpu.core_type<tc>, window_params = [{transform_indices = @transform_0, window_bounds = array<i64: 64, 128>}, {pipeline_mode = #tpu.pipeline_mode<synchronous>, transform_indices = @transform_1, window_bounds = array<i64: 128, 128>}, {pipeline_mode = #tpu.pipeline_mode<synchronous>, transform_indices = @transform_2, window_bounds = array<i64: 1, 128>}, {transform_indices = @transform_3, window_bounds = array<i64: 64, 128>}]} {
    %c0 = arith.constant 0 : index
    %c0_0 = arith.constant 0 : index
    %0 = vector.load %arg1[%c0, %c0_0] : memref<64x128xf32, #tpu.memory_space<vmem>>, vector<64x128xf32>
    %c0_1 = arith.constant 0 : index
    %c0_2 = arith.constant 0 : index
    %1 = vector.load %arg2[%c0_1, %c0_2] : memref<128x128xf32, #tpu.memory_space<vmem>>, vector<128x128xf32>
    %cst = arith.constant dense<0.000000e+00> : vector<64x128xf32>
    %2 = tpu.matmul %0, %1, %cst {dimension_numbers = #tpu.dot_dimension_numbers<[1], [0], [0], [1], [0, 0, 1, 1], [], []>} : vector<64x128xf32>, vector<128x128xf32>, vector<64x128xf32> -> vector<64x128xf32>
    %c0_3 = arith.constant 0 : index
    %c0_4 = arith.constant 0 : index
    %3 = vector.load %arg3[%c0_3, %c0_4] : memref<1x128xf32, #tpu.memory_space<vmem>>, vector<1x128xf32>
    %4 = vector.broadcast %3 : vector<1x128xf32> to vector<64x128xf32>
    %5 = arith.addf %2, %4 : vector<64x128xf32>
    %cst_5 = arith.constant 0.000000e+00 : f32
    %6 = vector.broadcast %cst_5 : f32 to vector<64x128xf32>
    %7 = arith.maximumf %5, %6 : vector<64x128xf32>
    %c0_6 = arith.constant 0 : index
    %c0_7 = arith.constant 0 : index
    %8 = vector.load %arg4[%c0_6, %c0_7] : memref<64x128xf32, #tpu.memory_space<vmem>>, vector<64x128xf32>
    tpu.vector_store %arg4[%c0_6, %c0_7], %7 {strides = array<i32>} : memref<64x128xf32, #tpu.memory_space<vmem>>, vector<64x128xf32>,
    return
  }
  func.func @transform_0(%arg0: i32) -> (i32, i32) {
    %c0_i32 = arith.constant 0 : i32
    %c0_i32_0 = arith.constant 0 : i32
    return %arg0, %c0_i32 : i32, i32
  }
  func.func @transform_1(%arg0: i32) -> (i32, i32) {
    %c0_i32 = arith.constant 0 : i32
    %c0_i32_0 = arith.constant 0 : i32
    %c0_i32_1 = arith.constant 0 : i32
    return %c0_i32, %c0_i32_0 : i32, i32
  }
  func.func @transform_2(%arg0: i32) -> (i32, i32) {
    %c0_i32 = arith.constant 0 : i32
    %c0_i32_0 = arith.constant 0 : i32
    %c0_i32_1 = arith.constant 0 : i32
    return %c0_i32, %c0_i32_0 : i32, i32
  }
  func.func @transform_3(%arg0: i32) -> (i32, i32) {
    %c0_i32 = arith.constant 0 : i32
    %c0_i32_0 = arith.constant 0 : i32
    return %arg0, %c0_i32 : i32, i32
  }
}

module attributes {stable_mosaic.version = 11 : i64} {
  func.func @_conv2_fc_bn_relu_kernel(%arg0: i32, %arg1: i32, %arg2: memref<32x1024xf32, #tpu.memory_space<vmem>>, %arg3: memref<1024x128xf32, #tpu.memory_space<vmem>>, %arg4: memref<1x128xf32, #tpu.memory_space<vmem>>, %arg5: memref<1x128xf32, #tpu.memory_space<vmem>>, %arg6: memref<1x128xf32, #tpu.memory_space<vmem>>, %arg7: memref<2048x512xf32, #tpu.memory_space<vmem>>, %arg8: memref<1x512xf32, #tpu.memory_space<vmem>>, %arg9: memref<1x512xf32, #tpu.memory_space<vmem>>, %arg10: memref<1x512xf32, #tpu.memory_space<vmem>>, %arg11: memref<2x512xf32, #tpu.memory_space<vmem>>, %arg12: memref<32x128xf32, #tpu.memory_space<vmem>>, %arg13: memref<2x512xf32, #tpu.memory_space<vmem>>) attributes {dimension_semantics = [#tpu.dimension_semantics<parallel>, #tpu.dimension_semantics<arbitrary>], iteration_bounds = array<i64: 2, 1>, scalar_prefetch = 0 : i64, scratch_operands = 2 : i64, tpu.core_type = #tpu.core_type<tc>, window_params = [{pipeline_mode = #tpu.pipeline_mode<synchronous>, transform_indices = @transform_0, window_bounds = array<i64: 32, 1024>}, {pipeline_mode = #tpu.pipeline_mode<synchronous>, transform_indices = @transform_1, window_bounds = array<i64: 1024, 128>}, {pipeline_mode = #tpu.pipeline_mode<synchronous>, transform_indices = @transform_2, window_bounds = array<i64: 1, 128>}, {pipeline_mode = #tpu.pipeline_mode<synchronous>, transform_indices = @transform_3, window_bounds = array<i64: 1, 128>}, {pipeline_mode = #tpu.pipeline_mode<synchronous>, transform_indices = @transform_4, window_bounds = array<i64: 1, 128>}, {transform_indices = @transform_5, window_bounds = array<i64: 2048, 512>}, {transform_indices = @transform_6, window_bounds = array<i64: 1, 512>}, {transform_indices = @transform_7, window_bounds = array<i64: 1, 512>}, {transform_indices = @transform_8, window_bounds = array<i64: 1, 512>}, {transform_indices = @transform_9, window_bounds = array<i64: 2, 512>}]} {
    %c0_i32 = arith.constant 0 : i32
    %0 = arith.cmpi eq, %arg1, %c0_i32 : i32
    %1 = arith.extui %0 : i1 to i32
    %c0_i32_0 = arith.constant 0 : i32
    %2 = arith.cmpi ne, %1, %c0_i32_0 : i32
    scf.if %2 {
      %c0_39 = arith.constant 0 : index
      %c0_40 = arith.constant 0 : index
      %76 = vector.load %arg2[%c0_39, %c0_40] : memref<32x1024xf32, #tpu.memory_space<vmem>>, vector<32x1024xf32>
      %c0_41 = arith.constant 0 : index
      %c0_42 = arith.constant 0 : index
      %77 = vector.load %arg3[%c0_41, %c0_42] : memref<1024x128xf32, #tpu.memory_space<vmem>>, vector<1024x128xf32>
      %cst_43 = arith.constant dense<0.000000e+00> : vector<32x128xf32>
      %78 = tpu.matmul %76, %77, %cst_43 {dimension_numbers = #tpu.dot_dimension_numbers<[1], [0], [0], [1], [0, 0, 1, 1], [], []>} : vector<32x1024xf32>, vector<1024x128xf32>, vector<32x128xf32> -> vector<32x128xf32>
      %c0_44 = arith.constant 0 : index
      %c0_45 = arith.constant 0 : index
      %79 = vector.load %arg4[%c0_44, %c0_45] : memref<1x128xf32, #tpu.memory_space<vmem>>, vector<1x128xf32>
      %80 = vector.broadcast %79 : vector<1x128xf32> to vector<32x128xf32>
      %81 = arith.addf %78, %80 : vector<32x128xf32>
      %cst_46 = arith.constant dense<0.000000e+00> : vector<128xf32>
      %82 = vector.multi_reduction <add>, %81, %cst_46 [0] : vector<32x128xf32> to vector<128xf32>
      %83 = vector.shape_cast %82 : vector<128xf32> to vector<1x128xf32>
      %cst_47 = arith.constant 3.200000e+01 : f32
      %84 = vector.broadcast %cst_47 : f32 to vector<1x128xf32>
      %85 = arith.divf %83, %84 : vector<1x128xf32>
      %86 = vector.broadcast %85 : vector<1x128xf32> to vector<32x128xf32>
      %87 = arith.subf %81, %86 : vector<32x128xf32>
      %88 = arith.mulf %87, %87 : vector<32x128xf32>
      %cst_48 = arith.constant dense<0.000000e+00> : vector<128xf32>
      %89 = vector.multi_reduction <add>, %88, %cst_48 [0] : vector<32x128xf32> to vector<128xf32>
      %90 = vector.shape_cast %89 : vector<128xf32> to vector<1x128xf32>
      %cst_49 = arith.constant 3.200000e+01 : f32
      %91 = vector.broadcast %cst_49 : f32 to vector<1x128xf32>
      %92 = arith.divf %90, %91 : vector<1x128xf32>
      %c0_50 = arith.constant 0 : index
      %c0_51 = arith.constant 0 : index
      %93 = vector.load %arg5[%c0_50, %c0_51] : memref<1x128xf32, #tpu.memory_space<vmem>>, vector<1x128xf32>
      %cst_52 = arith.constant 9.99999974E-6 : f32
      %94 = vector.broadcast %cst_52 : f32 to vector<1x128xf32>
      %95 = arith.addf %92, %94 : vector<1x128xf32>
      %96 = math.rsqrt %95 : vector<1x128xf32>
      %97 = arith.mulf %93, %96 : vector<1x128xf32>
      %c0_53 = arith.constant 0 : index
      %c0_54 = arith.constant 0 : index
      %98 = vector.load %arg6[%c0_53, %c0_54] : memref<1x128xf32, #tpu.memory_space<vmem>>, vector<1x128xf32>
      %99 = arith.mulf %85, %97 : vector<1x128xf32>
      %100 = arith.subf %98, %99 : vector<1x128xf32>
      %101 = vector.broadcast %97 : vector<1x128xf32> to vector<32x128xf32>
      %102 = arith.mulf %81, %101 : vector<32x128xf32>
      %103 = vector.broadcast %100 : vector<1x128xf32> to vector<32x128xf32>
      %104 = arith.addf %102, %103 : vector<32x128xf32>
      %cst_55 = arith.constant 0.000000e+00 : f32
      %105 = vector.broadcast %cst_55 : f32 to vector<32x128xf32>
      %106 = arith.maximumf %104, %105 : vector<32x128xf32>
      %c0_56 = arith.constant 0 : index
      %c0_57 = arith.constant 0 : index
      %107 = vector.load %arg12[%c0_56, %c0_57] : memref<32x128xf32, #tpu.memory_space<vmem>>, vector<32x128xf32>
      tpu.vector_store %arg12[%c0_56, %c0_57], %106 {strides = array<i32>} : memref<32x128xf32, #tpu.memory_space<vmem>>, vector<32x128xf32>,
      %c0_58 = arith.constant 0 : index
      %c0_59 = arith.constant 0 : index
      %108 = vector.load %arg8[%c0_58, %c0_59] : memref<1x512xf32, #tpu.memory_space<vmem>>, vector<1x512xf32>
      %109 = vector.shape_cast %108 : vector<1x512xf32> to vector<1x512xf32>
      %110 = vector.broadcast %109 : vector<1x512xf32> to vector<2x512xf32>
      %c0_60 = arith.constant 0 : index
      %c0_61 = arith.constant 0 : index
      %111 = vector.load %arg13[%c0_60, %c0_61] : memref<2x512xf32, #tpu.memory_space<vmem>>, vector<2x512xf32>
      tpu.vector_store %arg13[%c0_60, %c0_61], %110 {strides = array<i32>} : memref<2x512xf32, #tpu.memory_space<vmem>>, vector<2x512xf32>,
    } else {
    }
    %c32_i32 = arith.constant 32 : i32
    %3 = arith.muli %arg1, %c32_i32 : i32
    %4 = tpu.assume_multiple %3, 32 : i32
    %5 = arith.index_cast %4 : i32 to index
    %c0 = arith.constant 0 : index
    %6 = vector.load %arg12[%5, %c0] : memref<32x128xf32, #tpu.memory_space<vmem>>, vector<32x128xf32>
    %c0_1 = arith.constant 0 : index
    %c0_2 = arith.constant 0 : index
    %7 = vector.load %arg13[%c0_1, %c0_2] : memref<2x512xf32, #tpu.memory_space<vmem>>, vector<2x512xf32>
    %8 = vector.extract_strided_slice %6 {offsets = [0, 0], sizes = [2, 128], strides = [1, 1]} : vector<32x128xf32> to vector<2x128xf32>
    %c0_3 = arith.constant 0 : index
    %c0_4 = arith.constant 0 : index
    %9 = vector.load %arg7[%c0_3, %c0_4] : memref<2048x512xf32, #tpu.memory_space<vmem>>, vector<128x512xf32>
    %cst = arith.constant dense<0.000000e+00> : vector<2x512xf32>
    %10 = tpu.matmul %8, %9, %cst {dimension_numbers = #tpu.dot_dimension_numbers<[1], [0], [0], [1], [0, 0, 1, 1], [], []>} : vector<2x128xf32>, vector<128x512xf32>, vector<2x512xf32> -> vector<2x512xf32>
    %11 = arith.addf %7, %10 : vector<2x512xf32>
    %12 = vector.extract_strided_slice %6 {offsets = [2, 0], sizes = [2, 128], strides = [1, 1]} : vector<32x128xf32> to vector<2x128xf32>
    %c128 = arith.constant 128 : index
    %c0_5 = arith.constant 0 : index
    %13 = vector.load %arg7[%c128, %c0_5] : memref<2048x512xf32, #tpu.memory_space<vmem>>, vector<128x512xf32>
    %cst_6 = arith.constant dense<0.000000e+00> : vector<2x512xf32>
    %14 = tpu.matmul %12, %13, %cst_6 {dimension_numbers = #tpu.dot_dimension_numbers<[1], [0], [0], [1], [0, 0, 1, 1], [], []>} : vector<2x128xf32>, vector<128x512xf32>, vector<2x512xf32> -> vector<2x512xf32>
    %15 = arith.addf %11, %14 : vector<2x512xf32>
    %16 = vector.extract_strided_slice %6 {offsets = [4, 0], sizes = [2, 128], strides = [1, 1]} : vector<32x128xf32> to vector<2x128xf32>
    %c256 = arith.constant 256 : index
    %c0_7 = arith.constant 0 : index
    %17 = vector.load %arg7[%c256, %c0_7] : memref<2048x512xf32, #tpu.memory_space<vmem>>, vector<128x512xf32>
    %cst_8 = arith.constant dense<0.000000e+00> : vector<2x512xf32>
    %18 = tpu.matmul %16, %17, %cst_8 {dimension_numbers = #tpu.dot_dimension_numbers<[1], [0], [0], [1], [0, 0, 1, 1], [], []>} : vector<2x128xf32>, vector<128x512xf32>, vector<2x512xf32> -> vector<2x512xf32>
    %19 = arith.addf %15, %18 : vector<2x512xf32>
    %20 = vector.extract_strided_slice %6 {offsets = [6, 0], sizes = [2, 128], strides = [1, 1]} : vector<32x128xf32> to vector<2x128xf32>
    %c384 = arith.constant 384 : index
    %c0_9 = arith.constant 0 : index
    %21 = vector.load %arg7[%c384, %c0_9] : memref<2048x512xf32, #tpu.memory_space<vmem>>, vector<128x512xf32>
    %cst_10 = arith.constant dense<0.000000e+00> : vector<2x512xf32>
    %22 = tpu.matmul %20, %21, %cst_10 {dimension_numbers = #tpu.dot_dimension_numbers<[1], [0], [0], [1], [0, 0, 1, 1], [], []>} : vector<2x128xf32>, vector<128x512xf32>, vector<2x512xf32> -> vector<2x512xf32>
    %23 = arith.addf %19, %22 : vector<2x512xf32>
    %24 = vector.extract_strided_slice %6 {offsets = [8, 0], sizes = [2, 128], strides = [1, 1]} : vector<32x128xf32> to vector<2x128xf32>
    %c512 = arith.constant 512 : index
    %c0_11 = arith.constant 0 : index
    %25 = vector.load %arg7[%c512, %c0_11] : memref<2048x512xf32, #tpu.memory_space<vmem>>, vector<128x512xf32>
    %cst_12 = arith.constant dense<0.000000e+00> : vector<2x512xf32>
    %26 = tpu.matmul %24, %25, %cst_12 {dimension_numbers = #tpu.dot_dimension_numbers<[1], [0], [0], [1], [0, 0, 1, 1], [], []>} : vector<2x128xf32>, vector<128x512xf32>, vector<2x512xf32> -> vector<2x512xf32>
    %27 = arith.addf %23, %26 : vector<2x512xf32>
    %28 = vector.extract_strided_slice %6 {offsets = [10, 0], sizes = [2, 128], strides = [1, 1]} : vector<32x128xf32> to vector<2x128xf32>
    %c640 = arith.constant 640 : index
    %c0_13 = arith.constant 0 : index
    %29 = vector.load %arg7[%c640, %c0_13] : memref<2048x512xf32, #tpu.memory_space<vmem>>, vector<128x512xf32>
    %cst_14 = arith.constant dense<0.000000e+00> : vector<2x512xf32>
    %30 = tpu.matmul %28, %29, %cst_14 {dimension_numbers = #tpu.dot_dimension_numbers<[1], [0], [0], [1], [0, 0, 1, 1], [], []>} : vector<2x128xf32>, vector<128x512xf32>, vector<2x512xf32> -> vector<2x512xf32>
    %31 = arith.addf %27, %30 : vector<2x512xf32>
    %32 = vector.extract_strided_slice %6 {offsets = [12, 0], sizes = [2, 128], strides = [1, 1]} : vector<32x128xf32> to vector<2x128xf32>
    %c768 = arith.constant 768 : index
    %c0_15 = arith.constant 0 : index
    %33 = vector.load %arg7[%c768, %c0_15] : memref<2048x512xf32, #tpu.memory_space<vmem>>, vector<128x512xf32>
    %cst_16 = arith.constant dense<0.000000e+00> : vector<2x512xf32>
    %34 = tpu.matmul %32, %33, %cst_16 {dimension_numbers = #tpu.dot_dimension_numbers<[1], [0], [0], [1], [0, 0, 1, 1], [], []>} : vector<2x128xf32>, vector<128x512xf32>, vector<2x512xf32> -> vector<2x512xf32>
    %35 = arith.addf %31, %34 : vector<2x512xf32>
    %36 = vector.extract_strided_slice %6 {offsets = [14, 0], sizes = [2, 128], strides = [1, 1]} : vector<32x128xf32> to vector<2x128xf32>
    %c896 = arith.constant 896 : index
    %c0_17 = arith.constant 0 : index
    %37 = vector.load %arg7[%c896, %c0_17] : memref<2048x512xf32, #tpu.memory_space<vmem>>, vector<128x512xf32>
    %cst_18 = arith.constant dense<0.000000e+00> : vector<2x512xf32>
    %38 = tpu.matmul %36, %37, %cst_18 {dimension_numbers = #tpu.dot_dimension_numbers<[1], [0], [0], [1], [0, 0, 1, 1], [], []>} : vector<2x128xf32>, vector<128x512xf32>, vector<2x512xf32> -> vector<2x512xf32>
    %39 = arith.addf %35, %38 : vector<2x512xf32>
    %40 = vector.extract_strided_slice %6 {offsets = [16, 0], sizes = [2, 128], strides = [1, 1]} : vector<32x128xf32> to vector<2x128xf32>
    %c1024 = arith.constant 1024 : index
    %c0_19 = arith.constant 0 : index
    %41 = vector.load %arg7[%c1024, %c0_19] : memref<2048x512xf32, #tpu.memory_space<vmem>>, vector<128x512xf32>
    %cst_20 = arith.constant dense<0.000000e+00> : vector<2x512xf32>
    %42 = tpu.matmul %40, %41, %cst_20 {dimension_numbers = #tpu.dot_dimension_numbers<[1], [0], [0], [1], [0, 0, 1, 1], [], []>} : vector<2x128xf32>, vector<128x512xf32>, vector<2x512xf32> -> vector<2x512xf32>
    %43 = arith.addf %39, %42 : vector<2x512xf32>
    %44 = vector.extract_strided_slice %6 {offsets = [18, 0], sizes = [2, 128], strides = [1, 1]} : vector<32x128xf32> to vector<2x128xf32>
    %c1152 = arith.constant 1152 : index
    %c0_21 = arith.constant 0 : index
    %45 = vector.load %arg7[%c1152, %c0_21] : memref<2048x512xf32, #tpu.memory_space<vmem>>, vector<128x512xf32>
    %cst_22 = arith.constant dense<0.000000e+00> : vector<2x512xf32>
    %46 = tpu.matmul %44, %45, %cst_22 {dimension_numbers = #tpu.dot_dimension_numbers<[1], [0], [0], [1], [0, 0, 1, 1], [], []>} : vector<2x128xf32>, vector<128x512xf32>, vector<2x512xf32> -> vector<2x512xf32>
    %47 = arith.addf %43, %46 : vector<2x512xf32>
    %48 = vector.extract_strided_slice %6 {offsets = [20, 0], sizes = [2, 128], strides = [1, 1]} : vector<32x128xf32> to vector<2x128xf32>
    %c1280 = arith.constant 1280 : index
    %c0_23 = arith.constant 0 : index
    %49 = vector.load %arg7[%c1280, %c0_23] : memref<2048x512xf32, #tpu.memory_space<vmem>>, vector<128x512xf32>
    %cst_24 = arith.constant dense<0.000000e+00> : vector<2x512xf32>
    %50 = tpu.matmul %48, %49, %cst_24 {dimension_numbers = #tpu.dot_dimension_numbers<[1], [0], [0], [1], [0, 0, 1, 1], [], []>} : vector<2x128xf32>, vector<128x512xf32>, vector<2x512xf32> -> vector<2x512xf32>
    %51 = arith.addf %47, %50 : vector<2x512xf32>
    %52 = vector.extract_strided_slice %6 {offsets = [22, 0], sizes = [2, 128], strides = [1, 1]} : vector<32x128xf32> to vector<2x128xf32>
    %c1408 = arith.constant 1408 : index
    %c0_25 = arith.constant 0 : index
    %53 = vector.load %arg7[%c1408, %c0_25] : memref<2048x512xf32, #tpu.memory_space<vmem>>, vector<128x512xf32>
    %cst_26 = arith.constant dense<0.000000e+00> : vector<2x512xf32>
    %54 = tpu.matmul %52, %53, %cst_26 {dimension_numbers = #tpu.dot_dimension_numbers<[1], [0], [0], [1], [0, 0, 1, 1], [], []>} : vector<2x128xf32>, vector<128x512xf32>, vector<2x512xf32> -> vector<2x512xf32>
    %55 = arith.addf %51, %54 : vector<2x512xf32>
    %56 = vector.extract_strided_slice %6 {offsets = [24, 0], sizes = [2, 128], strides = [1, 1]} : vector<32x128xf32> to vector<2x128xf32>
    %c1536 = arith.constant 1536 : index
    %c0_27 = arith.constant 0 : index
    %57 = vector.load %arg7[%c1536, %c0_27] : memref<2048x512xf32, #tpu.memory_space<vmem>>, vector<128x512xf32>
    %cst_28 = arith.constant dense<0.000000e+00> : vector<2x512xf32>
    %58 = tpu.matmul %56, %57, %cst_28 {dimension_numbers = #tpu.dot_dimension_numbers<[1], [0], [0], [1], [0, 0, 1, 1], [], []>} : vector<2x128xf32>, vector<128x512xf32>, vector<2x512xf32> -> vector<2x512xf32>
    %59 = arith.addf %55, %58 : vector<2x512xf32>
    %60 = vector.extract_strided_slice %6 {offsets = [26, 0], sizes = [2, 128], strides = [1, 1]} : vector<32x128xf32> to vector<2x128xf32>
    %c1664 = arith.constant 1664 : index
    %c0_29 = arith.constant 0 : index
    %61 = vector.load %arg7[%c1664, %c0_29] : memref<2048x512xf32, #tpu.memory_space<vmem>>, vector<128x512xf32>
    %cst_30 = arith.constant dense<0.000000e+00> : vector<2x512xf32>
    %62 = tpu.matmul %60, %61, %cst_30 {dimension_numbers = #tpu.dot_dimension_numbers<[1], [0], [0], [1], [0, 0, 1, 1], [], []>} : vector<2x128xf32>, vector<128x512xf32>, vector<2x512xf32> -> vector<2x512xf32>
    %63 = arith.addf %59, %62 : vector<2x512xf32>
    %64 = vector.extract_strided_slice %6 {offsets = [28, 0], sizes = [2, 128], strides = [1, 1]} : vector<32x128xf32> to vector<2x128xf32>
    %c1792 = arith.constant 1792 : index
    %c0_31 = arith.constant 0 : index
    %65 = vector.load %arg7[%c1792, %c0_31] : memref<2048x512xf32, #tpu.memory_space<vmem>>, vector<128x512xf32>
    %cst_32 = arith.constant dense<0.000000e+00> : vector<2x512xf32>
    %66 = tpu.matmul %64, %65, %cst_32 {dimension_numbers = #tpu.dot_dimension_numbers<[1], [0], [0], [1], [0, 0, 1, 1], [], []>} : vector<2x128xf32>, vector<128x512xf32>, vector<2x512xf32> -> vector<2x512xf32>
    %67 = arith.addf %63, %66 : vector<2x512xf32>
    %68 = vector.extract_strided_slice %6 {offsets = [30, 0], sizes = [2, 128], strides = [1, 1]} : vector<32x128xf32> to vector<2x128xf32>
    %c1920 = arith.constant 1920 : index
    %c0_33 = arith.constant 0 : index
    %69 = vector.load %arg7[%c1920, %c0_33] : memref<2048x512xf32, #tpu.memory_space<vmem>>, vector<128x512xf32>
    %cst_34 = arith.constant dense<0.000000e+00> : vector<2x512xf32>
    %70 = tpu.matmul %68, %69, %cst_34 {dimension_numbers = #tpu.dot_dimension_numbers<[1], [0], [0], [1], [0, 0, 1, 1], [], []>} : vector<2x128xf32>, vector<128x512xf32>, vector<2x512xf32> -> vector<2x512xf32>
    %71 = arith.addf %67, %70 : vector<2x512xf32>
    %c0_35 = arith.constant 0 : index
    %c0_36 = arith.constant 0 : index
    %72 = vector.load %arg13[%c0_35, %c0_36] : memref<2x512xf32, #tpu.memory_space<vmem>>, vector<2x512xf32>
    tpu.vector_store %arg13[%c0_35, %c0_36], %71 {strides = array<i32>} : memref<2x512xf32, #tpu.memory_space<vmem>>, vector<2x512xf32>,
    %c0_i32_37 = arith.constant 0 : i32
    %73 = arith.cmpi eq, %arg1, %c0_i32_37 : i32
    %74 = arith.extui %73 : i1 to i32
    %c0_i32_38 = arith.constant 0 : i32
    %75 = arith.cmpi ne, %74, %c0_i32_38 : i32
    scf.if %75 {
      %cst_39 = arith.constant dense<0.000000e+00> : vector<512xf32>
      %76 = vector.multi_reduction <add>, %71, %cst_39 [0] : vector<2x512xf32> to vector<512xf32>
      %77 = vector.shape_cast %76 : vector<512xf32> to vector<1x512xf32>
      %cst_40 = arith.constant 2.000000e+00 : f32
      %78 = vector.broadcast %cst_40 : f32 to vector<1x512xf32>
      %79 = arith.divf %77, %78 : vector<1x512xf32>
      %80 = vector.broadcast %79 : vector<1x512xf32> to vector<2x512xf32>
      %81 = arith.subf %71, %80 : vector<2x512xf32>
      %82 = arith.mulf %81, %81 : vector<2x512xf32>
      %cst_41 = arith.constant dense<0.000000e+00> : vector<512xf32>
      %83 = vector.multi_reduction <add>, %82, %cst_41 [0] : vector<2x512xf32> to vector<512xf32>
      %84 = vector.shape_cast %83 : vector<512xf32> to vector<1x512xf32>
      %cst_42 = arith.constant 2.000000e+00 : f32
      %85 = vector.broadcast %cst_42 : f32 to vector<1x512xf32>
      %86 = arith.divf %84, %85 : vector<1x512xf32>
      %c0_43 = arith.constant 0 : index
      %c0_44 = arith.constant 0 : index
      %87 = vector.load %arg9[%c0_43, %c0_44] : memref<1x512xf32, #tpu.memory_space<vmem>>, vector<1x512xf32>
      %cst_45 = arith.constant 9.99999974E-6 : f32
      %88 = vector.broadcast %cst_45 : f32 to vector<1x512xf32>
      %89 = arith.addf %86, %88 : vector<1x512xf32>
      %90 = math.rsqrt %89 : vector<1x512xf32>
      %91 = arith.mulf %87, %90 : vector<1x512xf32>
      %c0_46 = arith.constant 0 : index
      %c0_47 = arith.constant 0 : index
      %92 = vector.load %arg10[%c0_46, %c0_47] : memref<1x512xf32, #tpu.memory_space<vmem>>, vector<1x512xf32>
      %93 = arith.mulf %79, %91 : vector<1x512xf32>
      %94 = arith.subf %92, %93 : vector<1x512xf32>
      %95 = vector.broadcast %91 : vector<1x512xf32> to vector<2x512xf32>
      %96 = arith.mulf %71, %95 : vector<2x512xf32>
      %97 = vector.broadcast %94 : vector<1x512xf32> to vector<2x512xf32>
      %98 = arith.addf %96, %97 : vector<2x512xf32>
      %cst_48 = arith.constant 0.000000e+00 : f32
      %99 = vector.broadcast %cst_48 : f32 to vector<2x512xf32>
      %100 = arith.maximumf %98, %99 : vector<2x512xf32>
      %c0_49 = arith.constant 0 : index
      %c0_50 = arith.constant 0 : index
      %101 = vector.load %arg11[%c0_49, %c0_50] : memref<2x512xf32, #tpu.memory_space<vmem>>, vector<2x512xf32>
      tpu.vector_store %arg11[%c0_49, %c0_50], %100 {strides = array<i32>} : memref<2x512xf32, #tpu.memory_space<vmem>>, vector<2x512xf32>,
    } else {
    }
    return
  }
  func.func @transform_0(%arg0: i32, %arg1: i32) -> (i32, i32) {
    %c0_i32 = arith.constant 0 : i32
    %c0_i32_0 = arith.constant 0 : i32
    %c0_i32_1 = arith.constant 0 : i32
    return %c0_i32, %c0_i32_0 : i32, i32
  }
  func.func @transform_1(%arg0: i32, %arg1: i32) -> (i32, i32) {
    %c0_i32 = arith.constant 0 : i32
    %c0_i32_0 = arith.constant 0 : i32
    %c0_i32_1 = arith.constant 0 : i32
    return %c0_i32, %c0_i32_0 : i32, i32
  }
  func.func @transform_2(%arg0: i32, %arg1: i32) -> (i32, i32) {
    %c0_i32 = arith.constant 0 : i32
    %c0_i32_0 = arith.constant 0 : i32
    %c0_i32_1 = arith.constant 0 : i32
    return %c0_i32, %c0_i32_0 : i32, i32
  }
  func.func @transform_3(%arg0: i32, %arg1: i32) -> (i32, i32) {
    %c0_i32 = arith.constant 0 : i32
    %c0_i32_0 = arith.constant 0 : i32
    %c0_i32_1 = arith.constant 0 : i32
    return %c0_i32, %c0_i32_0 : i32, i32
  }
  func.func @transform_4(%arg0: i32, %arg1: i32) -> (i32, i32) {
    %c0_i32 = arith.constant 0 : i32
    %c0_i32_0 = arith.constant 0 : i32
    %c0_i32_1 = arith.constant 0 : i32
    return %c0_i32, %c0_i32_0 : i32, i32
  }
  func.func @transform_5(%arg0: i32, %arg1: i32) -> (i32, i32) {
    %c0_i32 = arith.constant 0 : i32
    return %arg1, %arg0 : i32, i32
  }
  func.func @transform_6(%arg0: i32, %arg1: i32) -> (i32, i32) {
    %c0_i32 = arith.constant 0 : i32
    %c0_i32_0 = arith.constant 0 : i32
    return %c0_i32, %arg0 : i32, i32
  }
  func.func @transform_7(%arg0: i32, %arg1: i32) -> (i32, i32) {
    %c0_i32 = arith.constant 0 : i32
    %c0_i32_0 = arith.constant 0 : i32
    return %c0_i32, %arg0 : i32, i32
  }
  func.func @transform_8(%arg0: i32, %arg1: i32) -> (i32, i32) {
    %c0_i32 = arith.constant 0 : i32
    %c0_i32_0 = arith.constant 0 : i32
    return %c0_i32, %arg0 : i32, i32
  }
  func.func @transform_9(%arg0: i32, %arg1: i32) -> (i32, i32) {
    %c0_i32 = arith.constant 0 : i32
    %c0_i32_0 = arith.constant 0 : i32
    return %c0_i32, %arg0 : i32, i32
  }
}

</mosaic_0001>

<llo_original>
// kernel: encoder_forward.2
$region0: #{encoder_forward.2}
  #allocation0 [shape = 'u32[]', space=smem, size = 0x4, offset = 0x4, fixed_abs, tag = 'smem constant byte address 0x4 - core index']
  #allocation1 [shape = 'u32[144,128]{1,0:T(1,128)}', space=vmem, size = 0x12000, scoped, tag = 'internal scratch']
  %s0 = inlined_call_operand.vmem [shape: f32[128,128], index: 0, kind: input, shape index: {}]
  %s1 = inlined_call_operand.hbm [shape: f32[128,128], index: 1, kind: input, shape index: {}]
  %s2 = inlined_call_operand.hbm [shape: f32[1,128], index: 2, kind: input, shape index: {}]
  %s3 = inlined_call_operand.vmem [shape: f32[128,128], index: 3, kind: output, shape index: {}]
  %s4 = sld [smem:[#allocation0]]
  $region53: #{encoder_forward.2} parent=0
    _
  %s6 = ssub.s32 1, %s4
  %s7 = scalar_select 0, %s6, %s4
  $region1: #{encoder_forward.2} parent=0
    #allocation2 [shape = 'u8[65536]{0}', space=vmem, size = 0x10000, scoped, tag = 'input window, operand 1, single buffered']
    #allocation3 [shape = 's32[2]{0}', space=sflag, size = 0x8, scoped, tag = 'scoped memory for encoder_forward.2']
    #allocation4 [shape = 'u8[512]{0}', space=vmem, size = 0x400, scoped, tag = 'input window, operand 2, single buffered']
    #allocation5 [shape = 's32[1]{0}', space=sflag, size = 0x4, scoped, tag = 'scoped memory for encoder_forward.2']
    %8 = vsyncpa [#allocation3], 0
    %9 = vsyncpa [#allocation5], 0
    loop: start=0, step=1, limit=4
    $region2: #{encoder_forward.2} parent=1 // loop_pre_header
      _
    $region3: #{encoder_forward.2} parent=1 // loop_header
      %s11 = sphi 0, %s15
      %p12 = scmp.ge.s32.totalorder %s11, 4
      %s21 = sphi 0, %s23
      %s24 = sphi 0, %s21
      %s25 = sphi 0, %s24
      %s41 = sphi 0, %s25
      %s45 = sphi 0, %s45
      %s47 = sphi 0, %s45
      %s48 = sphi 0, %s47
      %s62 = sphi 0, %s48
      %s66 = sphi 0, %s66
      %s68 = sphi 0, %s66
      %s69 = sphi 0, %s68
      %s83 = sphi 0, %s69
      %s89 = sphi 0, %s91
      %s92 = sphi 0, %s89
      %s93 = sphi 0, %s92
      %s109 = sphi 0, %s93
    $region4: #{encoder_forward.2} parent=1 // loop_header_branch
      %14 = sbr.rel (%p12) target = $region8
    $region5: #{encoder_forward.2} parent=1 // loop_body
      %s16 = ssub.s32 %s11, 1
      %s17 = ssub.s32 %s11, 2
      %s18 = sadd.s32 %s11, 1
      %s19 = ssub.s32 %s11, %s18
      %p20 = scmp.eq.s32.totalorder %s19, 0
      %s22 = sadd.s32 %s21, 1
      %s23 = scalar_select %p20, %s21, %s22
      %p26 = pneg %p20
      %p27 = scmp.eq.s32.totalorder %s11, 1
      %p28 = por %p26, %p27
      %p29 = scmp.ne.s32.totalorder %s21, %s24
      %p30 = scmp.eq.s32.totalorder %s11, 0
      %p31 = por %p29, %p30
      %p32 = scmp.ne.s32.totalorder %s21, %s24
      %p33 = scmp.eq.s32.totalorder %s16, 1
      %p34 = por %p32, %p33
      %p35 = scmp.ne.s32.totalorder %s24, %s25
      %p36 = scmp.eq.s32.totalorder %s16, 0
      %p37 = por %p35, %p36
      %p38 = scmp.ne.s32.totalorder %s24, %s25
      %p39 = scmp.eq.s32.totalorder %s17, 1
      %p40 = por %p38, %p39
      %p42 = scmp.ne.s32.totalorder %s25, %s41
      %p43 = scmp.eq.s32.totalorder %s17, 0
      %p44 = por %p42, %p43
      %s46 = sadd.s32 %s45, 1
      %p49 = scmp.eq.s32.totalorder %s11, 1
      %p50 = scmp.ne.s32.totalorder %s45, %s47
      %p51 = scmp.eq.s32.totalorder %s11, 0
      %p52 = por %p50, %p51
      %p53 = scmp.ne.s32.totalorder %s45, %s47
      %p54 = scmp.eq.s32.totalorder %s16, 1
      %p55 = por %p53, %p54
      %p56 = scmp.ne.s32.totalorder %s47, %s48
      %p57 = scmp.eq.s32.totalorder %s16, 0
      %p58 = por %p56, %p57
      %p59 = scmp.ne.s32.totalorder %s47, %s48
      %p60 = scmp.eq.s32.totalorder %s17, 1
      %p61 = por %p59, %p60
      %p63 = scmp.ne.s32.totalorder %s48, %s62
      %p64 = scmp.eq.s32.totalorder %s17, 0
      %p65 = por %p63, %p64
      %s67 = sadd.s32 %s66, 1
      %p70 = scmp.eq.s32.totalorder %s11, 1
      %p71 = scmp.ne.s32.totalorder %s66, %s68
      %p72 = scmp.eq.s32.totalorder %s11, 0
      %p73 = por %p71, %p72
      %p74 = scmp.ne.s32.totalorder %s66, %s68
      %p75 = scmp.eq.s32.totalorder %s16, 1
      %p76 = por %p74, %p75
      %p77 = scmp.ne.s32.totalorder %s68, %s69
      %p78 = scmp.eq.s32.totalorder %s16, 0
      %p79 = por %p77, %p78
      %p80 = scmp.ne.s32.totalorder %s68, %s69
      %p81 = scmp.eq.s32.totalorder %s17, 1
      %p82 = por %p80, %p81
      %p84 = scmp.ne.s32.totalorder %s69, %s83
      %p85 = scmp.eq.s32.totalorder %s17, 0
      %p86 = por %p84, %p85
      %s87 = ssub.s32 %s11, %s18
      %p88 = scmp.eq.s32.totalorder %s87, 0
      %s90 = sadd.s32 %s89, 1
      %s91 = scalar_select %p88, %s89, %s90
      %p94 = pneg %p88
      %p95 = scmp.eq.s32.totalorder %s11, 1
      %p96 = por %p94, %p95
      %p97 = scmp.ne.s32.totalorder %s89, %s92
      %p98 = scmp.eq.s32.totalorder %s11, 0
      %p99 = por %p97, %p98
      %p100 = scmp.ne.s32.totalorder %s89, %s92
      %p101 = scmp.eq.s32.totalorder %s16, 1
      %p102 = por %p100, %p101
      %p103 = scmp.ne.s32.totalorder %s92, %s93
      %p104 = scmp.eq.s32.totalorder %s16, 0
      %p105 = por %p103, %p104
      %p106 = scmp.ne.s32.totalorder %s92, %s93
      %p107 = scmp.eq.s32.totalorder %s17, 1
      %p108 = por %p106, %p107
      %p110 = scmp.ne.s32.totalorder %s93, %s109
      %p111 = scmp.eq.s32.totalorder %s17, 0
      %p112 = por %p110, %p111
      %p113 = scmp.le.s32.totalorder 1, %s11
      %p114 = scmp.lt.s32.totalorder %s11, 3
      %p115 = pnand %p113, %p114
      %p116 = pneg %p115
      // Predicated region
      $region9: #{encoder_forward.2} parent=5 // pred_check
        _
      $region10: #{encoder_forward.2} parent=5 // pred_check_branch
        %118 = sbr.rel (%p115) target = $region12
      $region11: #{encoder_forward.2} parent=5 // pred_region
        %s119 = ssub.s32 %s11, 1
        // Predicated region
        $region13: #{encoder_forward.2} parent=11 // pred_check
          %p120 = pneg %p58
        $region14: #{encoder_forward.2} parent=11 // pred_check_branch
          %122 = sbr.rel (%p120) target = $region16
        $region15: #{encoder_forward.2} parent=11 // pred_region
          %s124 = ssub.s32 2048, 2048
          %125 = vsyncadd [#allocation3], %s124
          %s126 = sshll.u32 [#allocation2], 4
          %s127 = int_to_ptr.vmem [resolvable:$true] %s126
          %132 = dma.hbm_to_vmem [thread:$0]  %s1, 2048, %s127, [#allocation3], 128, 128, 8
        $region16: #{encoder_forward.2} parent=11 // pred_fallthru
          _
        // Predicated region
        $region17: #{encoder_forward.2} parent=11 // pred_check
          %p133 = pneg %p79
        $region18: #{encoder_forward.2} parent=11 // pred_check_branch
          %135 = sbr.rel (%p133) target = $region20
        $region19: #{encoder_forward.2} parent=11 // pred_region
          %s137 = ssub.s32 16, 16
          %138 = vsyncadd [#allocation5], %s137
          %s140 = sshll.u32 [#allocation4], 4
          %s141 = int_to_ptr.vmem [resolvable:$true] %s140
          %143 = dma.hbm_to_vmem [thread:$0]  %s2, 16, %s141, [#allocation5]
        $region20: #{encoder_forward.2} parent=11 // pred_fallthru
          _
      $region12: #{encoder_forward.2} parent=5 // pred_fallthru
        _
      %p144 = scmp.lt.s32.totalorder %s11, 2
      // Predicated region
      $region21: #{encoder_forward.2} parent=5 // pred_check
        %p145 = pneg %p144
      $region22: #{encoder_forward.2} parent=5 // pred_check_branch
        %147 = sbr.rel (%p145) target = $region24
      $region23: #{encoder_forward.2} parent=5 // pred_region
        // Predicated region
        $region25: #{encoder_forward.2} parent=23 // pred_check
          %p148 = pneg %p31
        $region26: #{encoder_forward.2} parent=23 // pred_check_branch
          %150 = sbr.rel (%p148) target = $region28
        $region27: #{encoder_forward.2} parent=23 // pred_region
          %s151 = smul.u32 8, %s11
          %p152 = scmp.lt.s32.totalorder %s151, 15
          %s153 = scalar_select %p152, %s151, 15
          %s154 = smul.addr %s153, 8
          %s155 = scalar_lea.vmem %s0, %s154
          %s156 = smul.u32 8, %s11
        $region28: #{encoder_forward.2} parent=23 // pred_fallthru
          _
      $region24: #{encoder_forward.2} parent=5 // pred_fallthru
        _
      %p157 = scmp.le.s32.totalorder 1, %s11
      %p158 = scmp.lt.s32.totalorder %s11, 3
      %p159 = pnand %p157, %p158
      %p160 = pneg %p159
      // Predicated region
      $region29: #{encoder_forward.2} parent=5 // pred_check
        _
      $region30: #{encoder_forward.2} parent=5 // pred_check_branch
        %162 = sbr.rel (%p159) target = $region32
      $region31: #{encoder_forward.2} parent=5 // pred_region
        %s163 = ssub.s32 %s11, 1
        // Predicated region
        $region33: #{encoder_forward.2} parent=31 // pred_check
          %p164 = pneg %p58
        $region34: #{encoder_forward.2} parent=31 // pred_check_branch
          %166 = sbr.rel (%p164) target = $region36
        $region35: #{encoder_forward.2} parent=31 // pred_region
          %167 = dma.done [#allocation3], 2048
        $region36: #{encoder_forward.2} parent=31 // pred_fallthru
          _
        // Predicated region
        $region37: #{encoder_forward.2} parent=31 // pred_check
          %p168 = pneg %p79
        $region38: #{encoder_forward.2} parent=31 // pred_check_branch
          %170 = sbr.rel (%p168) target = $region40
        $region39: #{encoder_forward.2} parent=31 // pred_region
          %171 = dma.done [#allocation5], 16
        $region40: #{encoder_forward.2} parent=31 // pred_fallthru
          _
        %s172 = smul.u32 8, %s16
        %p173 = scmp.lt.s32.totalorder %s172, 15
        %s174 = scalar_select %p173, %s172, 15
        %s175 = smul.addr %s174, 8
        %s176 = scalar_lea.vmem %s0, %s175
        %p177 = pneg %p37
        %p178 = pneg %p34
        %p179 = pneg %p58
        %p180 = pneg %p55
        %p181 = pneg %p79
        %p182 = pneg %p76
        %p183 = pneg %p105
        %p184 = pneg %p102
        %s185 = smul.u32 8, %s16
        %p186 = scmp.lt.s32.totalorder %s185, 15
        %s187 = scalar_select %p186, %s185, 15
        %s188 = smul.addr %s187, 8
        %s189 = scalar_lea.vmem %s3, %s188
        %s190 = smul.u32 8, %s16
        %p191 = scmp.lt.s32.totalorder %s190, 15
        %s192 = scalar_select %p191, %s190, 15
        %s193 = smul.addr %s192, 8
        %s194 = scalar_lea.vmem %s0, %s193
        %s195 = smul.u32 8, %s16
        %s196 = smul.u32 8, %s16
        %p197 = scmp.lt.s32.totalorder %s196, 15
        %s198 = scalar_select %p197, %s196, 15
        %s199 = smul.addr %s198, 8
        %s200 = scalar_lea.vmem %s3, %s199
        %s201 = smul.u32 8, %s16
        %v202 = vld [vmem:[%s194] sm:$0xff]
        %v203 = vld [vmem:[%s194 + $0x8] sm:$0xff]
        %v204 = vld [vmem:[%s194 + $0x10] sm:$0xff]
        %v205 = vld [vmem:[%s194 + $0x18] sm:$0xff]
        %v206 = vld [vmem:[%s194 + $0x20] sm:$0xff]
        %v207 = vld [vmem:[%s194 + $0x28] sm:$0xff]
        %v208 = vld [vmem:[%s194 + $0x30] sm:$0xff]
        %v209 = vld [vmem:[%s194 + $0x38] sm:$0xff]
        %v210 = vld [vmem:[#allocation2] sm:$0xff]
        %v211 = vld [vmem:[#allocation2 + $0x8] sm:$0xff]
        %v212 = vld [vmem:[#allocation2 + $0x10] sm:$0xff]
        %v213 = vld [vmem:[#allocation2 + $0x18] sm:$0xff]
        %v214 = vld [vmem:[#allocation2 + $0x20] sm:$0xff]
        %v215 = vld [vmem:[#allocation2 + $0x28] sm:$0xff]
        %v216 = vld [vmem:[#allocation2 + $0x30] sm:$0xff]
        %v217 = vld [vmem:[#allocation2 + $0x38] sm:$0xff]
        %v218 = vld [vmem:[#allocation2 + $0x40] sm:$0xff]
        %v219 = vld [vmem:[#allocation2 + $0x48] sm:$0xff]
        %v220 = vld [vmem:[#allocation2 + $0x50] sm:$0xff]
        %v221 = vld [vmem:[#allocation2 + $0x58] sm:$0xff]
        %v222 = vld [vmem:[#allocation2 + $0x60] sm:$0xff]
        %v223 = vld [vmem:[#allocation2 + $0x68] sm:$0xff]
        %v224 = vld [vmem:[#allocation2 + $0x70] sm:$0xff]
        %v225 = vld [vmem:[#allocation2 + $0x78] sm:$0xff]
        %v226 = vld [vmem:[#allocation4] sm:$0x1]
        %v228 = vlaneseq
        %v229 = vshrl.u32 %v228, 7
        %v230 = vsub.s32 0, %v229
        %v231 = vrot.slane %v226, %v230
        %233 = vmatprep.subr.mxu0 0.0
        %234 = vmatpush1.msra.mxu0 %v210
        %235 = vmatprep.subr.mxu0 0.0
        %236 = vmatpush1.msra.mxu0 %v211
        %237 = vmatprep.subr.mxu0 0.0
        %238 = vmatpush1.msra.mxu0 %v212
        %239 = vmatprep.subr.mxu0 0.0
        %240 = vmatpush1.msra.mxu0 %v213
        %241 = vmatprep.subr.mxu0 0.0
        %242 = vmatpush1.msra.mxu0 %v214
        %243 = vmatprep.subr.mxu0 0.0
        %244 = vmatpush1.msra.mxu0 %v215
        %245 = vmatprep.subr.mxu0 0.0
        %246 = vmatpush1.msra.mxu0 %v216
        %247 = vmatprep.subr.mxu0 0.0
        %248 = vmatpush1.msra.mxu0 %v217
        %249 = vmatprep.subr.mxu0 0.0
        %250 = vmatpush1.msra.mxu0 %v218
        %251 = vmatprep.subr.mxu0 0.0
        %252 = vmatpush1.msra.mxu0 %v219
        %253 = vmatprep.subr.mxu0 0.0
        %254 = vmatpush1.msra.mxu0 %v220
        %255 = vmatprep.subr.mxu0 0.0
        %256 = vmatpush1.msra.mxu0 %v221
        %257 = vmatprep.subr.mxu0 0.0
        %258 = vmatpush1.msra.mxu0 %v222
        %259 = vmatprep.subr.mxu0 0.0
        %260 = vmatpush1.msra.mxu0 %v223
        %261 = vmatprep.subr.mxu0 0.0
        %262 = vmatpush1.msra.mxu0 %v224
        %263 = vmatprep.subr.mxu0 0.0
        %264 = vmatpush1.msra.mxu0 %v225
        %265 = vmatprep.subr.mxu0 0.0
        %266 = vmatpush1.msra.mxu0 0.0
        %267 = vmatprep.subr.mxu0 0.0
        %268 = vmatpush1.msra.mxu0 0.0
        %269 = vmatprep.subr.mxu0 0.0
        %270 = vmatpush1.msra.mxu0 0.0
        %271 = vmatprep.subr.mxu0 0.0
        %272 = vmatpush1.msra.mxu0 0.0
        %273 = vmatprep.subr.mxu0 0.0
        %274 = vmatpush1.msra.mxu0 0.0
        %275 = vmatprep.subr.mxu0 0.0
        %276 = vmatpush1.msra.mxu0 0.0
        %277 = vmatprep.subr.mxu0 0.0
        %278 = vmatpush1.msra.mxu0 0.0
        %279 = vmatprep.subr.mxu0 0.0
        %280 = vmatpush1.msra.mxu0 0.0
        %281 = vmatprep.subr.mxu0 0.0
        %282 = vmatpush1.msra.mxu0 0.0
        %283 = vmatprep.subr.mxu0 0.0
        %284 = vmatpush1.msra.mxu0 0.0
        %285 = vmatprep.subr.mxu0 0.0
        %286 = vmatpush1.msra.mxu0 0.0
        %287 = vmatprep.subr.mxu0 0.0
        %288 = vmatpush1.msra.mxu0 0.0
        %289 = vmatprep.subr.mxu0 0.0
        %290 = vmatpush1.msra.mxu0 0.0
        %291 = vmatprep.subr.mxu0 0.0
        %292 = vmatpush1.msra.mxu0 0.0
        %293 = vmatprep.subr.mxu0 0.0
        %294 = vmatpush1.msra.mxu0 0.0
        %295 = vmatprep.subr.mxu0 0.0
        %296 = vmatpush1.msra.mxu0 0.0
        %297 = vmatprep.mubr.f32.mxu0 0.0
        %298 = vmatmul.mubr.f32.gmra.mrb[0].mxu0 %v202
        %v299 = vpop.f32.mrb[0].mxu0
        %v300 = vadd.f32 %v231, %v299
        %v301 = vpop.f32.mrb[0].mxu0
        %302 = vmatprep.mubr.f32.mxu0 0.0
        %303 = vmatmul.mubr.f32.gmra.mrb[0].mxu0 %v203
        %v304 = vpop.f32.mrb[0].mxu0
        %v305 = vadd.f32 %v231, %v304
        %v306 = vpop.f32.mrb[0].mxu0
        %307 = vmatprep.mubr.f32.mxu0 0.0
        %308 = vmatmul.mubr.f32.gmra.mrb[0].mxu0 %v204
        %v309 = vpop.f32.mrb[0].mxu0
        %v310 = vadd.f32 %v231, %v309
        %v311 = vpop.f32.mrb[0].mxu0
        %312 = vmatprep.mubr.f32.mxu0 0.0
        %313 = vmatmul.mubr.f32.gmra.mrb[0].mxu0 %v205
        %v314 = vpop.f32.mrb[0].mxu0
        %v315 = vadd.f32 %v231, %v314
        %v316 = vpop.f32.mrb[0].mxu0
        %317 = vmatprep.mubr.f32.mxu0 0.0
        %318 = vmatmul.mubr.f32.gmra.mrb[0].mxu0 %v206
        %v319 = vpop.f32.mrb[0].mxu0
        %v320 = vadd.f32 %v231, %v319
        %v321 = vpop.f32.mrb[0].mxu0
        %322 = vmatprep.mubr.f32.mxu0 0.0
        %323 = vmatmul.mubr.f32.gmra.mrb[0].mxu0 %v207
        %v324 = vpop.f32.mrb[0].mxu0
        %v325 = vadd.f32 %v231, %v324
        %v326 = vpop.f32.mrb[0].mxu0
        %327 = vmatprep.mubr.f32.mxu0 0.0
        %328 = vmatmul.mubr.f32.gmra.mrb[0].mxu0 %v208
        %v329 = vpop.f32.mrb[0].mxu0
        %v330 = vadd.f32 %v231, %v329
        %v331 = vpop.f32.mrb[0].mxu0
        %332 = vmatprep.mubr.f32.mxu0 0.0
        %333 = vmatmul.mubr.f32.gmra.mrb[0].mxu0 %v209
        %v334 = vpop.f32.mrb[0].mxu0
        %v335 = vadd.f32 %v231, %v334
        %v336 = vpop.f32.mrb[0].mxu0
        %337 = vdwg.mxu0
        %v338 = vmax.f32 %v300, 0.0
        %v339 = vmax.f32 %v305, 0.0
        %v340 = vmax.f32 %v310, 0.0
        %v341 = vmax.f32 %v315, 0.0
        %v342 = vmax.f32 %v320, 0.0
        %v343 = vmax.f32 %v325, 0.0
        %v344 = vmax.f32 %v330, 0.0
        %v345 = vmax.f32 %v335, 0.0
        %346 = vst [vmem:[%s200] sm:$0xff] %v338
        %347 = vst [vmem:[%s200 + $0x8] sm:$0xff] %v339
        %348 = vst [vmem:[%s200 + $0x10] sm:$0xff] %v340
        %349 = vst [vmem:[%s200 + $0x18] sm:$0xff] %v341
        %350 = vst [vmem:[%s200 + $0x20] sm:$0xff] %v342
        %351 = vst [vmem:[%s200 + $0x28] sm:$0xff] %v343
        %352 = vst [vmem:[%s200 + $0x30] sm:$0xff] %v344
        %353 = vst [vmem:[%s200 + $0x38] sm:$0xff] %v345
        %s354 = smul.u32 8, %s16
        %p355 = scmp.lt.s32.totalorder %s354, 15
        %s356 = scalar_select %p355, %s354, 15
        %s357 = smul.addr %s356, 8
        %s358 = scalar_lea.vmem %s3, %s357
        // Predicated region
        $region41: #{encoder_forward.2} parent=31 // pred_check
          %p359 = pneg %p102
        $region42: #{encoder_forward.2} parent=31 // pred_check_branch
          %361 = sbr.rel (%p359) target = $region44
        $region43: #{encoder_forward.2} parent=31 // pred_region
          %s362 = smul.u32 8, %s16
        $region44: #{encoder_forward.2} parent=31 // pred_fallthru
          _
      $region32: #{encoder_forward.2} parent=5 // pred_fallthru
        _
      %p363 = scmp.le.s32.totalorder 2, %s11
      // Predicated region
      $region45: #{encoder_forward.2} parent=5 // pred_check
        %p364 = pneg %p363
      $region46: #{encoder_forward.2} parent=5 // pred_check_branch
        %366 = sbr.rel (%p364) target = $region48
      $region47: #{encoder_forward.2} parent=5 // pred_region
        %s367 = ssub.s32 %s11, 2
        // Predicated region
        $region49: #{encoder_forward.2} parent=47 // pred_check
          %p368 = pneg %p108
        $region50: #{encoder_forward.2} parent=47 // pred_check_branch
          %370 = sbr.rel (%p368) target = $region52
        $region51: #{encoder_forward.2} parent=47 // pred_region
          %s371 = smul.u32 8, %s17
          %p372 = scmp.lt.s32.totalorder %s371, 15
          %s373 = scalar_select %p372, %s371, 15
          %s374 = smul.addr %s373, 8
          %s375 = scalar_lea.vmem %s3, %s374
        $region52: #{encoder_forward.2} parent=47 // pred_fallthru
          _
      $region48: #{encoder_forward.2} parent=5 // pred_fallthru
        _
    $region6: #{encoder_forward.2} parent=1 // loop_footer
      %s15 = sadd.s32 1, %s11
    $region7: #{encoder_forward.2} parent=1 // loop_footer_branch
      %10 = sbr.rel target = $region3
    $region8: #{encoder_forward.2} parent=1 // loop_exit
      _
    %376 = vsyncpa [#allocation3], 1
    %s377 = scalar_lea.sflag [#allocation3], 1
    %378 = vsyncpa %s377, 1
    %379 = vsyncpa [#allocation5], 1

// kernel: encoder_forward.3
$region0: #{encoder_forward.3}
  #allocation0 [shape = 'u32[]', space=smem, size = 0x4, offset = 0x4, fixed_abs, tag = 'smem constant byte address 0x4 - core index']
  #allocation1 [shape = 'u32[144,128]{1,0:T(1,128)}', space=vmem, size = 0x12000, scoped, tag = 'internal scratch']
  #allocation2 [shape = 'f32[32,128]{1,0:T(8,128)}', space=vmem, size = 0x4000, scoped, tag = 'scratch operand']
  #allocation3 [shape = 'f32[2,512]{1,0:T(2,128)}', space=vmem, size = 0x1000, scoped, tag = 'scratch operand']
  %s0 = inlined_call_operand.vmem [shape: f32[32,1024], index: 0, kind: input, shape index: {}]
  %s1 = inlined_call_operand.hbm [shape: f32[1024,128], index: 1, kind: input, shape index: {}]
  %s2 = inlined_call_operand.hbm [shape: f32[1,128], index: 2, kind: input, shape index: {}]
  %s3 = inlined_call_operand.hbm [shape: f32[1,128], index: 3, kind: input, shape index: {}]
  %s4 = inlined_call_operand.hbm [shape: f32[1,128], index: 4, kind: input, shape index: {}]
  %s5 = inlined_call_operand.hbm [shape: f32[2048,1024], index: 5, kind: input, shape index: {}]
  %s6 = inlined_call_operand.hbm [shape: f32[1,1024], index: 6, kind: input, shape index: {}]
  %s7 = inlined_call_operand.hbm [shape: f32[1,1024], index: 7, kind: input, shape index: {}]
  %s8 = inlined_call_operand.hbm [shape: f32[1,1024], index: 8, kind: input, shape index: {}]
  %s9 = inlined_call_operand.hbm [shape: f32[2,1024], index: 9, kind: output, shape index: {}]
  %s10 = sld [smem:[#allocation0]]
  $region109: #{encoder_forward.3} parent=0
    _
  %s12 = ssub.s32 1, %s10
  %s13 = scalar_select 0, %s12, %s10
  $region1: #{encoder_forward.3} parent=0
    #allocation4 [shape = 'u8[524288]{0}', space=vmem, size = 0x80000, scoped, tag = 'input window, operand 1, single buffered']
    #allocation5 [shape = 's32[2]{0}', space=sflag, size = 0x8, scoped, tag = 'scoped memory for encoder_forward.3']
    #allocation6 [shape = 's32[2]{0}', space=sflag, size = 0x8, scoped, tag = 'scoped memory for encoder_forward.3']
    #allocation7 [shape = 'u8[512]{0}', space=vmem, size = 0x400, scoped, tag = 'input window, operand 2, single buffered']
    #allocation8 [shape = 's32[1]{0}', space=sflag, size = 0x4, scoped, tag = 'scoped memory for encoder_forward.3']
    #allocation9 [shape = 'u8[512]{0}', space=vmem, size = 0x400, scoped, tag = 'input window, operand 3, single buffered']
    #allocation10 [shape = 'u8[512]{0}', space=vmem, size = 0x400, scoped, tag = 'input window, operand 4, single buffered']
    #allocation11 [shape = 's32[1]{0}', space=sflag, size = 0x4, scoped, tag = 'scoped memory for encoder_forward.3']
    #allocation12 [shape = 'u8[8388608]{0}', space=vmem, size = 0x800000, scoped, tag = 'input window, operand 5']
    #allocation13 [shape = 'u8[4096]{0}', space=vmem, size = 0x1000, scoped, tag = 'input window, operand 6']
    #allocation14 [shape = 'u8[4096]{0}', space=vmem, size = 0x1000, scoped, tag = 'input window, operand 7']
    #allocation15 [shape = 'u8[4096]{0}', space=vmem, size = 0x1000, scoped, tag = 'input window, operand 8']
    #allocation16 [shape = 'u8[8192]{0}', space=vmem, size = 0x2000, scoped, tag = 'output window, operand 0']
    %14 = vsyncpa [#allocation5], 0
    %15 = vsyncpa [#allocation8], 0
    %16 = vsyncpa [#allocation11], 0
    %17 = vsyncpa [#allocation6], 0
    %s18 = scalar_lea.sflag [#allocation6], 1
    %19 = vsyncpa %s18, 0
    loop: start=0, step=1, limit=4
    $region2: #{encoder_forward.3} parent=1 // loop_pre_header
      _
    $region3: #{encoder_forward.3} parent=1 // loop_header
      %s21 = sphi 0, %s25
      %p22 = scmp.ge.s32.totalorder %s21, 4
      %s28 = sphi 0, %s40
      %s29 = sphi 0, %s36
      %s30 = sphi 0, %s28
      %s31 = sphi 0, %s29
      %s32 = sphi 0, %s30
      %s33 = sphi 0, %s31
      %s41 = sphi 0, %s41
      %s43 = sphi 0, %s41
      %s44 = sphi 0, %s43
      %s58 = sphi 0, %s44
      %s62 = sphi 0, %s62
      %s64 = sphi 0, %s62
      %s65 = sphi 0, %s64
      %s79 = sphi 0, %s65
      %s83 = sphi 0, %s83
      %s85 = sphi 0, %s83
      %s86 = sphi 0, %s85
      %s100 = sphi 0, %s86
      %s104 = sphi 0, %s104
      %s106 = sphi 0, %s104
      %s107 = sphi 0, %s106
      %s121 = sphi 0, %s107
      %s125 = sphi 0, %s125
      %s127 = sphi 0, %s125
      %s128 = sphi 0, %s127
      %s142 = sphi 0, %s128
      %s150 = sphi 0, %s152
      %s153 = sphi 0, %s150
      %s154 = sphi 0, %s153
      %s170 = sphi 0, %s154
      %s176 = sphi 0, %s178
      %s179 = sphi 0, %s176
      %s180 = sphi 0, %s179
      %s196 = sphi 0, %s180
      %s202 = sphi 0, %s204
      %s205 = sphi 0, %s202
      %s206 = sphi 0, %s205
      %s222 = sphi 0, %s206
      %s228 = sphi 0, %s230
      %s231 = sphi 0, %s228
      %s232 = sphi 0, %s231
      %s248 = sphi 0, %s232
      %s254 = sphi 0, %s256
      %s257 = sphi 0, %s254
      %s258 = sphi 0, %s257
      %s274 = sphi 0, %s258
    $region4: #{encoder_forward.3} parent=1 // loop_header_branch
      %24 = sbr.rel (%p22) target = $region8
    $region5: #{encoder_forward.3} parent=1 // loop_body
      %s26 = ssub.s32 %s21, 1
      %s27 = ssub.s32 %s21, 2
      %s34 = sadd.s32 1, %s29
      %p35 = scmp.ge.s32.totalorder %s34, 1
      %s36 = scalar_select %p35, 0, %s34
      %s37 = sadd.s32 1, %s28
      %s38 = scalar_select %p35, %s37, %s28
      %p39 = scmp.ge.s32.totalorder %s38, 2
      %s40 = scalar_select %p39, 0, %s38
      %s42 = sadd.s32 %s41, 1
      %p45 = scmp.eq.s32.totalorder %s21, 1
      %p46 = scmp.ne.s32.totalorder %s41, %s43
      %p47 = scmp.eq.s32.totalorder %s21, 0
      %p48 = por %p46, %p47
      %p49 = scmp.ne.s32.totalorder %s41, %s43
      %p50 = scmp.eq.s32.totalorder %s26, 1
      %p51 = por %p49, %p50
      %p52 = scmp.ne.s32.totalorder %s43, %s44
      %p53 = scmp.eq.s32.totalorder %s26, 0
      %p54 = por %p52, %p53
      %p55 = scmp.ne.s32.totalorder %s43, %s44
      %p56 = scmp.eq.s32.totalorder %s27, 1
      %p57 = por %p55, %p56
      %p59 = scmp.ne.s32.totalorder %s44, %s58
      %p60 = scmp.eq.s32.totalorder %s27, 0
      %p61 = por %p59, %p60
      %s63 = sadd.s32 %s62, 1
      %p66 = scmp.eq.s32.totalorder %s21, 1
      %p67 = scmp.ne.s32.totalorder %s62, %s64
      %p68 = scmp.eq.s32.totalorder %s21, 0
      %p69 = por %p67, %p68
      %p70 = scmp.ne.s32.totalorder %s62, %s64
      %p71 = scmp.eq.s32.totalorder %s26, 1
      %p72 = por %p70, %p71
      %p73 = scmp.ne.s32.totalorder %s64, %s65
      %p74 = scmp.eq.s32.totalorder %s26, 0
      %p75 = por %p73, %p74
      %p76 = scmp.ne.s32.totalorder %s64, %s65
      %p77 = scmp.eq.s32.totalorder %s27, 1
      %p78 = por %p76, %p77
      %p80 = scmp.ne.s32.totalorder %s65, %s79
      %p81 = scmp.eq.s32.totalorder %s27, 0
      %p82 = por %p80, %p81
      %s84 = sadd.s32 %s83, 1
      %p87 = scmp.eq.s32.totalorder %s21, 1
      %p88 = scmp.ne.s32.totalorder %s83, %s85
      %p89 = scmp.eq.s32.totalorder %s21, 0
      %p90 = por %p88, %p89
      %p91 = scmp.ne.s32.totalorder %s83, %s85
      %p92 = scmp.eq.s32.totalorder %s26, 1
      %p93 = por %p91, %p92
      %p94 = scmp.ne.s32.totalorder %s85, %s86
      %p95 = scmp.eq.s32.totalorder %s26, 0
      %p96 = por %p94, %p95
      %p97 = scmp.ne.s32.totalorder %s85, %s86
      %p98 = scmp.eq.s32.totalorder %s27, 1
      %p99 = por %p97, %p98
      %p101 = scmp.ne.s32.totalorder %s86, %s100
      %p102 = scmp.eq.s32.totalorder %s27, 0
      %p103 = por %p101, %p102
      %s105 = sadd.s32 %s104, 1
      %p108 = scmp.eq.s32.totalorder %s21, 1
      %p109 = scmp.ne.s32.totalorder %s104, %s106
      %p110 = scmp.eq.s32.totalorder %s21, 0
      %p111 = por %p109, %p110
      %p112 = scmp.ne.s32.totalorder %s104, %s106
      %p113 = scmp.eq.s32.totalorder %s26, 1
      %p114 = por %p112, %p113
      %p115 = scmp.ne.s32.totalorder %s106, %s107
      %p116 = scmp.eq.s32.totalorder %s26, 0
      %p117 = por %p115, %p116
      %p118 = scmp.ne.s32.totalorder %s106, %s107
      %p119 = scmp.eq.s32.totalorder %s27, 1
      %p120 = por %p118, %p119
      %p122 = scmp.ne.s32.totalorder %s107, %s121
      %p123 = scmp.eq.s32.totalorder %s27, 0
      %p124 = por %p122, %p123
      %s126 = sadd.s32 %s125, 1
      %p129 = scmp.eq.s32.totalorder %s21, 1
      %p130 = scmp.ne.s32.totalorder %s125, %s127
      %p131 = scmp.eq.s32.totalorder %s21, 0
      %p132 = por %p130, %p131
      %p133 = scmp.ne.s32.totalorder %s125, %s127
      %p134 = scmp.eq.s32.totalorder %s26, 1
      %p135 = por %p133, %p134
      %p136 = scmp.ne.s32.totalorder %s127, %s128
      %p137 = scmp.eq.s32.totalorder %s26, 0
      %p138 = por %p136, %p137
      %p139 = scmp.ne.s32.totalorder %s127, %s128
      %p140 = scmp.eq.s32.totalorder %s27, 1
      %p141 = por %p139, %p140
      %p143 = scmp.ne.s32.totalorder %s128, %s142
      %p144 = scmp.eq.s32.totalorder %s27, 0
      %p145 = por %p143, %p144
      %s146 = ssub.s32 %s29, %s36
      %s147 = ssub.s32 %s28, %s40
      %s148 = sor.u32 %s146, %s147
      %p149 = scmp.eq.s32.totalorder %s148, 0
      %s151 = sadd.s32 %s150, 1
      %s152 = scalar_select %p149, %s150, %s151
      %p155 = pneg %p149
      %p156 = scmp.eq.s32.totalorder %s21, 1
      %p157 = por %p155, %p156
      %p158 = scmp.ne.s32.totalorder %s150, %s153
      %p159 = scmp.eq.s32.totalorder %s21, 0
      %p160 = por %p158, %p159
      %p161 = scmp.ne.s32.totalorder %s150, %s153
      %p162 = scmp.eq.s32.totalorder %s26, 1
      %p163 = por %p161, %p162
      %p164 = scmp.ne.s32.totalorder %s153, %s154
      %p165 = scmp.eq.s32.totalorder %s26, 0
      %p166 = por %p164, %p165
      %p167 = scmp.ne.s32.totalorder %s153, %s154
      %p168 = scmp.eq.s32.totalorder %s27, 1
      %p169 = por %p167, %p168
      %p171 = scmp.ne.s32.totalorder %s154, %s170
      %p172 = scmp.eq.s32.totalorder %s27, 0
      %p173 = por %p171, %p172
      %s174 = ssub.s32 %s28, %s40
      %p175 = scmp.eq.s32.totalorder %s174, 0
      %s177 = sadd.s32 %s176, 1
      %s178 = scalar_select %p175, %s176, %s177
      %p181 = pneg %p175
      %p182 = scmp.eq.s32.totalorder %s21, 1
      %p183 = por %p181, %p182
      %p184 = scmp.ne.s32.totalorder %s176, %s179
      %p185 = scmp.eq.s32.totalorder %s21, 0
      %p186 = por %p184, %p185
      %p187 = scmp.ne.s32.totalorder %s176, %s179
      %p188 = scmp.eq.s32.totalorder %s26, 1
      %p189 = por %p187, %p188
      %p190 = scmp.ne.s32.totalorder %s179, %s180
      %p191 = scmp.eq.s32.totalorder %s26, 0
      %p192 = por %p190, %p191
      %p193 = scmp.ne.s32.totalorder %s179, %s180
      %p194 = scmp.eq.s32.totalorder %s27, 1
      %p195 = por %p193, %p194
      %p197 = scmp.ne.s32.totalorder %s180, %s196
      %p198 = scmp.eq.s32.totalorder %s27, 0
      %p199 = por %p197, %p198
      %s200 = ssub.s32 %s28, %s40
      %p201 = scmp.eq.s32.totalorder %s200, 0
      %s203 = sadd.s32 %s202, 1
      %s204 = scalar_select %p201, %s202, %s203
      %p207 = pneg %p201
      %p208 = scmp.eq.s32.totalorder %s21, 1
      %p209 = por %p207, %p208
      %p210 = scmp.ne.s32.totalorder %s202, %s205
      %p211 = scmp.eq.s32.totalorder %s21, 0
      %p212 = por %p210, %p211
      %p213 = scmp.ne.s32.totalorder %s202, %s205
      %p214 = scmp.eq.s32.totalorder %s26, 1
      %p215 = por %p213, %p214
      %p216 = scmp.ne.s32.totalorder %s205, %s206
      %p217 = scmp.eq.s32.totalorder %s26, 0
      %p218 = por %p216, %p217
      %p219 = scmp.ne.s32.totalorder %s205, %s206
      %p220 = scmp.eq.s32.totalorder %s27, 1
      %p221 = por %p219, %p220
      %p223 = scmp.ne.s32.totalorder %s206, %s222
      %p224 = scmp.eq.s32.totalorder %s27, 0
      %p225 = por %p223, %p224
      %s226 = ssub.s32 %s28, %s40
      %p227 = scmp.eq.s32.totalorder %s226, 0
      %s229 = sadd.s32 %s228, 1
      %s230 = scalar_select %p227, %s228, %s229
      %p233 = pneg %p227
      %p234 = scmp.eq.s32.totalorder %s21, 1
      %p235 = por %p233, %p234
      %p236 = scmp.ne.s32.totalorder %s228, %s231
      %p237 = scmp.eq.s32.totalorder %s21, 0
      %p238 = por %p236, %p237
      %p239 = scmp.ne.s32.totalorder %s228, %s231
      %p240 = scmp.eq.s32.totalorder %s26, 1
      %p241 = por %p239, %p240
      %p242 = scmp.ne.s32.totalorder %s231, %s232
      %p243 = scmp.eq.s32.totalorder %s26, 0
      %p244 = por %p242, %p243
      %p245 = scmp.ne.s32.totalorder %s231, %s232
      %p246 = scmp.eq.s32.totalorder %s27, 1
      %p247 = por %p245, %p246
      %p249 = scmp.ne.s32.totalorder %s232, %s248
      %p250 = scmp.eq.s32.totalorder %s27, 0
      %p251 = por %p249, %p250
      %s252 = ssub.s32 %s28, %s40
      %p253 = scmp.eq.s32.totalorder %s252, 0
      %s255 = sadd.s32 %s254, 1
      %s256 = scalar_select %p253, %s254, %s255
      %p259 = pneg %p253
      %p260 = scmp.eq.s32.totalorder %s21, 1
      %p261 = por %p259, %p260
      %p262 = scmp.ne.s32.totalorder %s254, %s257
      %p263 = scmp.eq.s32.totalorder %s21, 0
      %p264 = por %p262, %p263
      %p265 = scmp.ne.s32.totalorder %s254, %s257
      %p266 = scmp.eq.s32.totalorder %s26, 1
      %p267 = por %p265, %p266
      %p268 = scmp.ne.s32.totalorder %s257, %s258
      %p269 = scmp.eq.s32.totalorder %s26, 0
      %p270 = por %p268, %p269
      %p271 = scmp.ne.s32.totalorder %s257, %s258
      %p272 = scmp.eq.s32.totalorder %s27, 1
      %p273 = por %p271, %p272
      %p275 = scmp.ne.s32.totalorder %s258, %s274
      %p276 = scmp.eq.s32.totalorder %s27, 0
      %p277 = por %p275, %p276
      %p278 = scmp.le.s32.totalorder 1, %s21
      %p279 = scmp.lt.s32.totalorder %s21, 3
      %p280 = pnand %p278, %p279
      %p281 = pneg %p280
      // Predicated region
      $region9: #{encoder_forward.3} parent=5 // pred_check
        _
      $region10: #{encoder_forward.3} parent=5 // pred_check_branch
        %283 = sbr.rel (%p280) target = $region12
      $region11: #{encoder_forward.3} parent=5 // pred_region
        %s284 = ssub.s32 %s21, 1
        // Predicated region
        $region13: #{encoder_forward.3} parent=11 // pred_check
          %p285 = pneg %p54
        $region14: #{encoder_forward.3} parent=11 // pred_check_branch
          %287 = sbr.rel (%p285) target = $region16
        $region15: #{encoder_forward.3} parent=11 // pred_region
          _
        $region16: #{encoder_forward.3} parent=11 // pred_fallthru
          _
        // Predicated region
        $region17: #{encoder_forward.3} parent=11 // pred_check
          %p288 = pneg %p75
        $region18: #{encoder_forward.3} parent=11 // pred_check_branch
          %290 = sbr.rel (%p288) target = $region20
        $region19: #{encoder_forward.3} parent=11 // pred_region
          %s292 = ssub.s32 16384, 16384
          %293 = vsyncadd [#allocation5], %s292
          %s294 = sshll.u32 [#allocation4], 4
          %s295 = int_to_ptr.vmem [resolvable:$true] %s294
          %300 = dma.hbm_to_vmem [thread:$0]  %s1, 16384, %s295, [#allocation5], 128, 128, 8
        $region20: #{encoder_forward.3} parent=11 // pred_fallthru
          _
        // Predicated region
        $region21: #{encoder_forward.3} parent=11 // pred_check
          %p301 = pneg %p96
        $region22: #{encoder_forward.3} parent=11 // pred_check_branch
          %303 = sbr.rel (%p301) target = $region24
        $region23: #{encoder_forward.3} parent=11 // pred_region
          %s305 = ssub.s32 16, 16
          %306 = vsyncadd [#allocation8], %s305
          %s308 = sshll.u32 [#allocation7], 4
          %s309 = int_to_ptr.vmem [resolvable:$true] %s308
          %311 = dma.hbm_to_vmem [thread:$0]  %s2, 16, %s309, [#allocation8]
        $region24: #{encoder_forward.3} parent=11 // pred_fallthru
          _
        // Predicated region
        $region25: #{encoder_forward.3} parent=11 // pred_check
          %p312 = pneg %p117
        $region26: #{encoder_forward.3} parent=11 // pred_check_branch
          %314 = sbr.rel (%p312) target = $region28
        $region27: #{encoder_forward.3} parent=11 // pred_region
          %s316 = ssub.s32 16, 16
          %317 = vsyncadd [#allocation8], %s316
          %s319 = sshll.u32 [#allocation9], 4
          %s320 = int_to_ptr.vmem [resolvable:$true] %s319
          %322 = dma.hbm_to_vmem [thread:$0]  %s3, 16, %s320, [#allocation8]
        $region28: #{encoder_forward.3} parent=11 // pred_fallthru
          _
        // Predicated region
        $region29: #{encoder_forward.3} parent=11 // pred_check
          %p323 = pneg %p138
        $region30: #{encoder_forward.3} parent=11 // pred_check_branch
          %325 = sbr.rel (%p323) target = $region32
        $region31: #{encoder_forward.3} parent=11 // pred_region
          %s327 = ssub.s32 16, 16
          %328 = vsyncadd [#allocation11], %s327
          %s330 = sshll.u32 [#allocation10], 4
          %s331 = int_to_ptr.vmem [resolvable:$true] %s330
          %333 = dma.hbm_to_vmem [thread:$0]  %s4, 16, %s331, [#allocation11]
        $region32: #{encoder_forward.3} parent=11 // pred_fallthru
          _
      $region12: #{encoder_forward.3} parent=5 // pred_fallthru
        _
      %p334 = scmp.lt.s32.totalorder %s21, 2
      // Predicated region
      $region33: #{encoder_forward.3} parent=5 // pred_check
        %p335 = pneg %p334
      $region34: #{encoder_forward.3} parent=5 // pred_check_branch
        %337 = sbr.rel (%p335) target = $region36
      $region35: #{encoder_forward.3} parent=5 // pred_region
        // Predicated region
        $region37: #{encoder_forward.3} parent=35 // pred_check
          %p338 = pneg %p160
        $region38: #{encoder_forward.3} parent=35 // pred_check_branch
          %340 = sbr.rel (%p338) target = $region40
        $region39: #{encoder_forward.3} parent=35 // pred_region
          %s341 = sand.u32 %s21, 1
          %s342 = scalar_lea.sflag [#allocation5], %s341
          %s343 = sand.u32 %s150, 1
          %s344 = smul.addr %s343, 8192
          %s345 = scalar_lea.vmem [#allocation12], %s344
          %s346 = smul.u32 256, %s29
          %s347 = smul.u32 4, %s28
          %s349 = ssub.s32 131072, 131072
          %350 = vsyncadd %s342, %s349
          %s351 = smul.addr %s346, 8
          %s352 = sadd.s32 %s347, %s351
          %s353 = smul.addr %s352, 128
          %s354 = scalar_lea.hbm %s5, %s353
          %s355 = sshll.u32 %s345, 4
          %s356 = int_to_ptr.vmem [resolvable:$true] %s355
          %361 = dma.hbm_to_vmem [thread:$0]  %s354, 131072, %s356, %s342, 1024, 512, 32
        $region40: #{encoder_forward.3} parent=35 // pred_fallthru
          _
        // Predicated region
        $region41: #{encoder_forward.3} parent=35 // pred_check
          %p362 = pneg %p186
        $region42: #{encoder_forward.3} parent=35 // pred_check_branch
          %364 = sbr.rel (%p362) target = $region44
        $region43: #{encoder_forward.3} parent=35 // pred_region
          %s365 = sand.u32 %s21, 1
          %s366 = scalar_lea.sflag [#allocation5], %s365
          %s367 = sand.u32 %s176, 1
          %s368 = smul.addr %s367, 4
          %s369 = scalar_lea.vmem [#allocation13], %s368
          %s370 = smul.u32 4, %s28
          %s372 = ssub.s32 64, 64
          %373 = vsyncadd %s366, %s372
          %s374 = smul.addr %s370, 16
          %s375 = scalar_lea.hbm %s6, %s374
          %s377 = sshll.u32 %s369, 4
          %s378 = int_to_ptr.vmem [resolvable:$true] %s377
          %380 = dma.hbm_to_vmem [thread:$0]  %s375, 64, %s378, %s366
        $region44: #{encoder_forward.3} parent=35 // pred_fallthru
          _
        // Predicated region
        $region45: #{encoder_forward.3} parent=35 // pred_check
          %p381 = pneg %p212
        $region46: #{encoder_forward.3} parent=35 // pred_check_branch
          %383 = sbr.rel (%p381) target = $region48
        $region47: #{encoder_forward.3} parent=35 // pred_region
          %s384 = sand.u32 %s21, 1
          %s385 = scalar_lea.sflag [#allocation5], %s384
          %s386 = sand.u32 %s202, 1
          %s387 = smul.addr %s386, 4
          %s388 = scalar_lea.vmem [#allocation14], %s387
          %s389 = smul.u32 4, %s28
          %s391 = ssub.s32 64, 64
          %392 = vsyncadd %s385, %s391
          %s393 = smul.addr %s389, 16
          %s394 = scalar_lea.hbm %s7, %s393
          %s396 = sshll.u32 %s388, 4
          %s397 = int_to_ptr.vmem [resolvable:$true] %s396
          %399 = dma.hbm_to_vmem [thread:$0]  %s394, 64, %s397, %s385
        $region48: #{encoder_forward.3} parent=35 // pred_fallthru
          _
        // Predicated region
        $region49: #{encoder_forward.3} parent=35 // pred_check
          %p400 = pneg %p238
        $region50: #{encoder_forward.3} parent=35 // pred_check_branch
          %402 = sbr.rel (%p400) target = $region52
        $region51: #{encoder_forward.3} parent=35 // pred_region
          %s403 = sand.u32 %s21, 1
          %s404 = scalar_lea.sflag [#allocation5], %s403
          %s405 = sand.u32 %s228, 1
          %s406 = smul.addr %s405, 4
          %s407 = scalar_lea.vmem [#allocation15], %s406
          %s408 = smul.u32 4, %s28
          %s410 = ssub.s32 64, 64
          %411 = vsyncadd %s404, %s410
          %s412 = smul.addr %s408, 16
          %s413 = scalar_lea.hbm %s8, %s412
          %s415 = sshll.u32 %s407, 4
          %s416 = int_to_ptr.vmem [resolvable:$true] %s415
          %418 = dma.hbm_to_vmem [thread:$0]  %s413, 64, %s416, %s404
        $region52: #{encoder_forward.3} parent=35 // pred_fallthru
          _
      $region36: #{encoder_forward.3} parent=5 // pred_fallthru
        _
      %p419 = scmp.le.s32.totalorder 1, %s21
      %p420 = scmp.lt.s32.totalorder %s21, 3
      %p421 = pnand %p419, %p420
      %p422 = pneg %p421
      // Predicated region
      $region53: #{encoder_forward.3} parent=5 // pred_check
        _
      $region54: #{encoder_forward.3} parent=5 // pred_check_branch
        %424 = sbr.rel (%p421) target = $region56
      $region55: #{encoder_forward.3} parent=5 // pred_region
        %s425 = ssub.s32 %s21, 1
        // Predicated region
        $region57: #{encoder_forward.3} parent=55 // pred_check
          %p426 = pneg %p75
        $region58: #{encoder_forward.3} parent=55 // pred_check_branch
          %428 = sbr.rel (%p426) target = $region60
        $region59: #{encoder_forward.3} parent=55 // pred_region
          %429 = dma.done [#allocation5], 16384
        $region60: #{encoder_forward.3} parent=55 // pred_fallthru
          _
        // Predicated region
        $region61: #{encoder_forward.3} parent=55 // pred_check
          %p430 = pneg %p96
        $region62: #{encoder_forward.3} parent=55 // pred_check_branch
          %432 = sbr.rel (%p430) target = $region64
        $region63: #{encoder_forward.3} parent=55 // pred_region
          %433 = dma.done [#allocation8], 16
        $region64: #{encoder_forward.3} parent=55 // pred_fallthru
          _
        // Predicated region
        $region65: #{encoder_forward.3} parent=55 // pred_check
          %p434 = pneg %p117
        $region66: #{encoder_forward.3} parent=55 // pred_check_branch
          %436 = sbr.rel (%p434) target = $region68
        $region67: #{encoder_forward.3} parent=55 // pred_region
          %437 = dma.done [#allocation8], 16
        $region68: #{encoder_forward.3} parent=55 // pred_fallthru
          _
        // Predicated region
        $region69: #{encoder_forward.3} parent=55 // pred_check
          %p438 = pneg %p138
        $region70: #{encoder_forward.3} parent=55 // pred_check_branch
          %440 = sbr.rel (%p438) target = $region72
        $region71: #{encoder_forward.3} parent=55 // pred_region
          %441 = dma.done [#allocation11], 16
        $region72: #{encoder_forward.3} parent=55 // pred_fallthru
          _
        %s442 = sand.u32 %s26, 1
        %s443 = scalar_lea.sflag [#allocation5], %s442
        %s444 = sand.u32 %s153, 1
        %s445 = smul.addr %s444, 8192
        %s446 = scalar_lea.vmem [#allocation12], %s445
        // Predicated region
        $region73: #{encoder_forward.3} parent=55 // pred_check
          %p447 = pneg %p166
        $region74: #{encoder_forward.3} parent=55 // pred_check_branch
          %449 = sbr.rel (%p447) target = $region76
        $region75: #{encoder_forward.3} parent=55 // pred_region
          %450 = dma.done %s443, 131072
        $region76: #{encoder_forward.3} parent=55 // pred_fallthru
          _
        %s451 = sand.u32 %s26, 1
        %s452 = scalar_lea.sflag [#allocation5], %s451
        %s453 = sand.u32 %s179, 1
        %s454 = smul.addr %s453, 4
        %s455 = scalar_lea.vmem [#allocation13], %s454
        // Predicated region
        $region77: #{encoder_forward.3} parent=55 // pred_check
          %p456 = pneg %p192
        $region78: #{encoder_forward.3} parent=55 // pred_check_branch
          %458 = sbr.rel (%p456) target = $region80
        $region79: #{encoder_forward.3} parent=55 // pred_region
          %459 = dma.done %s452, 64
        $region80: #{encoder_forward.3} parent=55 // pred_fallthru
          _
        %s460 = sand.u32 %s26, 1
        %s461 = scalar_lea.sflag [#allocation5], %s460
        %s462 = sand.u32 %s205, 1
        %s463 = smul.addr %s462, 4
        %s464 = scalar_lea.vmem [#allocation14], %s463
        // Predicated region
        $region81: #{encoder_forward.3} parent=55 // pred_check
          %p465 = pneg %p218
        $region82: #{encoder_forward.3} parent=55 // pred_check_branch
          %467 = sbr.rel (%p465) target = $region84
        $region83: #{encoder_forward.3} parent=55 // pred_region
          %468 = dma.done %s461, 64
        $region84: #{encoder_forward.3} parent=55 // pred_fallthru
          _
        %s469 = sand.u32 %s26, 1
        %s470 = scalar_lea.sflag [#allocation5], %s469
        %s471 = sand.u32 %s231, 1
        %s472 = smul.addr %s471, 4
        %s473 = scalar_lea.vmem [#allocation15], %s472
        // Predicated region
        $region85: #{encoder_forward.3} parent=55 // pred_check
          %p474 = pneg %p244
        $region86: #{encoder_forward.3} parent=55 // pred_check_branch
          %476 = sbr.rel (%p474) target = $region88
        $region87: #{encoder_forward.3} parent=55 // pred_region
          %477 = dma.done %s470, 64
        $region88: #{encoder_forward.3} parent=55 // pred_fallthru
          _
        %p478 = pneg %p54
        %p479 = pneg %p51
        %p480 = pneg %p75
        %p481 = pneg %p72
        %p482 = pneg %p96
        %p483 = pneg %p93
        %p484 = pneg %p117
        %p485 = pneg %p114
        %p486 = pneg %p138
        %p487 = pneg %p135
        %s488 = sand.u32 %s26, 1
        %s489 = scalar_lea.sflag [#allocation5], %s488
        %s490 = sand.u32 %s153, 1
        %s491 = smul.addr %s490, 8192
        %s492 = scalar_lea.vmem [#allocation12], %s491
        %p493 = pneg %p166
        %p494 = pneg %p163
        %s495 = sand.u32 %s26, 1
        %s496 = scalar_lea.sflag [#allocation5], %s495
        %s497 = sand.u32 %s179, 1
        %s498 = smul.addr %s497, 4
        %s499 = scalar_lea.vmem [#allocation13], %s498
        %p500 = pneg %p192
        %p501 = pneg %p189
        %s502 = sand.u32 %s26, 1
        %s503 = scalar_lea.sflag [#allocation5], %s502
        %s504 = sand.u32 %s205, 1
        %s505 = smul.addr %s504, 4
        %s506 = scalar_lea.vmem [#allocation14], %s505
        %p507 = pneg %p218
        %p508 = pneg %p215
        %s509 = sand.u32 %s26, 1
        %s510 = scalar_lea.sflag [#allocation5], %s509
        %s511 = sand.u32 %s231, 1
        %s512 = smul.addr %s511, 4
        %s513 = scalar_lea.vmem [#allocation15], %s512
        %p514 = pneg %p244
        %p515 = pneg %p241
        %p516 = pneg %p270
        %p517 = pneg %p267
        %s518 = sand.u32 %s257, 1
        %s519 = scalar_lea.sflag [#allocation6], %s518
        %s520 = sand.u32 %s257, 1
        %s521 = smul.addr %s520, 8
        %s522 = scalar_lea.vmem [#allocation16], %s521
        %s523 = smul.u32 256, %s31
        %s524 = smul.u32 4, %s30
        %s525 = smul.u32 4, %s30
        %s526 = smul.u32 4, %s30
        %s527 = smul.u32 4, %s30
        %s528 = smul.u32 4, %s30
        %p529 = scmp.eq.s32.totalorder %s31, 0
        // Predicated region
        $region89: #{encoder_forward.3} parent=55 // pred_check
          %p530 = pneg %p529
        $region90: #{encoder_forward.3} parent=55 // pred_check_branch
          %532 = sbr.rel (%p530) target = $region92
        $region91: #{encoder_forward.3} parent=55 // pred_region
          %v533 = vld [vmem:[%s0] sm:$0xff]
          %v534 = vld [vmem:[%s0 + $0x8] sm:$0xff]
          %v535 = vld [vmem:[%s0 + $0x10] sm:$0xff]
          %v536 = vld [vmem:[%s0 + $0x18] sm:$0xff]
          %v537 = vld [vmem:[%s0 + $0x20] sm:$0xff]
          %v538 = vld [vmem:[%s0 + $0x28] sm:$0xff]
          %v539 = vld [vmem:[%s0 + $0x30] sm:$0xff]
          %v540 = vld [vmem:[%s0 + $0x38] sm:$0xff]
          %v541 = vld [vmem:[%s0 + $0x40] sm:$0xff]
          %v542 = vld [vmem:[%s0 + $0x48] sm:$0xff]
          %v543 = vld [vmem:[%s0 + $0x50] sm:$0xff]
          %v544 = vld [vmem:[%s0 + $0x58] sm:$0xff]
          %v545 = vld [vmem:[%s0 + $0x60] sm:$0xff]
          %v546 = vld [vmem:[%s0 + $0x68] sm:$0xff]
          %v547 = vld [vmem:[%s0 + $0x70] sm:$0xff]
          %v548 = vld [vmem:[%s0 + $0x78] sm:$0xff]
          %v549 = vld [vmem:[%s0 + $0x80] sm:$0xff]
          %v550 = vld [vmem:[%s0 + $0x88] sm:$0xff]
          %v551 = vld [vmem:[%s0 + $0x90] sm:$0xff]
          %v552 = vld [vmem:[%s0 + $0x98] sm:$0xff]
          %v553 = vld [vmem:[%s0 + $0xa0] sm:$0xff]
          %v554 = vld [vmem:[%s0 + $0xa8] sm:$0xff]
          %v555 = vld [vmem:[%s0 + $0xb0] sm:$0xff]
          %v556 = vld [vmem:[%s0 + $0xb8] sm:$0xff]
          %v557 = vld [vmem:[%s0 + $0xc0] sm:$0xff]
          %v558 = vld [vmem:[%s0 + $0xc8] sm:$0xff]
          %v559 = vld [vmem:[%s0 + $0xd0] sm:$0xff]
          %v560 = vld [vmem:[%s0 + $0xd8] sm:$0xff]
          %v561 = vld [vmem:[%s0 + $0xe0] sm:$0xff]
          %v562 = vld [vmem:[%s0 + $0xe8] sm:$0xff]
          %v563 = vld [vmem:[%s0 + $0xf0] sm:$0xff]
          %v564 = vld [vmem:[%s0 + $0xf8] sm:$0xff]
          %v565 = vld [vmem:[#allocation4] sm:$0xff]
          %v566 = vld [vmem:[#allocation4 + $0x8] sm:$0xff]
          %v567 = vld [vmem:[#allocation4 + $0x10] sm:$0xff]
          %v568 = vld [vmem:[#allocation4 + $0x18] sm:$0xff]
          %v569 = vld [vmem:[#allocation4 + $0x20] sm:$0xff]
          %v570 = vld [vmem:[#allocation4 + $0x28] sm:$0xff]
          %v571 = vld [vmem:[#allocation4 + $0x30] sm:$0xff]
          %v572 = vld [vmem:[#allocation4 + $0x38] sm:$0xff]
          %v573 = vld [vmem:[#allocation4 + $0x40] sm:$0xff]
          %v574 = vld [vmem:[#allocation4 + $0x48] sm:$0xff]
          %v575 = vld [vmem:[#allocation4 + $0x50] sm:$0xff]
          %v576 = vld [vmem:[#allocation4 + $0x58] sm:$0xff]
          %v577 = vld [vmem:[#allocation4 + $0x60] sm:$0xff]
          %v578 = vld [vmem:[#allocation4 + $0x68] sm:$0xff]
          %v579 = vld [vmem:[#allocation4 + $0x70] sm:$0xff]
          %v580 = vld [vmem:[#allocation4 + $0x78] sm:$0xff]
          %v581 = vld [vmem:[#allocation4 + $0x80] sm:$0xff]
          %v582 = vld [vmem:[#allocation4 + $0x88] sm:$0xff]
          %v583 = vld [vmem:[#allocation4 + $0x90] sm:$0xff]
          %v584 = vld [vmem:[#allocation4 + $0x98] sm:$0xff]
          %v585 = vld [vmem:[#allocation4 + $0xa0] sm:$0xff]
          %v586 = vld [vmem:[#allocation4 + $0xa8] sm:$0xff]
          %v587 = vld [vmem:[#allocation4 + $0xb0] sm:$0xff]
          %v588 = vld [vmem:[#allocation4 + $0xb8] sm:$0xff]
          %v589 = vld [vmem:[#allocation4 + $0xc0] sm:$0xff]
          %v590 = vld [vmem:[#allocation4 + $0xc8] sm:$0xff]
          %v591 = vld [vmem:[#allocation4 + $0xd0] sm:$0xff]
          %v592 = vld [vmem:[#allocation4 + $0xd8] sm:$0xff]
          %v593 = vld [vmem:[#allocation4 + $0xe0] sm:$0xff]
          %v594 = vld [vmem:[#allocation4 + $0xe8] sm:$0xff]
          %v595 = vld [vmem:[#allocation4 + $0xf0] sm:$0xff]
          %v596 = vld [vmem:[#allocation4 + $0xf8] sm:$0xff]
          %v597 = vld [vmem:[#allocation4 + $0x100] sm:$0xff]
          %v598 = vld [vmem:[#allocation4 + $0x108] sm:$0xff]
          %v599 = vld [vmem:[#allocation4 + $0x110] sm:$0xff]
          %v600 = vld [vmem:[#allocation4 + $0x118] sm:$0xff]
          %v601 = vld [vmem:[#allocation4 + $0x120] sm:$0xff]
          %v602 = vld [vmem:[#allocation4 + $0x128] sm:$0xff]
          %v603 = vld [vmem:[#allocation4 + $0x130] sm:$0xff]
          %v604 = vld [vmem:[#allocation4 + $0x138] sm:$0xff]
          %v605 = vld [vmem:[#allocation4 + $0x140] sm:$0xff]
          %v606 = vld [vmem:[#allocation4 + $0x148] sm:$0xff]
          %v607 = vld [vmem:[#allocation4 + $0x150] sm:$0xff]
          %v608 = vld [vmem:[#allocation4 + $0x158] sm:$0xff]
          %v609 = vld [vmem:[#allocation4 + $0x160] sm:$0xff]
          %v610 = vld [vmem:[#allocation4 + $0x168] sm:$0xff]
          %v611 = vld [vmem:[#allocation4 + $0x170] sm:$0xff]
          %v612 = vld [vmem:[#allocation4 + $0x178] sm:$0xff]
          %v613 = vld [vmem:[#allocation4 + $0x180] sm:$0xff]
          %v614 = vld [vmem:[#allocation4 + $0x188] sm:$0xff]
          %v615 = vld [vmem:[#allocation4 + $0x190] sm:$0xff]
          %v616 = vld [vmem:[#allocation4 + $0x198] sm:$0xff]
          %v617 = vld [vmem:[#allocation4 + $0x1a0] sm:$0xff]
          %v618 = vld [vmem:[#allocation4 + $0x1a8] sm:$0xff]
          %v619 = vld [vmem:[#allocation4 + $0x1b0] sm:$0xff]
          %v620 = vld [vmem:[#allocation4 + $0x1b8] sm:$0xff]
          %v621 = vld [vmem:[#allocation4 + $0x1c0] sm:$0xff]
          %v622 = vld [vmem:[#allocation4 + $0x1c8] sm:$0xff]
          %v623 = vld [vmem:[#allocation4 + $0x1d0] sm:$0xff]
          %v624 = vld [vmem:[#allocation4 + $0x1d8] sm:$0xff]
          %v625 = vld [vmem:[#allocation4 + $0x1e0] sm:$0xff]
          %v626 = vld [vmem:[#allocation4 + $0x1e8] sm:$0xff]
          %v627 = vld [vmem:[#allocation4 + $0x1f0] sm:$0xff]
          %v628 = vld [vmem:[#allocation4 + $0x1f8] sm:$0xff]
          %v629 = vld [vmem:[#allocation4 + $0x200] sm:$0xff]
          %v630 = vld [vmem:[#allocation4 + $0x208] sm:$0xff]
          %v631 = vld [vmem:[#allocation4 + $0x210] sm:$0xff]
          %v632 = vld [vmem:[#allocation4 + $0x218] sm:$0xff]
          %v633 = vld [vmem:[#allocation4 + $0x220] sm:$0xff]
          %v634 = vld [vmem:[#allocation4 + $0x228] sm:$0xff]
          %v635 = vld [vmem:[#allocation4 + $0x230] sm:$0xff]
          %v636 = vld [vmem:[#allocation4 + $0x238] sm:$0xff]
          %v637 = vld [vmem:[#allocation4 + $0x240] sm:$0xff]
          %v638 = vld [vmem:[#allocation4 + $0x248] sm:$0xff]
          %v639 = vld [vmem:[#allocation4 + $0x250] sm:$0xff]
          %v640 = vld [vmem:[#allocation4 + $0x258] sm:$0xff]
          %v641 = vld [vmem:[#allocation4 + $0x260] sm:$0xff]
          %v642 = vld [vmem:[#allocation4 + $0x268] sm:$0xff]
          %v643 = vld [vmem:[#allocation4 + $0x270] sm:$0xff]
          %v644 = vld [vmem:[#allocation4 + $0x278] sm:$0xff]
          %v645 = vld [vmem:[#allocation4 + $0x280] sm:$0xff]
          %v646 = vld [vmem:[#allocation4 + $0x288] sm:$0xff]
          %v647 = vld [vmem:[#allocation4 + $0x290] sm:$0xff]
          %v648 = vld [vmem:[#allocation4 + $0x298] sm:$0xff]
          %v649 = vld [vmem:[#allocation4 + $0x2a0] sm:$0xff]
          %v650 = vld [vmem:[#allocation4 + $0x2a8] sm:$0xff]
          %v651 = vld [vmem:[#allocation4 + $0x2b0] sm:$0xff]
          %v652 = vld [vmem:[#allocation4 + $0x2b8] sm:$0xff]
          %v653 = vld [vmem:[#allocation4 + $0x2c0] sm:$0xff]
          %v654 = vld [vmem:[#allocation4 + $0x2c8] sm:$0xff]
          %v655 = vld [vmem:[#allocation4 + $0x2d0] sm:$0xff]
          %v656 = vld [vmem:[#allocation4 + $0x2d8] sm:$0xff]
          %v657 = vld [vmem:[#allocation4 + $0x2e0] sm:$0xff]
          %v658 = vld [vmem:[#allocation4 + $0x2e8] sm:$0xff]
          %v659 = vld [vmem:[#allocation4 + $0x2f0] sm:$0xff]
          %v660 = vld [vmem:[#allocation4 + $0x2f8] sm:$0xff]
          %v661 = vld [vmem:[#allocation4 + $0x300] sm:$0xff]
          %v662 = vld [vmem:[#allocation4 + $0x308] sm:$0xff]
          %v663 = vld [vmem:[#allocation4 + $0x310] sm:$0xff]
          %v664 = vld [vmem:[#allocation4 + $0x318] sm:$0xff]
          %v665 = vld [vmem:[#allocation4 + $0x320] sm:$0xff]
          %v666 = vld [vmem:[#allocation4 + $0x328] sm:$0xff]
          %v667 = vld [vmem:[#allocation4 + $0x330] sm:$0xff]
          %v668 = vld [vmem:[#allocation4 + $0x338] sm:$0xff]
          %v669 = vld [vmem:[#allocation4 + $0x340] sm:$0xff]
          %v670 = vld [vmem:[#allocation4 + $0x348] sm:$0xff]
          %v671 = vld [vmem:[#allocation4 + $0x350] sm:$0xff]
          %v672 = vld [vmem:[#allocation4 + $0x358] sm:$0xff]
          %v673 = vld [vmem:[#allocation4 + $0x360] sm:$0xff]
          %v674 = vld [vmem:[#allocation4 + $0x368] sm:$0xff]
          %v675 = vld [vmem:[#allocation4 + $0x370] sm:$0xff]
          %v676 = vld [vmem:[#allocation4 + $0x378] sm:$0xff]
          %v677 = vld [vmem:[#allocation4 + $0x380] sm:$0xff]
          %v678 = vld [vmem:[#allocation4 + $0x388] sm:$0xff]
          %v679 = vld [vmem:[#allocation4 + $0x390] sm:$0xff]
          %v680 = vld [vmem:[#allocation4 + $0x398] sm:$0xff]
          %v681 = vld [vmem:[#allocation4 + $0x3a0] sm:$0xff]
          %v682 = vld [vmem:[#allocation4 + $0x3a8] sm:$0xff]
          %v683 = vld [vmem:[#allocation4 + $0x3b0] sm:$0xff]
          %v684 = vld [vmem:[#allocation4 + $0x3b8] sm:$0xff]
          %v685 = vld [vmem:[#allocation4 + $0x3c0] sm:$0xff]
          %v686 = vld [vmem:[#allocation4 + $0x3c8] sm:$0xff]
          %v687 = vld [vmem:[#allocation4 + $0x3d0] sm:$0xff]
          %v688 = vld [vmem:[#allocation4 + $0x3d8] sm:$0xff]
          %v689 = vld [vmem:[#allocation4 + $0x3e0] sm:$0xff]
          %v690 = vld [vmem:[#allocation4 + $0x3e8] sm:$0xff]
          %v691 = vld [vmem:[#allocation4 + $0x3f0] sm:$0xff]
          %v692 = vld [vmem:[#allocation4 + $0x3f8] sm:$0xff]
          %v693 = vld [vmem:[#allocation7] sm:$0x1]
          %v695 = vlaneseq
          %v696 = vshrl.u32 %v695, 7
          %v697 = vsub.s32 0, %v696
          %v698 = vrot.slane %v693, %v697
          %700 = vmatprep.subr.mxu0 0.0
          %701 = vmatpush1.msra.mxu0 %v565
          %702 = vmatprep.subr.mxu0 0.0
          %703 = vmatpush1.msra.mxu0 %v566
          %704 = vmatprep.subr.mxu0 0.0
          %705 = vmatpush1.msra.mxu0 %v567
          %706 = vmatprep.subr.mxu0 0.0
          %707 = vmatpush1.msra.mxu0 %v568
          %708 = vmatprep.subr.mxu0 0.0
          %709 = vmatpush1.msra.mxu0 %v569
          %710 = vmatprep.subr.mxu0 0.0
          %711 = vmatpush1.msra.mxu0 %v570
          %712 = vmatprep.subr.mxu0 0.0
          %713 = vmatpush1.msra.mxu0 %v571
          %714 = vmatprep.subr.mxu0 0.0
          %715 = vmatpush1.msra.mxu0 %v572
          %716 = vmatprep.subr.mxu0 0.0
          %717 = vmatpush1.msra.mxu0 %v573
          %718 = vmatprep.subr.mxu0 0.0
          %719 = vmatpush1.msra.mxu0 %v574
          %720 = vmatprep.subr.mxu0 0.0
          %721 = vmatpush1.msra.mxu0 %v575
          %722 = vmatprep.subr.mxu0 0.0
          %723 = vmatpush1.msra.mxu0 %v576
          %724 = vmatprep.subr.mxu0 0.0
          %725 = vmatpush1.msra.mxu0 %v577
          %726 = vmatprep.subr.mxu0 0.0
          %727 = vmatpush1.msra.mxu0 %v578
          %728 = vmatprep.subr.mxu0 0.0
          %729 = vmatpush1.msra.mxu0 %v579
          %730 = vmatprep.subr.mxu0 0.0
          %731 = vmatpush1.msra.mxu0 %v580
          %732 = vmatprep.subr.mxu0 0.0
          %733 = vmatpush1.msra.mxu0 %v581
          %734 = vmatprep.subr.mxu0 0.0
          %735 = vmatpush1.msra.mxu0 %v582
          %736 = vmatprep.subr.mxu0 0.0
          %737 = vmatpush1.msra.mxu0 %v583
          %738 = vmatprep.subr.mxu0 0.0
          %739 = vmatpush1.msra.mxu0 %v584
          %740 = vmatprep.subr.mxu0 0.0
          %741 = vmatpush1.msra.mxu0 %v585
          %742 = vmatprep.subr.mxu0 0.0
          %743 = vmatpush1.msra.mxu0 %v586
          %744 = vmatprep.subr.mxu0 0.0
          %745 = vmatpush1.msra.mxu0 %v587
          %746 = vmatprep.subr.mxu0 0.0
          %747 = vmatpush1.msra.mxu0 %v588
          %748 = vmatprep.subr.mxu0 0.0
          %749 = vmatpush1.msra.mxu0 %v589
          %750 = vmatprep.subr.mxu0 0.0
          %751 = vmatpush1.msra.mxu0 %v590
          %752 = vmatprep.subr.mxu0 0.0
          %753 = vmatpush1.msra.mxu0 %v591
          %754 = vmatprep.subr.mxu0 0.0
          %755 = vmatpush1.msra.mxu0 %v592
          %756 = vmatprep.subr.mxu0 0.0
          %757 = vmatpush1.msra.mxu0 %v593
          %758 = vmatprep.subr.mxu0 0.0
          %759 = vmatpush1.msra.mxu0 %v594
          %760 = vmatprep.subr.mxu0 0.0
          %761 = vmatpush1.msra.mxu0 %v595
          %762 = vmatprep.subr.mxu0 0.0
          %763 = vmatpush1.msra.mxu0 %v596
          %764 = vmatprep.mubr.f32.mxu0 %v534
          %765 = vmatmul.mubr.f32.gmra.mrb[0].mxu0 %v533
          %v766 = vpop.f32.mrb[0].mxu0
          %v767 = vadd.f32 %v698, %v766
          %v768 = vpop.f32.mrb[0].mxu0
          %769 = vmatprep.mubr.f32.mxu0 %v542
          %770 = vmatmul.mubr.f32.gmra.mrb[0].mxu0 %v541
          %v771 = vpop.f32.mrb[0].mxu0
          %v772 = vadd.f32 %v698, %v771
          %v773 = vpop.f32.mrb[0].mxu0
          %774 = vmatprep.mubr.f32.mxu0 %v550
          %775 = vmatmul.mubr.f32.gmra.mrb[0].mxu0 %v549
          %v776 = vpop.f32.mrb[0].mxu0
          %v777 = vadd.f32 %v698, %v776
          %v778 = vpop.f32.mrb[0].mxu0
          %779 = vmatprep.mubr.f32.mxu0 %v558
          %780 = vmatmul.mubr.f32.gmra.mrb[0].mxu0 %v557
          %v781 = vpop.f32.mrb[0].mxu0
          %v782 = vadd.f32 %v698, %v781
          %v783 = vpop.f32.mrb[0].mxu0
          %784 = vdwg.mxu0
          %785 = vmatprep.subr.mxu0 0.0
          %786 = vmatpush1.msra.mxu0 %v597
          %787 = vmatprep.subr.mxu0 0.0
          %788 = vmatpush1.msra.mxu0 %v598
          %789 = vmatprep.subr.mxu0 0.0
          %790 = vmatpush1.msra.mxu0 %v599
          %791 = vmatprep.subr.mxu0 0.0
          %792 = vmatpush1.msra.mxu0 %v600
          %793 = vmatprep.subr.mxu0 0.0
          %794 = vmatpush1.msra.mxu0 %v601
          %795 = vmatprep.subr.mxu0 0.0
          %796 = vmatpush1.msra.mxu0 %v602
          %797 = vmatprep.subr.mxu0 0.0
          %798 = vmatpush1.msra.mxu0 %v603
          %799 = vmatprep.subr.mxu0 0.0
          %800 = vmatpush1.msra.mxu0 %v604
          %801 = vmatprep.subr.mxu0 0.0
          %802 = vmatpush1.msra.mxu0 %v605
          %803 = vmatprep.subr.mxu0 0.0
          %804 = vmatpush1.msra.mxu0 %v606
          %805 = vmatprep.subr.mxu0 0.0
          %806 = vmatpush1.msra.mxu0 %v607
          %807 = vmatprep.subr.mxu0 0.0
          %808 = vmatpush1.msra.mxu0 %v608
          %809 = vmatprep.subr.mxu0 0.0
          %810 = vmatpush1.msra.mxu0 %v609
          %811 = vmatprep.subr.mxu0 0.0
          %812 = vmatpush1.msra.mxu0 %v610
          %813 = vmatprep.subr.mxu0 0.0
          %814 = vmatpush1.msra.mxu0 %v611
          %815 = vmatprep.subr.mxu0 0.0
          %816 = vmatpush1.msra.mxu0 %v612
          %817 = vmatprep.subr.mxu0 0.0
          %818 = vmatpush1.msra.mxu0 %v613
          %819 = vmatprep.subr.mxu0 0.0
          %820 = vmatpush1.msra.mxu0 %v614
          %821 = vmatprep.subr.mxu0 0.0
          %822 = vmatpush1.msra.mxu0 %v615
          %823 = vmatprep.subr.mxu0 0.0
          %824 = vmatpush1.msra.mxu0 %v616
          %825 = vmatprep.subr.mxu0 0.0
          %826 = vmatpush1.msra.mxu0 %v617
          %827 = vmatprep.subr.mxu0 0.0
          %828 = vmatpush1.msra.mxu0 %v618
          %829 = vmatprep.subr.mxu0 0.0
          %830 = vmatpush1.msra.mxu0 %v619
          %831 = vmatprep.subr.mxu0 0.0
          %832 = vmatpush1.msra.mxu0 %v620
          %833 = vmatprep.subr.mxu0 0.0
          %834 = vmatpush1.msra.mxu0 %v621
          %835 = vmatprep.subr.mxu0 0.0
          %836 = vmatpush1.msra.mxu0 %v622
          %837 = vmatprep.subr.mxu0 0.0
          %838 = vmatpush1.msra.mxu0 %v623
          %839 = vmatprep.subr.mxu0 0.0
          %840 = vmatpush1.msra.mxu0 %v624
          %841 = vmatprep.subr.mxu0 0.0
          %842 = vmatpush1.msra.mxu0 %v625
          %843 = vmatprep.subr.mxu0 0.0
          %844 = vmatpush1.msra.mxu0 %v626
          %845 = vmatprep.subr.mxu0 0.0
          %846 = vmatpush1.msra.mxu0 %v627
          %847 = vmatprep.subr.mxu0 0.0
          %848 = vmatpush1.msra.mxu0 %v628
          %849 = vmatprep.mubr.f32.mxu0 %v536
          %850 = vmatmul.mubr.f32.gmra.mrb[0].mxu0 %v535
          %v851 = vpop.f32.mrb[0].mxu0
          %v852 = vadd.f32 %v767, %v851
          %v853 = vpop.f32.mrb[0].mxu0
          %854 = vmatprep.mubr.f32.mxu0 %v544
          %855 = vmatmul.mubr.f32.gmra.mrb[0].mxu0 %v543
          %v856 = vpop.f32.mrb[0].mxu0
          %v857 = vadd.f32 %v772, %v856
          %v858 = vpop.f32.mrb[0].mxu0
          %859 = vmatprep.mubr.f32.mxu0 %v552
          %860 = vmatmul.mubr.f32.gmra.mrb[0].mxu0 %v551
          %v861 = vpop.f32.mrb[0].mxu0
          %v862 = vadd.f32 %v777, %v861
          %v863 = vpop.f32.mrb[0].mxu0
          %864 = vmatprep.mubr.f32.mxu0 %v560
          %865 = vmatmul.mubr.f32.gmra.mrb[0].mxu0 %v559
          %v866 = vpop.f32.mrb[0].mxu0
          %v867 = vadd.f32 %v782, %v866
          %v868 = vpop.f32.mrb[0].mxu0
          %869 = vdwg.mxu0
          %870 = vmatprep.subr.mxu0 0.0
          %871 = vmatpush1.msra.mxu0 %v629
          %872 = vmatprep.subr.mxu0 0.0
          %873 = vmatpush1.msra.mxu0 %v630
          %874 = vmatprep.subr.mxu0 0.0
          %875 = vmatpush1.msra.mxu0 %v631
          %876 = vmatprep.subr.mxu0 0.0
          %877 = vmatpush1.msra.mxu0 %v632
          %878 = vmatprep.subr.mxu0 0.0
          %879 = vmatpush1.msra.mxu0 %v633
          %880 = vmatprep.subr.mxu0 0.0
          %881 = vmatpush1.msra.mxu0 %v634
          %882 = vmatprep.subr.mxu0 0.0
          %883 = vmatpush1.msra.mxu0 %v635
          %884 = vmatprep.subr.mxu0 0.0
          %885 = vmatpush1.msra.mxu0 %v636
          %886 = vmatprep.subr.mxu0 0.0
          %887 = vmatpush1.msra.mxu0 %v637
          %888 = vmatprep.subr.mxu0 0.0
          %889 = vmatpush1.msra.mxu0 %v638
          %890 = vmatprep.subr.mxu0 0.0
          %891 = vmatpush1.msra.mxu0 %v639
          %892 = vmatprep.subr.mxu0 0.0
          %893 = vmatpush1.msra.mxu0 %v640
          %894 = vmatprep.subr.mxu0 0.0
          %895 = vmatpush1.msra.mxu0 %v641
          %896 = vmatprep.subr.mxu0 0.0
          %897 = vmatpush1.msra.mxu0 %v642
          %898 = vmatprep.subr.mxu0 0.0
          %899 = vmatpush1.msra.mxu0 %v643
          %900 = vmatprep.subr.mxu0 0.0
          %901 = vmatpush1.msra.mxu0 %v644
          %902 = vmatprep.subr.mxu0 0.0
          %903 = vmatpush1.msra.mxu0 %v645
          %904 = vmatprep.subr.mxu0 0.0
          %905 = vmatpush1.msra.mxu0 %v646
          %906 = vmatprep.subr.mxu0 0.0
          %907 = vmatpush1.msra.mxu0 %v647
          %908 = vmatprep.subr.mxu0 0.0
          %909 = vmatpush1.msra.mxu0 %v648
          %910 = vmatprep.subr.mxu0 0.0
          %911 = vmatpush1.msra.mxu0 %v649
          %912 = vmatprep.subr.mxu0 0.0
          %913 = vmatpush1.msra.mxu0 %v650
          %914 = vmatprep.subr.mxu0 0.0
          %915 = vmatpush1.msra.mxu0 %v651
          %916 = vmatprep.subr.mxu0 0.0
          %917 = vmatpush1.msra.mxu0 %v652
          %918 = vmatprep.subr.mxu0 0.0
          %919 = vmatpush1.msra.mxu0 %v653
          %920 = vmatprep.subr.mxu0 0.0
          %921 = vmatpush1.msra.mxu0 %v654
          %922 = vmatprep.subr.mxu0 0.0
          %923 = vmatpush1.msra.mxu0 %v655
          %924 = vmatprep.subr.mxu0 0.0
          %925 = vmatpush1.msra.mxu0 %v656
          %926 = vmatprep.subr.mxu0 0.0
          %927 = vmatpush1.msra.mxu0 %v657
          %928 = vmatprep.subr.mxu0 0.0
          %929 = vmatpush1.msra.mxu0 %v658
          %930 = vmatprep.subr.mxu0 0.0
          %931 = vmatpush1.msra.mxu0 %v659
          %932 = vmatprep.subr.mxu0 0.0
          %933 = vmatpush1.msra.mxu0 %v660
          %934 = vmatprep.mubr.f32.mxu0 %v538
          %935 = vmatmul.mubr.f32.gmra.mrb[0].mxu0 %v537
          %v936 = vpop.f32.mrb[0].mxu0
          %v937 = vadd.f32 %v852, %v936
          %v938 = vpop.f32.mrb[0].mxu0
          %939 = vmatprep.mubr.f32.mxu0 %v546
          %940 = vmatmul.mubr.f32.gmra.mrb[0].mxu0 %v545
          %v941 = vpop.f32.mrb[0].mxu0
          %v942 = vadd.f32 %v857, %v941
          %v943 = vpop.f32.mrb[0].mxu0
          %944 = vmatprep.mubr.f32.mxu0 %v554
          %945 = vmatmul.mubr.f32.gmra.mrb[0].mxu0 %v553
          %v946 = vpop.f32.mrb[0].mxu0
          %v947 = vadd.f32 %v862, %v946
          %v948 = vpop.f32.mrb[0].mxu0
          %949 = vmatprep.mubr.f32.mxu0 %v562
          %950 = vmatmul.mubr.f32.gmra.mrb[0].mxu0 %v561
          %v951 = vpop.f32.mrb[0].mxu0
          %v952 = vadd.f32 %v867, %v951
          %v953 = vpop.f32.mrb[0].mxu0
          %954 = vdwg.mxu0
          %955 = vmatprep.subr.mxu0 0.0
          %956 = vmatpush1.msra.mxu0 %v661
          %957 = vmatprep.subr.mxu0 0.0
          %958 = vmatpush1.msra.mxu0 %v662
          %959 = vmatprep.subr.mxu0 0.0
          %960 = vmatpush1.msra.mxu0 %v663
          %961 = vmatprep.subr.mxu0 0.0
          %962 = vmatpush1.msra.mxu0 %v664
          %963 = vmatprep.subr.mxu0 0.0
          %964 = vmatpush1.msra.mxu0 %v665
          %965 = vmatprep.subr.mxu0 0.0
          %966 = vmatpush1.msra.mxu0 %v666
          %967 = vmatprep.subr.mxu0 0.0
          %968 = vmatpush1.msra.mxu0 %v667
          %969 = vmatprep.subr.mxu0 0.0
          %970 = vmatpush1.msra.mxu0 %v668
          %971 = vmatprep.subr.mxu0 0.0
          %972 = vmatpush1.msra.mxu0 %v669
          %973 = vmatprep.subr.mxu0 0.0
          %974 = vmatpush1.msra.mxu0 %v670
          %975 = vmatprep.subr.mxu0 0.0
          %976 = vmatpush1.msra.mxu0 %v671
          %977 = vmatprep.subr.mxu0 0.0
          %978 = vmatpush1.msra.mxu0 %v672
          %979 = vmatprep.subr.mxu0 0.0
          %980 = vmatpush1.msra.mxu0 %v673
          %981 = vmatprep.subr.mxu0 0.0
          %982 = vmatpush1.msra.mxu0 %v674
          %983 = vmatprep.subr.mxu0 0.0
          %984 = vmatpush1.msra.mxu0 %v675
          %985 = vmatprep.subr.mxu0 0.0
          %986 = vmatpush1.msra.mxu0 %v676
          %987 = vmatprep.subr.mxu0 0.0
          %988 = vmatpush1.msra.mxu0 %v677
          %989 = vmatprep.subr.mxu0 0.0
          %990 = vmatpush1.msra.mxu0 %v678
          %991 = vmatprep.subr.mxu0 0.0
          %992 = vmatpush1.msra.mxu0 %v679
          %993 = vmatprep.subr.mxu0 0.0
          %994 = vmatpush1.msra.mxu0 %v680
          %995 = vmatprep.subr.mxu0 0.0
          %996 = vmatpush1.msra.mxu0 %v681
          %997 = vmatprep.subr.mxu0 0.0
          %998 = vmatpush1.msra.mxu0 %v682
          %999 = vmatprep.subr.mxu0 0.0
          %1000 = vmatpush1.msra.mxu0 %v683
          %1001 = vmatprep.subr.mxu0 0.0
          %1002 = vmatpush1.msra.mxu0 %v684
          %1003 = vmatprep.subr.mxu0 0.0
          %1004 = vmatpush1.msra.mxu0 %v685
          %1005 = vmatprep.subr.mxu0 0.0
          %1006 = vmatpush1.msra.mxu0 %v686
          %1007 = vmatprep.subr.mxu0 0.0
          %1008 = vmatpush1.msra.mxu0 %v687
          %1009 = vmatprep.subr.mxu0 0.0
          %1010 = vmatpush1.msra.mxu0 %v688
          %1011 = vmatprep.subr.mxu0 0.0
          %1012 = vmatpush1.msra.mxu0 %v689
          %1013 = vmatprep.subr.mxu0 0.0
          %1014 = vmatpush1.msra.mxu0 %v690
          %1015 = vmatprep.subr.mxu0 0.0
          %1016 = vmatpush1.msra.mxu0 %v691
          %1017 = vmatprep.subr.mxu0 0.0
          %1018 = vmatpush1.msra.mxu0 %v692
          %1019 = vmatprep.mubr.f32.mxu0 %v540
          %1020 = vmatmul.mubr.f32.gmra.mrb[0].mxu0 %v539
          %v1021 = vpop.f32.mrb[0].mxu0
          %v1022 = vadd.f32 %v937, %v1021
          %v1023 = vpop.f32.mrb[0].mxu0
          %1024 = vmatprep.mubr.f32.mxu0 %v548
          %1025 = vmatmul.mubr.f32.gmra.mrb[0].mxu0 %v547
          %v1026 = vpop.f32.mrb[0].mxu0
          %v1027 = vadd.f32 %v942, %v1026
          %v1028 = vpop.f32.mrb[0].mxu0
          %1029 = vmatprep.mubr.f32.mxu0 %v556
          %1030 = vmatmul.mubr.f32.gmra.mrb[0].mxu0 %v555
          %v1031 = vpop.f32.mrb[0].mxu0
          %v1032 = vadd.f32 %v947, %v1031
          %v1033 = vpop.f32.mrb[0].mxu0
          %1034 = vmatprep.mubr.f32.mxu0 %v564
          %1035 = vmatmul.mubr.f32.gmra.mrb[0].mxu0 %v563
          %v1036 = vpop.f32.mrb[0].mxu0
          %v1037 = vadd.f32 %v952, %v1036
          %v1038 = vpop.f32.mrb[0].mxu0
          %1039 = vdwg.mxu0
          %v1040 = vadd.f32 %v1022, %v1027
          %v1041 = vadd.f32 %v1040, %v1032
          %v1042 = vadd.f32 %v1041, %v1037
          %v1043 = vrot.slane %v1042, 4
          %v1044 = vadd.f32 %v1042, %v1043
          %v1045 = vrot.slane %v1044, 2
          %v1046 = vadd.f32 %v1044, %v1045
          %v1047 = vrot.slane %v1046, 1
          %v1048 = vadd.f32 %v1046, %v1047
          %v1049 = vrcp.pop 32.0
          %v1050 = vmul.f32 %v1048, %v1049
          %v1051 = vsub.f32 %v1022, %v1050
          %v1052 = vsub.f32 %v1027, %v1050
          %v1053 = vsub.f32 %v1032, %v1050
          %v1054 = vsub.f32 %v1037, %v1050
          %v1055 = vmul.f32 %v1051, %v1051
          %v1056 = vmul.f32 %v1052, %v1052
          %v1057 = vmul.f32 %v1053, %v1053
          %v1058 = vmul.f32 %v1054, %v1054
          %v1059 = vadd.f32 %v1055, %v1056
          %v1060 = vadd.f32 %v1059, %v1057
          %v1061 = vadd.f32 %v1060, %v1058
          %v1062 = vrot.slane %v1061, 4
          %v1063 = vadd.f32 %v1061, %v1062
          %v1064 = vrot.slane %v1063, 2
          %v1065 = vadd.f32 %v1063, %v1064
          %v1066 = vrot.slane %v1065, 1
          %v1067 = vadd.f32 %v1065, %v1066
          %v1068 = vmul.f32 %v1067, %v1049
          %v1069 = vld [vmem:[#allocation9] sm:$0x1]
          %v1070 = vadd.f32 %v1068, 1e-05
          %v1071 = vrsqrt.pop %v1070
          %v1072 = vmul.f32 %v1069, %v1071
          %v1073 = vld [vmem:[#allocation10] sm:$0x1]
          %v1074 = vmul.f32 %v1050, %v1072
          %v1075 = vsub.f32 %v1073, %v1074
          %v1077 = vlaneseq
          %v1078 = vshrl.u32 %v1077, 7
          %v1079 = vsub.s32 0, %v1078
          %v1080 = vrot.slane %v1072, %v1079
          %v1082 = vmul.f32 %v1022, %v1080
          %v1083 = vmul.f32 %v1027, %v1080
          %v1084 = vmul.f32 %v1032, %v1080
          %v1085 = vmul.f32 %v1037, %v1080
          %v1087 = vlaneseq
          %v1088 = vshrl.u32 %v1087, 7
          %v1089 = vsub.s32 0, %v1088
          %v1090 = vrot.slane %v1075, %v1089
          %v1092 = vadd.f32 %v1082, %v1090
          %v1093 = vadd.f32 %v1083, %v1090
          %v1094 = vadd.f32 %v1084, %v1090
          %v1095 = vadd.f32 %v1085, %v1090
          %v1096 = vmax.f32 %v1092, 0.0
          %v1097 = vmax.f32 %v1093, 0.0
          %v1098 = vmax.f32 %v1094, 0.0
          %v1099 = vmax.f32 %v1095, 0.0
          %1100 = vst [vmem:[#allocation2] sm:$0xff] %v1096
          %1101 = vst [vmem:[#allocation2 + $0x8] sm:$0xff] %v1097
          %1102 = vst [vmem:[#allocation2 + $0x10] sm:$0xff] %v1098
          %1103 = vst [vmem:[#allocation2 + $0x18] sm:$0xff] %v1099
          %v1104 = vld [vmem:[%s455] sm:$0xf]
          %v1106 = vlaneseq
          %v1107 = vshrl.u32 %v1106, 7
          %v1108 = vsub.s32 0, %v1107
          %v1109 = vrot.slane %v1104, %v1108
          %v1110 = vlaneseq
          %v1111 = vshrl.u32 %v1110, 7
          %v1112 = vsub.s32 1, %v1111
          %v1113 = vrot.slane %v1104, %v1112
          %v1114 = vlaneseq
          %v1115 = vshrl.u32 %v1114, 7
          %v1116 = vsub.s32 2, %v1115
          %v1117 = vrot.slane %v1104, %v1116
          %v1118 = vlaneseq
          %v1119 = vshrl.u32 %v1118, 7
          %v1120 = vsub.s32 3, %v1119
          %v1121 = vrot.slane %v1104, %v1120
          %v1122 = vcombine.low %v1109, %v1113
          %v1123 = vcombine.low %v1117, %v1121
          %v1125 = vunpack.c.l.s4 1983009808
          %v1126 = vunpack.c.0.s8 %v1125
          %v1127 = vlaneseq
          %v1128 = vshrl.u32 %v1127, 7
          %v1129 = vsub.s32 %v1126, %v1128
          %v1130 = vrot.slane %v1122, %v1129
          %v1132 = vunpack.c.l.s4 1983009808
          %v1133 = vunpack.c.0.s8 %v1132
          %v1134 = vlaneseq
          %v1135 = vshrl.u32 %v1134, 7
          %v1136 = vsub.s32 %v1133, %v1135
          %v1137 = vrot.slane %v1123, %v1136
          %v1138 = vcombine.low %v1130, %v1137
          %1140 = vst [vmem:[#allocation3] sm:$0xff] %v1138
        $region92: #{encoder_forward.3} parent=55 // pred_fallthru
          _
        %s1141 = smul.u32 %s31, 32
        %s1142 = scalar_lea.vmem [#allocation2], %s1141
        %v1143 = vld [vmem:[%s1142] sm:$0xff]
        %v1144 = vld [vmem:[%s1142 + $0x8] sm:$0xff]
        %v1145 = vld [vmem:[%s1142 + $0x10] sm:$0xff]
        %v1146 = vld [vmem:[%s1142 + $0x18] sm:$0xff]
        %v1147 = vld [vmem:[#allocation3] sm:$0xff]
        %v1148 = vld [vmem:[%s446] sm:$0xff]
        %v1149 = vld [vmem:[%s446 + $0x8] sm:$0xff]
        %v1150 = vld [vmem:[%s446 + $0x10] sm:$0xff]
        %v1151 = vld [vmem:[%s446 + $0x18] sm:$0xff]
        %v1152 = vld [vmem:[%s446 + $0x20] sm:$0xff]
        %v1153 = vld [vmem:[%s446 + $0x28] sm:$0xff]
        %v1154 = vld [vmem:[%s446 + $0x30] sm:$0xff]
        %v1155 = vld [vmem:[%s446 + $0x38] sm:$0xff]
        %v1156 = vld [vmem:[%s446 + $0x40] sm:$0xff]
        %v1157 = vld [vmem:[%s446 + $0x48] sm:$0xff]
        %v1158 = vld [vmem:[%s446 + $0x50] sm:$0xff]
        %v1159 = vld [vmem:[%s446 + $0x58] sm:$0xff]
        %v1160 = vld [vmem:[%s446 + $0x60] sm:$0xff]
        %v1161 = vld [vmem:[%s446 + $0x68] sm:$0xff]
        %v1162 = vld [vmem:[%s446 + $0x70] sm:$0xff]
        %v1163 = vld [vmem:[%s446 + $0x78] sm:$0xff]
        %v1164 = vld [vmem:[%s446 + $0x80] sm:$0xff]
        %v1165 = vld [vmem:[%s446 + $0x88] sm:$0xff]
        %v1166 = vld [vmem:[%s446 + $0x90] sm:$0xff]
        %v1167 = vld [vmem:[%s446 + $0x98] sm:$0xff]
        %v1168 = vld [vmem:[%s446 + $0xa0] sm:$0xff]
        %v1169 = vld [vmem:[%s446 + $0xa8] sm:$0xff]
        %v1170 = vld [vmem:[%s446 + $0xb0] sm:$0xff]
        %v1171 = vld [vmem:[%s446 + $0xb8] sm:$0xff]
        %v1172 = vld [vmem:[%s446 + $0xc0] sm:$0xff]
        %v1173 = vld [vmem:[%s446 + $0xc8] sm:$0xff]
        %v1174 = vld [vmem:[%s446 + $0xd0] sm:$0xff]
        %v1175 = vld [vmem:[%s446 + $0xd8] sm:$0xff]
        %v1176 = vld [vmem:[%s446 + $0xe0] sm:$0xff]
        %v1177 = vld [vmem:[%s446 + $0xe8] sm:$0xff]
        %v1178 = vld [vmem:[%s446 + $0xf0] sm:$0xff]
        %v1179 = vld [vmem:[%s446 + $0xf8] sm:$0xff]
        %v1180 = vld [vmem:[%s446 + $0x100] sm:$0xff]
        %v1181 = vld [vmem:[%s446 + $0x108] sm:$0xff]
        %v1182 = vld [vmem:[%s446 + $0x110] sm:$0xff]
        %v1183 = vld [vmem:[%s446 + $0x118] sm:$0xff]
        %v1184 = vld [vmem:[%s446 + $0x120] sm:$0xff]
        %v1185 = vld [vmem:[%s446 + $0x128] sm:$0xff]
        %v1186 = vld [vmem:[%s446 + $0x130] sm:$0xff]
        %v1187 = vld [vmem:[%s446 + $0x138] sm:$0xff]
        %v1188 = vld [vmem:[%s446 + $0x140] sm:$0xff]
        %v1189 = vld [vmem:[%s446 + $0x148] sm:$0xff]
        %v1190 = vld [vmem:[%s446 + $0x150] sm:$0xff]
        %v1191 = vld [vmem:[%s446 + $0x158] sm:$0xff]
        %v1192 = vld [vmem:[%s446 + $0x160] sm:$0xff]
        %v1193 = vld [vmem:[%s446 + $0x168] sm:$0xff]
        %v1194 = vld [vmem:[%s446 + $0x170] sm:$0xff]
        %v1195 = vld [vmem:[%s446 + $0x178] sm:$0xff]
        %v1196 = vld [vmem:[%s446 + $0x180] sm:$0xff]
        %v1197 = vld [vmem:[%s446 + $0x188] sm:$0xff]
        %v1198 = vld [vmem:[%s446 + $0x190] sm:$0xff]
        %v1199 = vld [vmem:[%s446 + $0x198] sm:$0xff]
        %v1200 = vld [vmem:[%s446 + $0x1a0] sm:$0xff]
        %v1201 = vld [vmem:[%s446 + $0x1a8] sm:$0xff]
        %v1202 = vld [vmem:[%s446 + $0x1b0] sm:$0xff]
        %v1203 = vld [vmem:[%s446 + $0x1b8] sm:$0xff]
        %v1204 = vld [vmem:[%s446 + $0x1c0] sm:$0xff]
        %v1205 = vld [vmem:[%s446 + $0x1c8] sm:$0xff]
        %v1206 = vld [vmem:[%s446 + $0x1d0] sm:$0xff]
        %v1207 = vld [vmem:[%s446 + $0x1d8] sm:$0xff]
        %v1208 = vld [vmem:[%s446 + $0x1e0] sm:$0xff]
        %v1209 = vld [vmem:[%s446 + $0x1e8] sm:$0xff]
        %v1210 = vld [vmem:[%s446 + $0x1f0] sm:$0xff]
        %v1211 = vld [vmem:[%s446 + $0x1f8] sm:$0xff]
        %1212 = vmatprep.subr.mxu0 %v1149
        %1213 = vmatpush1.msra.mxu0 %v1148
        %1214 = vmatprep.subr.mxu0 %v1153
        %1215 = vmatpush1.msra.mxu0 %v1152
        %1216 = vmatprep.subr.mxu0 %v1157
        %1217 = vmatpush1.msra.mxu0 %v1156
        %1218 = vmatprep.subr.mxu0 %v1161
        %1219 = vmatpush1.msra.mxu0 %v1160
        %1220 = vmatprep.subr.mxu0 %v1165
        %1221 = vmatpush1.msra.mxu0 %v1164
        %1222 = vmatprep.subr.mxu0 %v1169
        %1223 = vmatpush1.msra.mxu0 %v1168
        %1224 = vmatprep.subr.mxu0 %v1173
        %1225 = vmatpush1.msra.mxu0 %v1172
        %1226 = vmatprep.subr.mxu0 %v1177
        %1227 = vmatpush1.msra.mxu0 %v1176
        %1228 = vmatprep.subr.mxu0 %v1181
        %1229 = vmatpush1.msra.mxu0 %v1180
        %1230 = vmatprep.subr.mxu0 %v1185
        %1231 = vmatpush1.msra.mxu0 %v1184
        %1232 = vmatprep.subr.mxu0 %v1189
        %1233 = vmatpush1.msra.mxu0 %v1188
        %1234 = vmatprep.subr.mxu0 %v1193
        %1235 = vmatpush1.msra.mxu0 %v1192
        %1236 = vmatprep.subr.mxu0 %v1197
        %1237 = vmatpush1.msra.mxu0 %v1196
        %1238 = vmatprep.subr.mxu0 %v1201
        %1239 = vmatpush1.msra.mxu0 %v1200
        %1240 = vmatprep.subr.mxu0 %v1205
        %1241 = vmatpush1.msra.mxu0 %v1204
        %1242 = vmatprep.subr.mxu0 %v1209
        %1243 = vmatpush1.msra.mxu0 %v1208
        %1244 = vmatprep.subr.mxu0 0.0
        %1245 = vmatpush1.msra.mxu0 0.0
        %1246 = vmatprep.subr.mxu0 0.0
        %1247 = vmatpush1.msra.mxu0 0.0
        %1248 = vmatprep.subr.mxu0 0.0
        %1249 = vmatpush1.msra.mxu0 0.0
        %1250 = vmatprep.subr.mxu0 0.0
        %1251 = vmatpush1.msra.mxu0 0.0
        %1252 = vmatprep.subr.mxu0 0.0
        %1253 = vmatpush1.msra.mxu0 0.0
        %1254 = vmatprep.subr.mxu0 0.0
        %1255 = vmatpush1.msra.mxu0 0.0
        %1256 = vmatprep.subr.mxu0 0.0
        %1257 = vmatpush1.msra.mxu0 0.0
        %1258 = vmatprep.subr.mxu0 0.0
        %1259 = vmatpush1.msra.mxu0 0.0
        %1260 = vmatprep.subr.mxu0 0.0
        %1261 = vmatpush1.msra.mxu0 0.0
        %1262 = vmatprep.subr.mxu0 0.0
        %1263 = vmatpush1.msra.mxu0 0.0
        %1264 = vmatprep.subr.mxu0 0.0
        %1265 = vmatpush1.msra.mxu0 0.0
        %1266 = vmatprep.subr.mxu0 0.0
        %1267 = vmatpush1.msra.mxu0 0.0
        %1268 = vmatprep.subr.mxu0 0.0
        %1269 = vmatpush1.msra.mxu0 0.0
        %1270 = vmatprep.subr.mxu0 0.0
        %1271 = vmatpush1.msra.mxu0 0.0
        %1272 = vmatprep.subr.mxu0 0.0
        %1273 = vmatpush1.msra.mxu0 0.0
        %1274 = vmatprep.subr.mxu0 0.0
        %1275 = vmatpush1.msra.mxu0 0.0
        %1276 = vmatprep.mubr.f32.mxu0 0.0
        %1277 = vmatmul.mubr.f32.gmra.mrb[0].mxu0 %v1143
        %v1278 = vpop.f32.mrb[0].mxu0
        %v1279 = vadd.f32 0.0, %v1278
        %v1280 = vpop.f32.mrb[0].mxu0
        %v1281 = vadd.f32 0.0, %v1280
        %1282 = vdwg.mxu0
        %1283 = vmatprep.subr.mxu0 %v1151
        %1284 = vmatpush1.msra.mxu0 %v1150
        %1285 = vmatprep.subr.mxu0 %v1155
        %1286 = vmatpush1.msra.mxu0 %v1154
        %1287 = vmatprep.subr.mxu0 %v1159
        %1288 = vmatpush1.msra.mxu0 %v1158
        %1289 = vmatprep.subr.mxu0 %v1163
        %1290 = vmatpush1.msra.mxu0 %v1162
        %1291 = vmatprep.subr.mxu0 %v1167
        %1292 = vmatpush1.msra.mxu0 %v1166
        %1293 = vmatprep.subr.mxu0 %v1171
        %1294 = vmatpush1.msra.mxu0 %v1170
        %1295 = vmatprep.subr.mxu0 %v1175
        %1296 = vmatpush1.msra.mxu0 %v1174
        %1297 = vmatprep.subr.mxu0 %v1179
        %1298 = vmatpush1.msra.mxu0 %v1178
        %1299 = vmatprep.subr.mxu0 %v1183
        %1300 = vmatpush1.msra.mxu0 %v1182
        %1301 = vmatprep.subr.mxu0 %v1187
        %1302 = vmatpush1.msra.mxu0 %v1186
        %1303 = vmatprep.subr.mxu0 %v1191
        %1304 = vmatpush1.msra.mxu0 %v1190
        %1305 = vmatprep.subr.mxu0 %v1195
        %1306 = vmatpush1.msra.mxu0 %v1194
        %1307 = vmatprep.subr.mxu0 %v1199
        %1308 = vmatpush1.msra.mxu0 %v1198
        %1309 = vmatprep.subr.mxu0 %v1203
        %1310 = vmatpush1.msra.mxu0 %v1202
        %1311 = vmatprep.subr.mxu0 %v1207
        %1312 = vmatpush1.msra.mxu0 %v1206
        %1313 = vmatprep.subr.mxu0 %v1211
        %1314 = vmatpush1.msra.mxu0 %v1210
        %1315 = vmatprep.subr.mxu0 0.0
        %1316 = vmatpush1.msra.mxu0 0.0
        %1317 = vmatprep.subr.mxu0 0.0
        %1318 = vmatpush1.msra.mxu0 0.0
        %1319 = vmatprep.subr.mxu0 0.0
        %1320 = vmatpush1.msra.mxu0 0.0
        %1321 = vmatprep.subr.mxu0 0.0
        %1322 = vmatpush1.msra.mxu0 0.0
        %1323 = vmatprep.subr.mxu0 0.0
        %1324 = vmatpush1.msra.mxu0 0.0
        %1325 = vmatprep.subr.mxu0 0.0
        %1326 = vmatpush1.msra.mxu0 0.0
        %1327 = vmatprep.subr.mxu0 0.0
        %1328 = vmatpush1.msra.mxu0 0.0
        %1329 = vmatprep.subr.mxu0 0.0
        %1330 = vmatpush1.msra.mxu0 0.0
        %1331 = vmatprep.subr.mxu0 0.0
        %1332 = vmatpush1.msra.mxu0 0.0
        %1333 = vmatprep.subr.mxu0 0.0
        %1334 = vmatpush1.msra.mxu0 0.0
        %1335 = vmatprep.subr.mxu0 0.0
        %1336 = vmatpush1.msra.mxu0 0.0
        %1337 = vmatprep.subr.mxu0 0.0
        %1338 = vmatpush1.msra.mxu0 0.0
        %1339 = vmatprep.subr.mxu0 0.0
        %1340 = vmatpush1.msra.mxu0 0.0
        %1341 = vmatprep.subr.mxu0 0.0
        %1342 = vmatpush1.msra.mxu0 0.0
        %1343 = vmatprep.subr.mxu0 0.0
        %1344 = vmatpush1.msra.mxu0 0.0
        %1345 = vmatprep.subr.mxu0 0.0
        %1346 = vmatpush1.msra.mxu0 0.0
        %1347 = vmatprep.mubr.f32.mxu0 0.0
        %1348 = vmatmul.mubr.f32.gmra.mrb[0].mxu0 %v1143
        %v1349 = vpop.f32.mrb[0].mxu0
        %v1350 = vadd.f32 0.0, %v1349
        %v1351 = vpop.f32.mrb[0].mxu0
        %v1352 = vadd.f32 0.0, %v1351
        %1353 = vdwg.mxu0
        %v1358 = vcombine.low %v1279, %v1281
        %v1359 = vcombine.low %v1350, %v1352
        %v1361 = vunpack.c.l.s4 1983009808
        %v1362 = vunpack.c.0.s8 %v1361
        %v1363 = vlaneseq
        %v1364 = vshrl.u32 %v1363, 7
        %v1365 = vsub.s32 %v1362, %v1364
        %v1366 = vrot.slane %v1358, %v1365
        %v1368 = vunpack.c.l.s4 1983009808
        %v1369 = vunpack.c.0.s8 %v1368
        %v1370 = vlaneseq
        %v1371 = vshrl.u32 %v1370, 7
        %v1372 = vsub.s32 %v1369, %v1371
        %v1373 = vrot.slane %v1359, %v1372
        %v1374 = vcombine.low %v1366, %v1373
        %v1376 = vadd.f32 %v1147, %v1374
        %v1377 = vld [vmem:[%s446 + $0x200] sm:$0xff]
        %v1378 = vld [vmem:[%s446 + $0x208] sm:$0xff]
        %v1379 = vld [vmem:[%s446 + $0x210] sm:$0xff]
        %v1380 = vld [vmem:[%s446 + $0x218] sm:$0xff]
        %v1381 = vld [vmem:[%s446 + $0x220] sm:$0xff]
        %v1382 = vld [vmem:[%s446 + $0x228] sm:$0xff]
        %v1383 = vld [vmem:[%s446 + $0x230] sm:$0xff]
        %v1384 = vld [vmem:[%s446 + $0x238] sm:$0xff]
        %v1385 = vld [vmem:[%s446 + $0x240] sm:$0xff]
        %v1386 = vld [vmem:[%s446 + $0x248] sm:$0xff]
        %v1387 = vld [vmem:[%s446 + $0x250] sm:$0xff]
        %v1388 = vld [vmem:[%s446 + $0x258] sm:$0xff]
        %v1389 = vld [vmem:[%s446 + $0x260] sm:$0xff]
        %v1390 = vld [vmem:[%s446 + $0x268] sm:$0xff]
        %v1391 = vld [vmem:[%s446 + $0x270] sm:$0xff]
        %v1392 = vld [vmem:[%s446 + $0x278] sm:$0xff]
        %v1393 = vld [vmem:[%s446 + $0x280] sm:$0xff]
        %v1394 = vld [vmem:[%s446 + $0x288] sm:$0xff]
        %v1395 = vld [vmem:[%s446 + $0x290] sm:$0xff]
        %v1396 = vld [vmem:[%s446 + $0x298] sm:$0xff]
        %v1397 = vld [vmem:[%s446 + $0x2a0] sm:$0xff]
        %v1398 = vld [vmem:[%s446 + $0x2a8] sm:$0xff]
        %v1399 = vld [vmem:[%s446 + $0x2b0] sm:$0xff]
        %v1400 = vld [vmem:[%s446 + $0x2b8] sm:$0xff]
        %v1401 = vld [vmem:[%s446 + $0x2c0] sm:$0xff]
        %v1402 = vld [vmem:[%s446 + $0x2c8] sm:$0xff]
        %v1403 = vld [vmem:[%s446 + $0x2d0] sm:$0xff]
        %v1404 = vld [vmem:[%s446 + $0x2d8] sm:$0xff]
        %v1405 = vld [vmem:[%s446 + $0x2e0] sm:$0xff]
        %v1406 = vld [vmem:[%s446 + $0x2e8] sm:$0xff]
        %v1407 = vld [vmem:[%s446 + $0x2f0] sm:$0xff]
        %v1408 = vld [vmem:[%s446 + $0x2f8] sm:$0xff]
        %v1409 = vld [vmem:[%s446 + $0x300] sm:$0xff]
        %v1410 = vld [vmem:[%s446 + $0x308] sm:$0xff]
        %v1411 = vld [vmem:[%s446 + $0x310] sm:$0xff]
        %v1412 = vld [vmem:[%s446 + $0x318] sm:$0xff]
        %v1413 = vld [vmem:[%s446 + $0x320] sm:$0xff]
        %v1414 = vld [vmem:[%s446 + $0x328] sm:$0xff]
        %v1415 = vld [vmem:[%s446 + $0x330] sm:$0xff]
        %v1416 = vld [vmem:[%s446 + $0x338] sm:$0xff]
        %v1417 = vld [vmem:[%s446 + $0x340] sm:$0xff]
        %v1418 = vld [vmem:[%s446 + $0x348] sm:$0xff]
        %v1419 = vld [vmem:[%s446 + $0x350] sm:$0xff]
        %v1420 = vld [vmem:[%s446 + $0x358] sm:$0xff]
        %v1421 = vld [vmem:[%s446 + $0x360] sm:$0xff]
        %v1422 = vld [vmem:[%s446 + $0x368] sm:$0xff]
        %v1423 = vld [vmem:[%s446 + $0x370] sm:$0xff]
        %v1424 = vld [vmem:[%s446 + $0x378] sm:$0xff]
        %v1425 = vld [vmem:[%s446 + $0x380] sm:$0xff]
        %v1426 = vld [vmem:[%s446 + $0x388] sm:$0xff]
        %v1427 = vld [vmem:[%s446 + $0x390] sm:$0xff]
        %v1428 = vld [vmem:[%s446 + $0x398] sm:$0xff]
        %v1429 = vld [vmem:[%s446 + $0x3a0] sm:$0xff]
        %v1430 = vld [vmem:[%s446 + $0x3a8] sm:$0xff]
        %v1431 = vld [vmem:[%s446 + $0x3b0] sm:$0xff]
        %v1432 = vld [vmem:[%s446 + $0x3b8] sm:$0xff]
        %v1433 = vld [vmem:[%s446 + $0x3c0] sm:$0xff]
        %v1434 = vld [vmem:[%s446 + $0x3c8] sm:$0xff]
        %v1435 = vld [vmem:[%s446 + $0x3d0] sm:$0xff]
        %v1436 = vld [vmem:[%s446 + $0x3d8] sm:$0xff]
        %v1437 = vld [vmem:[%s446 + $0x3e0] sm:$0xff]
        %v1438 = vld [vmem:[%s446 + $0x3e8] sm:$0xff]
        %v1439 = vld [vmem:[%s446 + $0x3f0] sm:$0xff]
        %v1440 = vld [vmem:[%s446 + $0x3f8] sm:$0xff]
        %v1442 = vrot.slane %v1143, 2
        %1444 = vmatprep.subr.mxu0 %v1378
        %1445 = vmatpush1.msra.mxu0 %v1377
        %1446 = vmatprep.subr.mxu0 %v1382
        %1447 = vmatpush1.msra.mxu0 %v1381
        %1448 = vmatprep.subr.mxu0 %v1386
        %1449 = vmatpush1.msra.mxu0 %v1385
        %1450 = vmatprep.subr.mxu0 %v1390
        %1451 = vmatpush1.msra.mxu0 %v1389
        %1452 = vmatprep.subr.mxu0 %v1394
        %1453 = vmatpush1.msra.mxu0 %v1393
        %1454 = vmatprep.subr.mxu0 %v1398
        %1455 = vmatpush1.msra.mxu0 %v1397
        %1456 = vmatprep.subr.mxu0 %v1402
        %1457 = vmatpush1.msra.mxu0 %v1401
        %1458 = vmatprep.subr.mxu0 %v1406
        %1459 = vmatpush1.msra.mxu0 %v1405
        %1460 = vmatprep.subr.mxu0 %v1410
        %1461 = vmatpush1.msra.mxu0 %v1409
        %1462 = vmatprep.subr.mxu0 %v1414
        %1463 = vmatpush1.msra.mxu0 %v1413
        %1464 = vmatprep.subr.mxu0 %v1418
        %1465 = vmatpush1.msra.mxu0 %v1417
        %1466 = vmatprep.subr.mxu0 %v1422
        %1467 = vmatpush1.msra.mxu0 %v1421
        %1468 = vmatprep.subr.mxu0 %v1426
        %1469 = vmatpush1.msra.mxu0 %v1425
        %1470 = vmatprep.subr.mxu0 %v1430
        %1471 = vmatpush1.msra.mxu0 %v1429
        %1472 = vmatprep.subr.mxu0 %v1434
        %1473 = vmatpush1.msra.mxu0 %v1433
        %1474 = vmatprep.subr.mxu0 %v1438
        %1475 = vmatpush1.msra.mxu0 %v1437
        %1476 = vmatprep.subr.mxu0 0.0
        %1477 = vmatpush1.msra.mxu0 0.0
        %1478 = vmatprep.subr.mxu0 0.0
        %1479 = vmatpush1.msra.mxu0 0.0
        %1480 = vmatprep.subr.mxu0 0.0
        %1481 = vmatpush1.msra.mxu0 0.0
        %1482 = vmatprep.subr.mxu0 0.0
        %1483 = vmatpush1.msra.mxu0 0.0
        %1484 = vmatprep.subr.mxu0 0.0
        %1485 = vmatpush1.msra.mxu0 0.0
        %1486 = vmatprep.subr.mxu0 0.0
        %1487 = vmatpush1.msra.mxu0 0.0
        %1488 = vmatprep.subr.mxu0 0.0
        %1489 = vmatpush1.msra.mxu0 0.0
        %1490 = vmatprep.subr.mxu0 0.0
        %1491 = vmatpush1.msra.mxu0 0.0
        %1492 = vmatprep.subr.mxu0 0.0
        %1493 = vmatpush1.msra.mxu0 0.0
        %1494 = vmatprep.subr.mxu0 0.0
        %1495 = vmatpush1.msra.mxu0 0.0
        %1496 = vmatprep.subr.mxu0 0.0
        %1497 = vmatpush1.msra.mxu0 0.0
        %1498 = vmatprep.subr.mxu0 0.0
        %1499 = vmatpush1.msra.mxu0 0.0
        %1500 = vmatprep.subr.mxu0 0.0
        %1501 = vmatpush1.msra.mxu0 0.0
        %1502 = vmatprep.subr.mxu0 0.0
        %1503 = vmatpush1.msra.mxu0 0.0
        %1504 = vmatprep.subr.mxu0 0.0
        %1505 = vmatpush1.msra.mxu0 0.0
        %1506 = vmatprep.subr.mxu0 0.0
        %1507 = vmatpush1.msra.mxu0 0.0
        %1508 = vmatprep.mubr.f32.mxu0 0.0
        %1509 = vmatmul.mubr.f32.gmra.mrb[0].mxu0 %v1442
        %v1510 = vpop.f32.mrb[0].mxu0
        %v1511 = vadd.f32 0.0, %v1510
        %v1512 = vpop.f32.mrb[0].mxu0
        %v1513 = vadd.f32 0.0, %v1512
        %1514 = vdwg.mxu0
        %1515 = vmatprep.subr.mxu0 %v1380
        %1516 = vmatpush1.msra.mxu0 %v1379
        %1517 = vmatprep.subr.mxu0 %v1384
        %1518 = vmatpush1.msra.mxu0 %v1383
        %1519 = vmatprep.subr.mxu0 %v1388
        %1520 = vmatpush1.msra.mxu0 %v1387
        %1521 = vmatprep.subr.mxu0 %v1392
        %1522 = vmatpush1.msra.mxu0 %v1391
        %1523 = vmatprep.subr.mxu0 %v1396
        %1524 = vmatpush1.msra.mxu0 %v1395
        %1525 = vmatprep.subr.mxu0 %v1400
        %1526 = vmatpush1.msra.mxu0 %v1399
        %1527 = vmatprep.subr.mxu0 %v1404
        %1528 = vmatpush1.msra.mxu0 %v1403
        %1529 = vmatprep.subr.mxu0 %v1408
        %1530 = vmatpush1.msra.mxu0 %v1407
        %1531 = vmatprep.subr.mxu0 %v1412
        %1532 = vmatpush1.msra.mxu0 %v1411
        %1533 = vmatprep.subr.mxu0 %v1416
        %1534 = vmatpush1.msra.mxu0 %v1415
        %1535 = vmatprep.subr.mxu0 %v1420
        %1536 = vmatpush1.msra.mxu0 %v1419
        %1537 = vmatprep.subr.mxu0 %v1424
        %1538 = vmatpush1.msra.mxu0 %v1423
        %1539 = vmatprep.subr.mxu0 %v1428
        %1540 = vmatpush1.msra.mxu0 %v1427
        %1541 = vmatprep.subr.mxu0 %v1432
        %1542 = vmatpush1.msra.mxu0 %v1431
        %1543 = vmatprep.subr.mxu0 %v1436
        %1544 = vmatpush1.msra.mxu0 %v1435
        %1545 = vmatprep.subr.mxu0 %v1440
        %1546 = vmatpush1.msra.mxu0 %v1439
        %1547 = vmatprep.subr.mxu0 0.0
        %1548 = vmatpush1.msra.mxu0 0.0
        %1549 = vmatprep.subr.mxu0 0.0
        %1550 = vmatpush1.msra.mxu0 0.0
        %1551 = vmatprep.subr.mxu0 0.0
        %1552 = vmatpush1.msra.mxu0 0.0
        %1553 = vmatprep.subr.mxu0 0.0
        %1554 = vmatpush1.msra.mxu0 0.0
        %1555 = vmatprep.subr.mxu0 0.0
        %1556 = vmatpush1.msra.mxu0 0.0
        %1557 = vmatprep.subr.mxu0 0.0
        %1558 = vmatpush1.msra.mxu0 0.0
        %1559 = vmatprep.subr.mxu0 0.0
        %1560 = vmatpush1.msra.mxu0 0.0
        %1561 = vmatprep.subr.mxu0 0.0
        %1562 = vmatpush1.msra.mxu0 0.0
        %1563 = vmatprep.subr.mxu0 0.0
        %1564 = vmatpush1.msra.mxu0 0.0
        %1565 = vmatprep.subr.mxu0 0.0
        %1566 = vmatpush1.msra.mxu0 0.0
        %1567 = vmatprep.subr.mxu0 0.0
        %1568 = vmatpush1.msra.mxu0 0.0
        %1569 = vmatprep.subr.mxu0 0.0
        %1570 = vmatpush1.msra.mxu0 0.0
        %1571 = vmatprep.subr.mxu0 0.0
        %1572 = vmatpush1.msra.mxu0 0.0
        %1573 = vmatprep.subr.mxu0 0.0
        %1574 = vmatpush1.msra.mxu0 0.0
        %1575 = vmatprep.subr.mxu0 0.0
        %1576 = vmatpush1.msra.mxu0 0.0
        %1577 = vmatprep.subr.mxu0 0.0
        %1578 = vmatpush1.msra.mxu0 0.0
        %1579 = vmatprep.mubr.f32.mxu0 0.0
        %1580 = vmatmul.mubr.f32.gmra.mrb[0].mxu0 %v1442
        %v1581 = vpop.f32.mrb[0].mxu0
        %v1582 = vadd.f32 0.0, %v1581
        %v1583 = vpop.f32.mrb[0].mxu0
        %v1584 = vadd.f32 0.0, %v1583
        %1585 = vdwg.mxu0
        %v1590 = vcombine.low %v1511, %v1513
        %v1591 = vcombine.low %v1582, %v1584
        %v1593 = vunpack.c.l.s4 1983009808
        %v1594 = vunpack.c.0.s8 %v1593
        %v1595 = vlaneseq
        %v1596 = vshrl.u32 %v1595, 7
        %v1597 = vsub.s32 %v1594, %v1596
        %v1598 = vrot.slane %v1590, %v1597
        %v1600 = vunpack.c.l.s4 1983009808
        %v1601 = vunpack.c.0.s8 %v1600
        %v1602 = vlaneseq
        %v1603 = vshrl.u32 %v1602, 7
        %v1604 = vsub.s32 %v1601, %v1603
        %v1605 = vrot.slane %v1591, %v1604
        %v1606 = vcombine.low %v1598, %v1605
        %v1608 = vadd.f32 %v1376, %v1606
        %v1609 = vld [vmem:[%s446 + $0x400] sm:$0xff]
        %v1610 = vld [vmem:[%s446 + $0x408] sm:$0xff]
        %v1611 = vld [vmem:[%s446 + $0x410] sm:$0xff]
        %v1612 = vld [vmem:[%s446 + $0x418] sm:$0xff]
        %v1613 = vld [vmem:[%s446 + $0x420] sm:$0xff]
        %v1614 = vld [vmem:[%s446 + $0x428] sm:$0xff]
        %v1615 = vld [vmem:[%s446 + $0x430] sm:$0xff]
        %v1616 = vld [vmem:[%s446 + $0x438] sm:$0xff]
        %v1617 = vld [vmem:[%s446 + $0x440] sm:$0xff]
        %v1618 = vld [vmem:[%s446 + $0x448] sm:$0xff]
        %v1619 = vld [vmem:[%s446 + $0x450] sm:$0xff]
        %v1620 = vld [vmem:[%s446 + $0x458] sm:$0xff]
        %v1621 = vld [vmem:[%s446 + $0x460] sm:$0xff]
        %v1622 = vld [vmem:[%s446 + $0x468] sm:$0xff]
        %v1623 = vld [vmem:[%s446 + $0x470] sm:$0xff]
        %v1624 = vld [vmem:[%s446 + $0x478] sm:$0xff]
        %v1625 = vld [vmem:[%s446 + $0x480] sm:$0xff]
        %v1626 = vld [vmem:[%s446 + $0x488] sm:$0xff]
        %v1627 = vld [vmem:[%s446 + $0x490] sm:$0xff]
        %v1628 = vld [vmem:[%s446 + $0x498] sm:$0xff]
        %v1629 = vld [vmem:[%s446 + $0x4a0] sm:$0xff]
        %v1630 = vld [vmem:[%s446 + $0x4a8] sm:$0xff]
        %v1631 = vld [vmem:[%s446 + $0x4b0] sm:$0xff]
        %v1632 = vld [vmem:[%s446 + $0x4b8] sm:$0xff]
        %v1633 = vld [vmem:[%s446 + $0x4c0] sm:$0xff]
        %v1634 = vld [vmem:[%s446 + $0x4c8] sm:$0xff]
        %v1635 = vld [vmem:[%s446 + $0x4d0] sm:$0xff]
        %v1636 = vld [vmem:[%s446 + $0x4d8] sm:$0xff]
        %v1637 = vld [vmem:[%s446 + $0x4e0] sm:$0xff]
        %v1638 = vld [vmem:[%s446 + $0x4e8] sm:$0xff]
        %v1639 = vld [vmem:[%s446 + $0x4f0] sm:$0xff]
        %v1640 = vld [vmem:[%s446 + $0x4f8] sm:$0xff]
        %v1641 = vld [vmem:[%s446 + $0x500] sm:$0xff]
        %v1642 = vld [vmem:[%s446 + $0x508] sm:$0xff]
        %v1643 = vld [vmem:[%s446 + $0x510] sm:$0xff]
        %v1644 = vld [vmem:[%s446 + $0x518] sm:$0xff]
        %v1645 = vld [vmem:[%s446 + $0x520] sm:$0xff]
        %v1646 = vld [vmem:[%s446 + $0x528] sm:$0xff]
        %v1647 = vld [vmem:[%s446 + $0x530] sm:$0xff]
        %v1648 = vld [vmem:[%s446 + $0x538] sm:$0xff]
        %v1649 = vld [vmem:[%s446 + $0x540] sm:$0xff]
        %v1650 = vld [vmem:[%s446 + $0x548] sm:$0xff]
        %v1651 = vld [vmem:[%s446 + $0x550] sm:$0xff]
        %v1652 = vld [vmem:[%s446 + $0x558] sm:$0xff]
        %v1653 = vld [vmem:[%s446 + $0x560] sm:$0xff]
        %v1654 = vld [vmem:[%s446 + $0x568] sm:$0xff]
        %v1655 = vld [vmem:[%s446 + $0x570] sm:$0xff]
        %v1656 = vld [vmem:[%s446 + $0x578] sm:$0xff]
        %v1657 = vld [vmem:[%s446 + $0x580] sm:$0xff]
        %v1658 = vld [vmem:[%s446 + $0x588] sm:$0xff]
        %v1659 = vld [vmem:[%s446 + $0x590] sm:$0xff]
        %v1660 = vld [vmem:[%s446 + $0x598] sm:$0xff]
        %v1661 = vld [vmem:[%s446 + $0x5a0] sm:$0xff]
        %v1662 = vld [vmem:[%s446 + $0x5a8] sm:$0xff]
        %v1663 = vld [vmem:[%s446 + $0x5b0] sm:$0xff]
        %v1664 = vld [vmem:[%s446 + $0x5b8] sm:$0xff]
        %v1665 = vld [vmem:[%s446 + $0x5c0] sm:$0xff]
        %v1666 = vld [vmem:[%s446 + $0x5c8] sm:$0xff]
        %v1667 = vld [vmem:[%s446 + $0x5d0] sm:$0xff]
        %v1668 = vld [vmem:[%s446 + $0x5d8] sm:$0xff]
        %v1669 = vld [vmem:[%s446 + $0x5e0] sm:$0xff]
        %v1670 = vld [vmem:[%s446 + $0x5e8] sm:$0xff]
        %v1671 = vld [vmem:[%s446 + $0x5f0] sm:$0xff]
        %v1672 = vld [vmem:[%s446 + $0x5f8] sm:$0xff]
        %v1673 = vrot.slane %v1143, 4
        %1675 = vmatprep.subr.mxu0 %v1610
        %1676 = vmatpush1.msra.mxu0 %v1609
        %1677 = vmatprep.subr.mxu0 %v1614
        %1678 = vmatpush1.msra.mxu0 %v1613
        %1679 = vmatprep.subr.mxu0 %v1618
        %1680 = vmatpush1.msra.mxu0 %v1617
        %1681 = vmatprep.subr.mxu0 %v1622
        %1682 = vmatpush1.msra.mxu0 %v1621
        %1683 = vmatprep.subr.mxu0 %v1626
        %1684 = vmatpush1.msra.mxu0 %v1625
        %1685 = vmatprep.subr.mxu0 %v1630
        %1686 = vmatpush1.msra.mxu0 %v1629
        %1687 = vmatprep.subr.mxu0 %v1634
        %1688 = vmatpush1.msra.mxu0 %v1633
        %1689 = vmatprep.subr.mxu0 %v1638
        %1690 = vmatpush1.msra.mxu0 %v1637
        %1691 = vmatprep.subr.mxu0 %v1642
        %1692 = vmatpush1.msra.mxu0 %v1641
        %1693 = vmatprep.subr.mxu0 %v1646
        %1694 = vmatpush1.msra.mxu0 %v1645
        %1695 = vmatprep.subr.mxu0 %v1650
        %1696 = vmatpush1.msra.mxu0 %v1649
        %1697 = vmatprep.subr.mxu0 %v1654
        %1698 = vmatpush1.msra.mxu0 %v1653
        %1699 = vmatprep.subr.mxu0 %v1658
        %1700 = vmatpush1.msra.mxu0 %v1657
        %1701 = vmatprep.subr.mxu0 %v1662
        %1702 = vmatpush1.msra.mxu0 %v1661
        %1703 = vmatprep.subr.mxu0 %v1666
        %1704 = vmatpush1.msra.mxu0 %v1665
        %1705 = vmatprep.subr.mxu0 %v1670
        %1706 = vmatpush1.msra.mxu0 %v1669
        %1707 = vmatprep.subr.mxu0 0.0
        %1708 = vmatpush1.msra.mxu0 0.0
        %1709 = vmatprep.subr.mxu0 0.0
        %1710 = vmatpush1.msra.mxu0 0.0
        %1711 = vmatprep.subr.mxu0 0.0
        %1712 = vmatpush1.msra.mxu0 0.0
        %1713 = vmatprep.subr.mxu0 0.0
        %1714 = vmatpush1.msra.mxu0 0.0
        %1715 = vmatprep.subr.mxu0 0.0
        %1716 = vmatpush1.msra.mxu0 0.0
        %1717 = vmatprep.subr.mxu0 0.0
        %1718 = vmatpush1.msra.mxu0 0.0
        %1719 = vmatprep.subr.mxu0 0.0
        %1720 = vmatpush1.msra.mxu0 0.0
        %1721 = vmatprep.subr.mxu0 0.0
        %1722 = vmatpush1.msra.mxu0 0.0
        %1723 = vmatprep.subr.mxu0 0.0
        %1724 = vmatpush1.msra.mxu0 0.0
        %1725 = vmatprep.subr.mxu0 0.0
        %1726 = vmatpush1.msra.mxu0 0.0
        %1727 = vmatprep.subr.mxu0 0.0
        %1728 = vmatpush1.msra.mxu0 0.0
        %1729 = vmatprep.subr.mxu0 0.0
        %1730 = vmatpush1.msra.mxu0 0.0
        %1731 = vmatprep.subr.mxu0 0.0
        %1732 = vmatpush1.msra.mxu0 0.0
        %1733 = vmatprep.subr.mxu0 0.0
        %1734 = vmatpush1.msra.mxu0 0.0
        %1735 = vmatprep.subr.mxu0 0.0
        %1736 = vmatpush1.msra.mxu0 0.0
        %1737 = vmatprep.subr.mxu0 0.0
        %1738 = vmatpush1.msra.mxu0 0.0
        %1739 = vmatprep.mubr.f32.mxu0 0.0
        %1740 = vmatmul.mubr.f32.gmra.mrb[0].mxu0 %v1673
        %v1741 = vpop.f32.mrb[0].mxu0
        %v1742 = vadd.f32 0.0, %v1741
        %v1743 = vpop.f32.mrb[0].mxu0
        %v1744 = vadd.f32 0.0, %v1743
        %1745 = vdwg.mxu0
        %1746 = vmatprep.subr.mxu0 %v1612
        %1747 = vmatpush1.msra.mxu0 %v1611
        %1748 = vmatprep.subr.mxu0 %v1616
        %1749 = vmatpush1.msra.mxu0 %v1615
        %1750 = vmatprep.subr.mxu0 %v1620
        %1751 = vmatpush1.msra.mxu0 %v1619
        %1752 = vmatprep.subr.mxu0 %v1624
        %1753 = vmatpush1.msra.mxu0 %v1623
        %1754 = vmatprep.subr.mxu0 %v1628
        %1755 = vmatpush1.msra.mxu0 %v1627
        %1756 = vmatprep.subr.mxu0 %v1632
        %1757 = vmatpush1.msra.mxu0 %v1631
        %1758 = vmatprep.subr.mxu0 %v1636
        %1759 = vmatpush1.msra.mxu0 %v1635
        %1760 = vmatprep.subr.mxu0 %v1640
        %1761 = vmatpush1.msra.mxu0 %v1639
        %1762 = vmatprep.subr.mxu0 %v1644
        %1763 = vmatpush1.msra.mxu0 %v1643
        %1764 = vmatprep.subr.mxu0 %v1648
        %1765 = vmatpush1.msra.mxu0 %v1647
        %1766 = vmatprep.subr.mxu0 %v1652
        %1767 = vmatpush1.msra.mxu0 %v1651
        %1768 = vmatprep.subr.mxu0 %v1656
        %1769 = vmatpush1.msra.mxu0 %v1655
        %1770 = vmatprep.subr.mxu0 %v1660
        %1771 = vmatpush1.msra.mxu0 %v1659
        %1772 = vmatprep.subr.mxu0 %v1664
        %1773 = vmatpush1.msra.mxu0 %v1663
        %1774 = vmatprep.subr.mxu0 %v1668
        %1775 = vmatpush1.msra.mxu0 %v1667
        %1776 = vmatprep.subr.mxu0 %v1672
        %1777 = vmatpush1.msra.mxu0 %v1671
        %1778 = vmatprep.subr.mxu0 0.0
        %1779 = vmatpush1.msra.mxu0 0.0
        %1780 = vmatprep.subr.mxu0 0.0
        %1781 = vmatpush1.msra.mxu0 0.0
        %1782 = vmatprep.subr.mxu0 0.0
        %1783 = vmatpush1.msra.mxu0 0.0
        %1784 = vmatprep.subr.mxu0 0.0
        %1785 = vmatpush1.msra.mxu0 0.0
        %1786 = vmatprep.subr.mxu0 0.0
        %1787 = vmatpush1.msra.mxu0 0.0
        %1788 = vmatprep.subr.mxu0 0.0
        %1789 = vmatpush1.msra.mxu0 0.0
        %1790 = vmatprep.subr.mxu0 0.0
        %1791 = vmatpush1.msra.mxu0 0.0
        %1792 = vmatprep.subr.mxu0 0.0
        %1793 = vmatpush1.msra.mxu0 0.0
        %1794 = vmatprep.subr.mxu0 0.0
        %1795 = vmatpush1.msra.mxu0 0.0
        %1796 = vmatprep.subr.mxu0 0.0
        %1797 = vmatpush1.msra.mxu0 0.0
        %1798 = vmatprep.subr.mxu0 0.0
        %1799 = vmatpush1.msra.mxu0 0.0
        %1800 = vmatprep.subr.mxu0 0.0
        %1801 = vmatpush1.msra.mxu0 0.0
        %1802 = vmatprep.subr.mxu0 0.0
        %1803 = vmatpush1.msra.mxu0 0.0
        %1804 = vmatprep.subr.mxu0 0.0
        %1805 = vmatpush1.msra.mxu0 0.0
        %1806 = vmatprep.subr.mxu0 0.0
        %1807 = vmatpush1.msra.mxu0 0.0
        %1808 = vmatprep.subr.mxu0 0.0
        %1809 = vmatpush1.msra.mxu0 0.0
        %1810 = vmatprep.mubr.f32.mxu0 0.0
        %1811 = vmatmul.mubr.f32.gmra.mrb[0].mxu0 %v1673
        %v1812 = vpop.f32.mrb[0].mxu0
        %v1813 = vadd.f32 0.0, %v1812
        %v1814 = vpop.f32.mrb[0].mxu0
        %v1815 = vadd.f32 0.0, %v1814
        %1816 = vdwg.mxu0
        %v1821 = vcombine.low %v1742, %v1744
        %v1822 = vcombine.low %v1813, %v1815
        %v1824 = vunpack.c.l.s4 1983009808
        %v1825 = vunpack.c.0.s8 %v1824
        %v1826 = vlaneseq
        %v1827 = vshrl.u32 %v1826, 7
        %v1828 = vsub.s32 %v1825, %v1827
        %v1829 = vrot.slane %v1821, %v1828
        %v1831 = vunpack.c.l.s4 1983009808
        %v1832 = vunpack.c.0.s8 %v1831
        %v1833 = vlaneseq
        %v1834 = vshrl.u32 %v1833, 7
        %v1835 = vsub.s32 %v1832, %v1834
        %v1836 = vrot.slane %v1822, %v1835
        %v1837 = vcombine.low %v1829, %v1836
        %v1839 = vadd.f32 %v1608, %v1837
        %v1840 = vld [vmem:[%s446 + $0x600] sm:$0xff]
        %v1841 = vld [vmem:[%s446 + $0x608] sm:$0xff]
        %v1842 = vld [vmem:[%s446 + $0x610] sm:$0xff]
        %v1843 = vld [vmem:[%s446 + $0x618] sm:$0xff]
        %v1844 = vld [vmem:[%s446 + $0x620] sm:$0xff]
        %v1845 = vld [vmem:[%s446 + $0x628] sm:$0xff]
        %v1846 = vld [vmem:[%s446 + $0x630] sm:$0xff]
        %v1847 = vld [vmem:[%s446 + $0x638] sm:$0xff]
        %v1848 = vld [vmem:[%s446 + $0x640] sm:$0xff]
        %v1849 = vld [vmem:[%s446 + $0x648] sm:$0xff]
        %v1850 = vld [vmem:[%s446 + $0x650] sm:$0xff]
        %v1851 = vld [vmem:[%s446 + $0x658] sm:$0xff]
        %v1852 = vld [vmem:[%s446 + $0x660] sm:$0xff]
        %v1853 = vld [vmem:[%s446 + $0x668] sm:$0xff]
        %v1854 = vld [vmem:[%s446 + $0x670] sm:$0xff]
        %v1855 = vld [vmem:[%s446 + $0x678] sm:$0xff]
        %v1856 = vld [vmem:[%s446 + $0x680] sm:$0xff]
        %v1857 = vld [vmem:[%s446 + $0x688] sm:$0xff]
        %v1858 = vld [vmem:[%s446 + $0x690] sm:$0xff]
        %v1859 = vld [vmem:[%s446 + $0x698] sm:$0xff]
        %v1860 = vld [vmem:[%s446 + $0x6a0] sm:$0xff]
        %v1861 = vld [vmem:[%s446 + $0x6a8] sm:$0xff]
        %v1862 = vld [vmem:[%s446 + $0x6b0] sm:$0xff]
        %v1863 = vld [vmem:[%s446 + $0x6b8] sm:$0xff]
        %v1864 = vld [vmem:[%s446 + $0x6c0] sm:$0xff]
        %v1865 = vld [vmem:[%s446 + $0x6c8] sm:$0xff]
        %v1866 = vld [vmem:[%s446 + $0x6d0] sm:$0xff]
        %v1867 = vld [vmem:[%s446 + $0x6d8] sm:$0xff]
        %v1868 = vld [vmem:[%s446 + $0x6e0] sm:$0xff]
        %v1869 = vld [vmem:[%s446 + $0x6e8] sm:$0xff]
        %v1870 = vld [vmem:[%s446 + $0x6f0] sm:$0xff]
        %v1871 = vld [vmem:[%s446 + $0x6f8] sm:$0xff]
        %v1872 = vld [vmem:[%s446 + $0x700] sm:$0xff]
        %v1873 = vld [vmem:[%s446 + $0x708] sm:$0xff]
        %v1874 = vld [vmem:[%s446 + $0x710] sm:$0xff]
        %v1875 = vld [vmem:[%s446 + $0x718] sm:$0xff]
        %v1876 = vld [vmem:[%s446 + $0x720] sm:$0xff]
        %v1877 = vld [vmem:[%s446 + $0x728] sm:$0xff]
        %v1878 = vld [vmem:[%s446 + $0x730] sm:$0xff]
        %v1879 = vld [vmem:[%s446 + $0x738] sm:$0xff]
        %v1880 = vld [vmem:[%s446 + $0x740] sm:$0xff]
        %v1881 = vld [vmem:[%s446 + $0x748] sm:$0xff]
        %v1882 = vld [vmem:[%s446 + $0x750] sm:$0xff]
        %v1883 = vld [vmem:[%s446 + $0x758] sm:$0xff]
        %v1884 = vld [vmem:[%s446 + $0x760] sm:$0xff]
        %v1885 = vld [vmem:[%s446 + $0x768] sm:$0xff]
        %v1886 = vld [vmem:[%s446 + $0x770] sm:$0xff]
        %v1887 = vld [vmem:[%s446 + $0x778] sm:$0xff]
        %v1888 = vld [vmem:[%s446 + $0x780] sm:$0xff]
        %v1889 = vld [vmem:[%s446 + $0x788] sm:$0xff]
        %v1890 = vld [vmem:[%s446 + $0x790] sm:$0xff]
        %v1891 = vld [vmem:[%s446 + $0x798] sm:$0xff]
        %v1892 = vld [vmem:[%s446 + $0x7a0] sm:$0xff]
        %v1893 = vld [vmem:[%s446 + $0x7a8] sm:$0xff]
        %v1894 = vld [vmem:[%s446 + $0x7b0] sm:$0xff]
        %v1895 = vld [vmem:[%s446 + $0x7b8] sm:$0xff]
        %v1896 = vld [vmem:[%s446 + $0x7c0] sm:$0xff]
        %v1897 = vld [vmem:[%s446 + $0x7c8] sm:$0xff]
        %v1898 = vld [vmem:[%s446 + $0x7d0] sm:$0xff]
        %v1899 = vld [vmem:[%s446 + $0x7d8] sm:$0xff]
        %v1900 = vld [vmem:[%s446 + $0x7e0] sm:$0xff]
        %v1901 = vld [vmem:[%s446 + $0x7e8] sm:$0xff]
        %v1902 = vld [vmem:[%s446 + $0x7f0] sm:$0xff]
        %v1903 = vld [vmem:[%s446 + $0x7f8] sm:$0xff]
        %v1904 = vrot.slane %v1143, 6
        %1906 = vmatprep.subr.mxu0 %v1841
        %1907 = vmatpush1.msra.mxu0 %v1840
        %1908 = vmatprep.subr.mxu0 %v1845
        %1909 = vmatpush1.msra.mxu0 %v1844
        %1910 = vmatprep.subr.mxu0 %v1849
        %1911 = vmatpush1.msra.mxu0 %v1848
        %1912 = vmatprep.subr.mxu0 %v1853
        %1913 = vmatpush1.msra.mxu0 %v1852
        %1914 = vmatprep.subr.mxu0 %v1857
        %1915 = vmatpush1.msra.mxu0 %v1856
        %1916 = vmatprep.subr.mxu0 %v1861
        %1917 = vmatpush1.msra.mxu0 %v1860
        %1918 = vmatprep.subr.mxu0 %v1865
        %1919 = vmatpush1.msra.mxu0 %v1864
        %1920 = vmatprep.subr.mxu0 %v1869
        %1921 = vmatpush1.msra.mxu0 %v1868
        %1922 = vmatprep.subr.mxu0 %v1873
        %1923 = vmatpush1.msra.mxu0 %v1872
        %1924 = vmatprep.subr.mxu0 %v1877
        %1925 = vmatpush1.msra.mxu0 %v1876
        %1926 = vmatprep.subr.mxu0 %v1881
        %1927 = vmatpush1.msra.mxu0 %v1880
        %1928 = vmatprep.subr.mxu0 %v1885
        %1929 = vmatpush1.msra.mxu0 %v1884
        %1930 = vmatprep.subr.mxu0 %v1889
        %1931 = vmatpush1.msra.mxu0 %v1888
        %1932 = vmatprep.subr.mxu0 %v1893
        %1933 = vmatpush1.msra.mxu0 %v1892
        %1934 = vmatprep.subr.mxu0 %v1897
        %1935 = vmatpush1.msra.mxu0 %v1896
        %1936 = vmatprep.subr.mxu0 %v1901
        %1937 = vmatpush1.msra.mxu0 %v1900
        %1938 = vmatprep.subr.mxu0 0.0
        %1939 = vmatpush1.msra.mxu0 0.0
        %1940 = vmatprep.subr.mxu0 0.0
        %1941 = vmatpush1.msra.mxu0 0.0
        %1942 = vmatprep.subr.mxu0 0.0
        %1943 = vmatpush1.msra.mxu0 0.0
        %1944 = vmatprep.subr.mxu0 0.0
        %1945 = vmatpush1.msra.mxu0 0.0
        %1946 = vmatprep.subr.mxu0 0.0
        %1947 = vmatpush1.msra.mxu0 0.0
        %1948 = vmatprep.subr.mxu0 0.0
        %1949 = vmatpush1.msra.mxu0 0.0
        %1950 = vmatprep.subr.mxu0 0.0
        %1951 = vmatpush1.msra.mxu0 0.0
        %1952 = vmatprep.subr.mxu0 0.0
        %1953 = vmatpush1.msra.mxu0 0.0
        %1954 = vmatprep.subr.mxu0 0.0
        %1955 = vmatpush1.msra.mxu0 0.0
        %1956 = vmatprep.subr.mxu0 0.0
        %1957 = vmatpush1.msra.mxu0 0.0
        %1958 = vmatprep.subr.mxu0 0.0
        %1959 = vmatpush1.msra.mxu0 0.0
        %1960 = vmatprep.subr.mxu0 0.0
        %1961 = vmatpush1.msra.mxu0 0.0
        %1962 = vmatprep.subr.mxu0 0.0
        %1963 = vmatpush1.msra.mxu0 0.0
        %1964 = vmatprep.subr.mxu0 0.0
        %1965 = vmatpush1.msra.mxu0 0.0
        %1966 = vmatprep.subr.mxu0 0.0
        %1967 = vmatpush1.msra.mxu0 0.0
        %1968 = vmatprep.subr.mxu0 0.0
        %1969 = vmatpush1.msra.mxu0 0.0
        %1970 = vmatprep.mubr.f32.mxu0 0.0
        %1971 = vmatmul.mubr.f32.gmra.mrb[0].mxu0 %v1904
        %v1972 = vpop.f32.mrb[0].mxu0
        %v1973 = vadd.f32 0.0, %v1972
        %v1974 = vpop.f32.mrb[0].mxu0
        %v1975 = vadd.f32 0.0, %v1974
        %1976 = vdwg.mxu0
        %1977 = vmatprep.subr.mxu0 %v1843
        %1978 = vmatpush1.msra.mxu0 %v1842
        %1979 = vmatprep.subr.mxu0 %v1847
        %1980 = vmatpush1.msra.mxu0 %v1846
        %1981 = vmatprep.subr.mxu0 %v1851
        %1982 = vmatpush1.msra.mxu0 %v1850
        %1983 = vmatprep.subr.mxu0 %v1855
        %1984 = vmatpush1.msra.mxu0 %v1854
        %1985 = vmatprep.subr.mxu0 %v1859
        %1986 = vmatpush1.msra.mxu0 %v1858
        %1987 = vmatprep.subr.mxu0 %v1863
        %1988 = vmatpush1.msra.mxu0 %v1862
        %1989 = vmatprep.subr.mxu0 %v1867
        %1990 = vmatpush1.msra.mxu0 %v1866
        %1991 = vmatprep.subr.mxu0 %v1871
        %1992 = vmatpush1.msra.mxu0 %v1870
        %1993 = vmatprep.subr.mxu0 %v1875
        %1994 = vmatpush1.msra.mxu0 %v1874
        %1995 = vmatprep.subr.mxu0 %v1879
        %1996 = vmatpush1.msra.mxu0 %v1878
        %1997 = vmatprep.subr.mxu0 %v1883
        %1998 = vmatpush1.msra.mxu0 %v1882
        %1999 = vmatprep.subr.mxu0 %v1887
        %2000 = vmatpush1.msra.mxu0 %v1886
        %2001 = vmatprep.subr.mxu0 %v1891
        %2002 = vmatpush1.msra.mxu0 %v1890
        %2003 = vmatprep.subr.mxu0 %v1895
        %2004 = vmatpush1.msra.mxu0 %v1894
        %2005 = vmatprep.subr.mxu0 %v1899
        %2006 = vmatpush1.msra.mxu0 %v1898
        %2007 = vmatprep.subr.mxu0 %v1903
        %2008 = vmatpush1.msra.mxu0 %v1902
        %2009 = vmatprep.subr.mxu0 0.0
        %2010 = vmatpush1.msra.mxu0 0.0
        %2011 = vmatprep.subr.mxu0 0.0
        %2012 = vmatpush1.msra.mxu0 0.0
        %2013 = vmatprep.subr.mxu0 0.0
        %2014 = vmatpush1.msra.mxu0 0.0
        %2015 = vmatprep.subr.mxu0 0.0
        %2016 = vmatpush1.msra.mxu0 0.0
        %2017 = vmatprep.subr.mxu0 0.0
        %2018 = vmatpush1.msra.mxu0 0.0
        %2019 = vmatprep.subr.mxu0 0.0
        %2020 = vmatpush1.msra.mxu0 0.0
        %2021 = vmatprep.subr.mxu0 0.0
        %2022 = vmatpush1.msra.mxu0 0.0
        %2023 = vmatprep.subr.mxu0 0.0
        %2024 = vmatpush1.msra.mxu0 0.0
        %2025 = vmatprep.subr.mxu0 0.0
        %2026 = vmatpush1.msra.mxu0 0.0
        %2027 = vmatprep.subr.mxu0 0.0
        %2028 = vmatpush1.msra.mxu0 0.0
        %2029 = vmatprep.subr.mxu0 0.0
        %2030 = vmatpush1.msra.mxu0 0.0
        %2031 = vmatprep.subr.mxu0 0.0
        %2032 = vmatpush1.msra.mxu0 0.0
        %2033 = vmatprep.subr.mxu0 0.0
        %2034 = vmatpush1.msra.mxu0 0.0
        %2035 = vmatprep.subr.mxu0 0.0
        %2036 = vmatpush1.msra.mxu0 0.0
        %2037 = vmatprep.subr.mxu0 0.0
        %2038 = vmatpush1.msra.mxu0 0.0
        %2039 = vmatprep.subr.mxu0 0.0
        %2040 = vmatpush1.msra.mxu0 0.0
        %2041 = vmatprep.mubr.f32.mxu0 0.0
        %2042 = vmatmul.mubr.f32.gmra.mrb[0].mxu0 %v1904
        %v2043 = vpop.f32.mrb[0].mxu0
        %v2044 = vadd.f32 0.0, %v2043
        %v2045 = vpop.f32.mrb[0].mxu0
        %v2046 = vadd.f32 0.0, %v2045
        %2047 = vdwg.mxu0
        %v2052 = vcombine.low %v1973, %v1975
        %v2053 = vcombine.low %v2044, %v2046
        %v2055 = vunpack.c.l.s4 1983009808
        %v2056 = vunpack.c.0.s8 %v2055
        %v2057 = vlaneseq
        %v2058 = vshrl.u32 %v2057, 7
        %v2059 = vsub.s32 %v2056, %v2058
        %v2060 = vrot.slane %v2052, %v2059
        %v2062 = vunpack.c.l.s4 1983009808
        %v2063 = vunpack.c.0.s8 %v2062
        %v2064 = vlaneseq
        %v2065 = vshrl.u32 %v2064, 7
        %v2066 = vsub.s32 %v2063, %v2065
        %v2067 = vrot.slane %v2053, %v2066
        %v2068 = vcombine.low %v2060, %v2067
        %v2070 = vadd.f32 %v1839, %v2068
        %v2071 = vld [vmem:[%s446 + $0x800] sm:$0xff]
        %v2072 = vld [vmem:[%s446 + $0x808] sm:$0xff]
        %v2073 = vld [vmem:[%s446 + $0x810] sm:$0xff]
        %v2074 = vld [vmem:[%s446 + $0x818] sm:$0xff]
        %v2075 = vld [vmem:[%s446 + $0x820] sm:$0xff]
        %v2076 = vld [vmem:[%s446 + $0x828] sm:$0xff]
        %v2077 = vld [vmem:[%s446 + $0x830] sm:$0xff]
        %v2078 = vld [vmem:[%s446 + $0x838] sm:$0xff]
        %v2079 = vld [vmem:[%s446 + $0x840] sm:$0xff]
        %v2080 = vld [vmem:[%s446 + $0x848] sm:$0xff]
        %v2081 = vld [vmem:[%s446 + $0x850] sm:$0xff]
        %v2082 = vld [vmem:[%s446 + $0x858] sm:$0xff]
        %v2083 = vld [vmem:[%s446 + $0x860] sm:$0xff]
        %v2084 = vld [vmem:[%s446 + $0x868] sm:$0xff]
        %v2085 = vld [vmem:[%s446 + $0x870] sm:$0xff]
        %v2086 = vld [vmem:[%s446 + $0x878] sm:$0xff]
        %v2087 = vld [vmem:[%s446 + $0x880] sm:$0xff]
        %v2088 = vld [vmem:[%s446 + $0x888] sm:$0xff]
        %v2089 = vld [vmem:[%s446 + $0x890] sm:$0xff]
        %v2090 = vld [vmem:[%s446 + $0x898] sm:$0xff]
        %v2091 = vld [vmem:[%s446 + $0x8a0] sm:$0xff]
        %v2092 = vld [vmem:[%s446 + $0x8a8] sm:$0xff]
        %v2093 = vld [vmem:[%s446 + $0x8b0] sm:$0xff]
        %v2094 = vld [vmem:[%s446 + $0x8b8] sm:$0xff]
        %v2095 = vld [vmem:[%s446 + $0x8c0] sm:$0xff]
        %v2096 = vld [vmem:[%s446 + $0x8c8] sm:$0xff]
        %v2097 = vld [vmem:[%s446 + $0x8d0] sm:$0xff]
        %v2098 = vld [vmem:[%s446 + $0x8d8] sm:$0xff]
        %v2099 = vld [vmem:[%s446 + $0x8e0] sm:$0xff]
        %v2100 = vld [vmem:[%s446 + $0x8e8] sm:$0xff]
        %v2101 = vld [vmem:[%s446 + $0x8f0] sm:$0xff]
        %v2102 = vld [vmem:[%s446 + $0x8f8] sm:$0xff]
        %v2103 = vld [vmem:[%s446 + $0x900] sm:$0xff]
        %v2104 = vld [vmem:[%s446 + $0x908] sm:$0xff]
        %v2105 = vld [vmem:[%s446 + $0x910] sm:$0xff]
        %v2106 = vld [vmem:[%s446 + $0x918] sm:$0xff]
        %v2107 = vld [vmem:[%s446 + $0x920] sm:$0xff]
        %v2108 = vld [vmem:[%s446 + $0x928] sm:$0xff]
        %v2109 = vld [vmem:[%s446 + $0x930] sm:$0xff]
        %v2110 = vld [vmem:[%s446 + $0x938] sm:$0xff]
        %v2111 = vld [vmem:[%s446 + $0x940] sm:$0xff]
        %v2112 = vld [vmem:[%s446 + $0x948] sm:$0xff]
        %v2113 = vld [vmem:[%s446 + $0x950] sm:$0xff]
        %v2114 = vld [vmem:[%s446 + $0x958] sm:$0xff]
        %v2115 = vld [vmem:[%s446 + $0x960] sm:$0xff]
        %v2116 = vld [vmem:[%s446 + $0x968] sm:$0xff]
        %v2117 = vld [vmem:[%s446 + $0x970] sm:$0xff]
        %v2118 = vld [vmem:[%s446 + $0x978] sm:$0xff]
        %v2119 = vld [vmem:[%s446 + $0x980] sm:$0xff]
        %v2120 = vld [vmem:[%s446 + $0x988] sm:$0xff]
        %v2121 = vld [vmem:[%s446 + $0x990] sm:$0xff]
        %v2122 = vld [vmem:[%s446 + $0x998] sm:$0xff]
        %v2123 = vld [vmem:[%s446 + $0x9a0] sm:$0xff]
        %v2124 = vld [vmem:[%s446 + $0x9a8] sm:$0xff]
        %v2125 = vld [vmem:[%s446 + $0x9b0] sm:$0xff]
        %v2126 = vld [vmem:[%s446 + $0x9b8] sm:$0xff]
        %v2127 = vld [vmem:[%s446 + $0x9c0] sm:$0xff]
        %v2128 = vld [vmem:[%s446 + $0x9c8] sm:$0xff]
        %v2129 = vld [vmem:[%s446 + $0x9d0] sm:$0xff]
        %v2130 = vld [vmem:[%s446 + $0x9d8] sm:$0xff]
        %v2131 = vld [vmem:[%s446 + $0x9e0] sm:$0xff]
        %v2132 = vld [vmem:[%s446 + $0x9e8] sm:$0xff]
        %v2133 = vld [vmem:[%s446 + $0x9f0] sm:$0xff]
        %v2134 = vld [vmem:[%s446 + $0x9f8] sm:$0xff]
        %2135 = vmatprep.subr.mxu0 %v2072
        %2136 = vmatpush1.msra.mxu0 %v2071
        %2137 = vmatprep.subr.mxu0 %v2076
        %2138 = vmatpush1.msra.mxu0 %v2075
        %2139 = vmatprep.subr.mxu0 %v2080
        %2140 = vmatpush1.msra.mxu0 %v2079
        %2141 = vmatprep.subr.mxu0 %v2084
        %2142 = vmatpush1.msra.mxu0 %v2083
        %2143 = vmatprep.subr.mxu0 %v2088
        %2144 = vmatpush1.msra.mxu0 %v2087
        %2145 = vmatprep.subr.mxu0 %v2092
        %2146 = vmatpush1.msra.mxu0 %v2091
        %2147 = vmatprep.subr.mxu0 %v2096
        %2148 = vmatpush1.msra.mxu0 %v2095
        %2149 = vmatprep.subr.mxu0 %v2100
        %2150 = vmatpush1.msra.mxu0 %v2099
        %2151 = vmatprep.subr.mxu0 %v2104
        %2152 = vmatpush1.msra.mxu0 %v2103
        %2153 = vmatprep.subr.mxu0 %v2108
        %2154 = vmatpush1.msra.mxu0 %v2107
        %2155 = vmatprep.subr.mxu0 %v2112
        %2156 = vmatpush1.msra.mxu0 %v2111
        %2157 = vmatprep.subr.mxu0 %v2116
        %2158 = vmatpush1.msra.mxu0 %v2115
        %2159 = vmatprep.subr.mxu0 %v2120
        %2160 = vmatpush1.msra.mxu0 %v2119
        %2161 = vmatprep.subr.mxu0 %v2124
        %2162 = vmatpush1.msra.mxu0 %v2123
        %2163 = vmatprep.subr.mxu0 %v2128
        %2164 = vmatpush1.msra.mxu0 %v2127
        %2165 = vmatprep.subr.mxu0 %v2132
        %2166 = vmatpush1.msra.mxu0 %v2131
        %2167 = vmatprep.subr.mxu0 0.0
        %2168 = vmatpush1.msra.mxu0 0.0
        %2169 = vmatprep.subr.mxu0 0.0
        %2170 = vmatpush1.msra.mxu0 0.0
        %2171 = vmatprep.subr.mxu0 0.0
        %2172 = vmatpush1.msra.mxu0 0.0
        %2173 = vmatprep.subr.mxu0 0.0
        %2174 = vmatpush1.msra.mxu0 0.0
        %2175 = vmatprep.subr.mxu0 0.0
        %2176 = vmatpush1.msra.mxu0 0.0
        %2177 = vmatprep.subr.mxu0 0.0
        %2178 = vmatpush1.msra.mxu0 0.0
        %2179 = vmatprep.subr.mxu0 0.0
        %2180 = vmatpush1.msra.mxu0 0.0
        %2181 = vmatprep.subr.mxu0 0.0
        %2182 = vmatpush1.msra.mxu0 0.0
        %2183 = vmatprep.subr.mxu0 0.0
        %2184 = vmatpush1.msra.mxu0 0.0
        %2185 = vmatprep.subr.mxu0 0.0
        %2186 = vmatpush1.msra.mxu0 0.0
        %2187 = vmatprep.subr.mxu0 0.0
        %2188 = vmatpush1.msra.mxu0 0.0
        %2189 = vmatprep.subr.mxu0 0.0
        %2190 = vmatpush1.msra.mxu0 0.0
        %2191 = vmatprep.subr.mxu0 0.0
        %2192 = vmatpush1.msra.mxu0 0.0
        %2193 = vmatprep.subr.mxu0 0.0
        %2194 = vmatpush1.msra.mxu0 0.0
        %2195 = vmatprep.subr.mxu0 0.0
        %2196 = vmatpush1.msra.mxu0 0.0
        %2197 = vmatprep.subr.mxu0 0.0
        %2198 = vmatpush1.msra.mxu0 0.0
        %2199 = vmatprep.mubr.f32.mxu0 0.0
        %2200 = vmatmul.mubr.f32.gmra.mrb[0].mxu0 %v1144
        %v2201 = vpop.f32.mrb[0].mxu0
        %v2202 = vadd.f32 0.0, %v2201
        %v2203 = vpop.f32.mrb[0].mxu0
        %v2204 = vadd.f32 0.0, %v2203
        %2205 = vdwg.mxu0
        %2206 = vmatprep.subr.mxu0 %v2074
        %2207 = vmatpush1.msra.mxu0 %v2073
        %2208 = vmatprep.subr.mxu0 %v2078
        %2209 = vmatpush1.msra.mxu0 %v2077
        %2210 = vmatprep.subr.mxu0 %v2082
        %2211 = vmatpush1.msra.mxu0 %v2081
        %2212 = vmatprep.subr.mxu0 %v2086
        %2213 = vmatpush1.msra.mxu0 %v2085
        %2214 = vmatprep.subr.mxu0 %v2090
        %2215 = vmatpush1.msra.mxu0 %v2089
        %2216 = vmatprep.subr.mxu0 %v2094
        %2217 = vmatpush1.msra.mxu0 %v2093
        %2218 = vmatprep.subr.mxu0 %v2098
        %2219 = vmatpush1.msra.mxu0 %v2097
        %2220 = vmatprep.subr.mxu0 %v2102
        %2221 = vmatpush1.msra.mxu0 %v2101
        %2222 = vmatprep.subr.mxu0 %v2106
        %2223 = vmatpush1.msra.mxu0 %v2105
        %2224 = vmatprep.subr.mxu0 %v2110
        %2225 = vmatpush1.msra.mxu0 %v2109
        %2226 = vmatprep.subr.mxu0 %v2114
        %2227 = vmatpush1.msra.mxu0 %v2113
        %2228 = vmatprep.subr.mxu0 %v2118
        %2229 = vmatpush1.msra.mxu0 %v2117
        %2230 = vmatprep.subr.mxu0 %v2122
        %2231 = vmatpush1.msra.mxu0 %v2121
        %2232 = vmatprep.subr.mxu0 %v2126
        %2233 = vmatpush1.msra.mxu0 %v2125
        %2234 = vmatprep.subr.mxu0 %v2130
        %2235 = vmatpush1.msra.mxu0 %v2129
        %2236 = vmatprep.subr.mxu0 %v2134
        %2237 = vmatpush1.msra.mxu0 %v2133
        %2238 = vmatprep.subr.mxu0 0.0
        %2239 = vmatpush1.msra.mxu0 0.0
        %2240 = vmatprep.subr.mxu0 0.0
        %2241 = vmatpush1.msra.mxu0 0.0
        %2242 = vmatprep.subr.mxu0 0.0
        %2243 = vmatpush1.msra.mxu0 0.0
        %2244 = vmatprep.subr.mxu0 0.0
        %2245 = vmatpush1.msra.mxu0 0.0
        %2246 = vmatprep.subr.mxu0 0.0
        %2247 = vmatpush1.msra.mxu0 0.0
        %2248 = vmatprep.subr.mxu0 0.0
        %2249 = vmatpush1.msra.mxu0 0.0
        %2250 = vmatprep.subr.mxu0 0.0
        %2251 = vmatpush1.msra.mxu0 0.0
        %2252 = vmatprep.subr.mxu0 0.0
        %2253 = vmatpush1.msra.mxu0 0.0
        %2254 = vmatprep.subr.mxu0 0.0
        %2255 = vmatpush1.msra.mxu0 0.0
        %2256 = vmatprep.subr.mxu0 0.0
        %2257 = vmatpush1.msra.mxu0 0.0
        %2258 = vmatprep.subr.mxu0 0.0
        %2259 = vmatpush1.msra.mxu0 0.0
        %2260 = vmatprep.subr.mxu0 0.0
        %2261 = vmatpush1.msra.mxu0 0.0
        %2262 = vmatprep.subr.mxu0 0.0
        %2263 = vmatpush1.msra.mxu0 0.0
        %2264 = vmatprep.subr.mxu0 0.0
        %2265 = vmatpush1.msra.mxu0 0.0
        %2266 = vmatprep.subr.mxu0 0.0
        %2267 = vmatpush1.msra.mxu0 0.0
        %2268 = vmatprep.subr.mxu0 0.0
        %2269 = vmatpush1.msra.mxu0 0.0
        %2270 = vmatprep.mubr.f32.mxu0 0.0
        %2271 = vmatmul.mubr.f32.gmra.mrb[0].mxu0 %v1144
        %v2272 = vpop.f32.mrb[0].mxu0
        %v2273 = vadd.f32 0.0, %v2272
        %v2274 = vpop.f32.mrb[0].mxu0
        %v2275 = vadd.f32 0.0, %v2274
        %2276 = vdwg.mxu0
        %v2281 = vcombine.low %v2202, %v2204
        %v2282 = vcombine.low %v2273, %v2275
        %v2284 = vunpack.c.l.s4 1983009808
        %v2285 = vunpack.c.0.s8 %v2284
        %v2286 = vlaneseq
        %v2287 = vshrl.u32 %v2286, 7
        %v2288 = vsub.s32 %v2285, %v2287
        %v2289 = vrot.slane %v2281, %v2288
        %v2291 = vunpack.c.l.s4 1983009808
        %v2292 = vunpack.c.0.s8 %v2291
        %v2293 = vlaneseq
        %v2294 = vshrl.u32 %v2293, 7
        %v2295 = vsub.s32 %v2292, %v2294
        %v2296 = vrot.slane %v2282, %v2295
        %v2297 = vcombine.low %v2289, %v2296
        %v2299 = vadd.f32 %v2070, %v2297
        %v2300 = vld [vmem:[%s446 + $0xa00] sm:$0xff]
        %v2301 = vld [vmem:[%s446 + $0xa08] sm:$0xff]
        %v2302 = vld [vmem:[%s446 + $0xa10] sm:$0xff]
        %v2303 = vld [vmem:[%s446 + $0xa18] sm:$0xff]
        %v2304 = vld [vmem:[%s446 + $0xa20] sm:$0xff]
        %v2305 = vld [vmem:[%s446 + $0xa28] sm:$0xff]
        %v2306 = vld [vmem:[%s446 + $0xa30] sm:$0xff]
        %v2307 = vld [vmem:[%s446 + $0xa38] sm:$0xff]
        %v2308 = vld [vmem:[%s446 + $0xa40] sm:$0xff]
        %v2309 = vld [vmem:[%s446 + $0xa48] sm:$0xff]
        %v2310 = vld [vmem:[%s446 + $0xa50] sm:$0xff]
        %v2311 = vld [vmem:[%s446 + $0xa58] sm:$0xff]
        %v2312 = vld [vmem:[%s446 + $0xa60] sm:$0xff]
        %v2313 = vld [vmem:[%s446 + $0xa68] sm:$0xff]
        %v2314 = vld [vmem:[%s446 + $0xa70] sm:$0xff]
        %v2315 = vld [vmem:[%s446 + $0xa78] sm:$0xff]
        %v2316 = vld [vmem:[%s446 + $0xa80] sm:$0xff]
        %v2317 = vld [vmem:[%s446 + $0xa88] sm:$0xff]
        %v2318 = vld [vmem:[%s446 + $0xa90] sm:$0xff]
        %v2319 = vld [vmem:[%s446 + $0xa98] sm:$0xff]
        %v2320 = vld [vmem:[%s446 + $0xaa0] sm:$0xff]
        %v2321 = vld [vmem:[%s446 + $0xaa8] sm:$0xff]
        %v2322 = vld [vmem:[%s446 + $0xab0] sm:$0xff]
        %v2323 = vld [vmem:[%s446 + $0xab8] sm:$0xff]
        %v2324 = vld [vmem:[%s446 + $0xac0] sm:$0xff]
        %v2325 = vld [vmem:[%s446 + $0xac8] sm:$0xff]
        %v2326 = vld [vmem:[%s446 + $0xad0] sm:$0xff]
        %v2327 = vld [vmem:[%s446 + $0xad8] sm:$0xff]
        %v2328 = vld [vmem:[%s446 + $0xae0] sm:$0xff]
        %v2329 = vld [vmem:[%s446 + $0xae8] sm:$0xff]
        %v2330 = vld [vmem:[%s446 + $0xaf0] sm:$0xff]
        %v2331 = vld [vmem:[%s446 + $0xaf8] sm:$0xff]
        %v2332 = vld [vmem:[%s446 + $0xb00] sm:$0xff]
        %v2333 = vld [vmem:[%s446 + $0xb08] sm:$0xff]
        %v2334 = vld [vmem:[%s446 + $0xb10] sm:$0xff]
        %v2335 = vld [vmem:[%s446 + $0xb18] sm:$0xff]
        %v2336 = vld [vmem:[%s446 + $0xb20] sm:$0xff]
        %v2337 = vld [vmem:[%s446 + $0xb28] sm:$0xff]
        %v2338 = vld [vmem:[%s446 + $0xb30] sm:$0xff]
        %v2339 = vld [vmem:[%s446 + $0xb38] sm:$0xff]
        %v2340 = vld [vmem:[%s446 + $0xb40] sm:$0xff]
        %v2341 = vld [vmem:[%s446 + $0xb48] sm:$0xff]
        %v2342 = vld [vmem:[%s446 + $0xb50] sm:$0xff]
        %v2343 = vld [vmem:[%s446 + $0xb58] sm:$0xff]
        %v2344 = vld [vmem:[%s446 + $0xb60] sm:$0xff]
        %v2345 = vld [vmem:[%s446 + $0xb68] sm:$0xff]
        %v2346 = vld [vmem:[%s446 + $0xb70] sm:$0xff]
        %v2347 = vld [vmem:[%s446 + $0xb78] sm:$0xff]
        %v2348 = vld [vmem:[%s446 + $0xb80] sm:$0xff]
        %v2349 = vld [vmem:[%s446 + $0xb88] sm:$0xff]
        %v2350 = vld [vmem:[%s446 + $0xb90] sm:$0xff]
        %v2351 = vld [vmem:[%s446 + $0xb98] sm:$0xff]
        %v2352 = vld [vmem:[%s446 + $0xba0] sm:$0xff]
        %v2353 = vld [vmem:[%s446 + $0xba8] sm:$0xff]
        %v2354 = vld [vmem:[%s446 + $0xbb0] sm:$0xff]
        %v2355 = vld [vmem:[%s446 + $0xbb8] sm:$0xff]
        %v2356 = vld [vmem:[%s446 + $0xbc0] sm:$0xff]
        %v2357 = vld [vmem:[%s446 + $0xbc8] sm:$0xff]
        %v2358 = vld [vmem:[%s446 + $0xbd0] sm:$0xff]
        %v2359 = vld [vmem:[%s446 + $0xbd8] sm:$0xff]
        %v2360 = vld [vmem:[%s446 + $0xbe0] sm:$0xff]
        %v2361 = vld [vmem:[%s446 + $0xbe8] sm:$0xff]
        %v2362 = vld [vmem:[%s446 + $0xbf0] sm:$0xff]
        %v2363 = vld [vmem:[%s446 + $0xbf8] sm:$0xff]
        %v2365 = vrot.slane %v1144, 2
        %2367 = vmatprep.subr.mxu0 %v2301
        %2368 = vmatpush1.msra.mxu0 %v2300
        %2369 = vmatprep.subr.mxu0 %v2305
        %2370 = vmatpush1.msra.mxu0 %v2304
        %2371 = vmatprep.subr.mxu0 %v2309
        %2372 = vmatpush1.msra.mxu0 %v2308
        %2373 = vmatprep.subr.mxu0 %v2313
        %2374 = vmatpush1.msra.mxu0 %v2312
        %2375 = vmatprep.subr.mxu0 %v2317
        %2376 = vmatpush1.msra.mxu0 %v2316
        %2377 = vmatprep.subr.mxu0 %v2321
        %2378 = vmatpush1.msra.mxu0 %v2320
        %2379 = vmatprep.subr.mxu0 %v2325
        %2380 = vmatpush1.msra.mxu0 %v2324
        %2381 = vmatprep.subr.mxu0 %v2329
        %2382 = vmatpush1.msra.mxu0 %v2328
        %2383 = vmatprep.subr.mxu0 %v2333
        %2384 = vmatpush1.msra.mxu0 %v2332
        %2385 = vmatprep.subr.mxu0 %v2337
        %2386 = vmatpush1.msra.mxu0 %v2336
        %2387 = vmatprep.subr.mxu0 %v2341
        %2388 = vmatpush1.msra.mxu0 %v2340
        %2389 = vmatprep.subr.mxu0 %v2345
        %2390 = vmatpush1.msra.mxu0 %v2344
        %2391 = vmatprep.subr.mxu0 %v2349
        %2392 = vmatpush1.msra.mxu0 %v2348
        %2393 = vmatprep.subr.mxu0 %v2353
        %2394 = vmatpush1.msra.mxu0 %v2352
        %2395 = vmatprep.subr.mxu0 %v2357
        %2396 = vmatpush1.msra.mxu0 %v2356
        %2397 = vmatprep.subr.mxu0 %v2361
        %2398 = vmatpush1.msra.mxu0 %v2360
        %2399 = vmatprep.subr.mxu0 0.0
        %2400 = vmatpush1.msra.mxu0 0.0
        %2401 = vmatprep.subr.mxu0 0.0
        %2402 = vmatpush1.msra.mxu0 0.0
        %2403 = vmatprep.subr.mxu0 0.0
        %2404 = vmatpush1.msra.mxu0 0.0
        %2405 = vmatprep.subr.mxu0 0.0
        %2406 = vmatpush1.msra.mxu0 0.0
        %2407 = vmatprep.subr.mxu0 0.0
        %2408 = vmatpush1.msra.mxu0 0.0
        %2409 = vmatprep.subr.mxu0 0.0
        %2410 = vmatpush1.msra.mxu0 0.0
        %2411 = vmatprep.subr.mxu0 0.0
        %2412 = vmatpush1.msra.mxu0 0.0
        %2413 = vmatprep.subr.mxu0 0.0
        %2414 = vmatpush1.msra.mxu0 0.0
        %2415 = vmatprep.subr.mxu0 0.0
        %2416 = vmatpush1.msra.mxu0 0.0
        %2417 = vmatprep.subr.mxu0 0.0
        %2418 = vmatpush1.msra.mxu0 0.0
        %2419 = vmatprep.subr.mxu0 0.0
        %2420 = vmatpush1.msra.mxu0 0.0
        %2421 = vmatprep.subr.mxu0 0.0
        %2422 = vmatpush1.msra.mxu0 0.0
        %2423 = vmatprep.subr.mxu0 0.0
        %2424 = vmatpush1.msra.mxu0 0.0
        %2425 = vmatprep.subr.mxu0 0.0
        %2426 = vmatpush1.msra.mxu0 0.0
        %2427 = vmatprep.subr.mxu0 0.0
        %2428 = vmatpush1.msra.mxu0 0.0
        %2429 = vmatprep.subr.mxu0 0.0
        %2430 = vmatpush1.msra.mxu0 0.0
        %2431 = vmatprep.mubr.f32.mxu0 0.0
        %2432 = vmatmul.mubr.f32.gmra.mrb[0].mxu0 %v2365
        %v2433 = vpop.f32.mrb[0].mxu0
        %v2434 = vadd.f32 0.0, %v2433
        %v2435 = vpop.f32.mrb[0].mxu0
        %v2436 = vadd.f32 0.0, %v2435
        %2437 = vdwg.mxu0
        %2438 = vmatprep.subr.mxu0 %v2303
        %2439 = vmatpush1.msra.mxu0 %v2302
        %2440 = vmatprep.subr.mxu0 %v2307
        %2441 = vmatpush1.msra.mxu0 %v2306
        %2442 = vmatprep.subr.mxu0 %v2311
        %2443 = vmatpush1.msra.mxu0 %v2310
        %2444 = vmatprep.subr.mxu0 %v2315
        %2445 = vmatpush1.msra.mxu0 %v2314
        %2446 = vmatprep.subr.mxu0 %v2319
        %2447 = vmatpush1.msra.mxu0 %v2318
        %2448 = vmatprep.subr.mxu0 %v2323
        %2449 = vmatpush1.msra.mxu0 %v2322
        %2450 = vmatprep.subr.mxu0 %v2327
        %2451 = vmatpush1.msra.mxu0 %v2326
        %2452 = vmatprep.subr.mxu0 %v2331
        %2453 = vmatpush1.msra.mxu0 %v2330
        %2454 = vmatprep.subr.mxu0 %v2335
        %2455 = vmatpush1.msra.mxu0 %v2334
        %2456 = vmatprep.subr.mxu0 %v2339
        %2457 = vmatpush1.msra.mxu0 %v2338
        %2458 = vmatprep.subr.mxu0 %v2343
        %2459 = vmatpush1.msra.mxu0 %v2342
        %2460 = vmatprep.subr.mxu0 %v2347
        %2461 = vmatpush1.msra.mxu0 %v2346
        %2462 = vmatprep.subr.mxu0 %v2351
        %2463 = vmatpush1.msra.mxu0 %v2350
        %2464 = vmatprep.subr.mxu0 %v2355
        %2465 = vmatpush1.msra.mxu0 %v2354
        %2466 = vmatprep.subr.mxu0 %v2359
        %2467 = vmatpush1.msra.mxu0 %v2358
        %2468 = vmatprep.subr.mxu0 %v2363
        %2469 = vmatpush1.msra.mxu0 %v2362
        %2470 = vmatprep.subr.mxu0 0.0
        %2471 = vmatpush1.msra.mxu0 0.0
        %2472 = vmatprep.subr.mxu0 0.0
        %2473 = vmatpush1.msra.mxu0 0.0
        %2474 = vmatprep.subr.mxu0 0.0
        %2475 = vmatpush1.msra.mxu0 0.0
        %2476 = vmatprep.subr.mxu0 0.0
        %2477 = vmatpush1.msra.mxu0 0.0
        %2478 = vmatprep.subr.mxu0 0.0
        %2479 = vmatpush1.msra.mxu0 0.0
        %2480 = vmatprep.subr.mxu0 0.0
        %2481 = vmatpush1.msra.mxu0 0.0
        %2482 = vmatprep.subr.mxu0 0.0
        %2483 = vmatpush1.msra.mxu0 0.0
        %2484 = vmatprep.subr.mxu0 0.0
        %2485 = vmatpush1.msra.mxu0 0.0
        %2486 = vmatprep.subr.mxu0 0.0
        %2487 = vmatpush1.msra.mxu0 0.0
        %2488 = vmatprep.subr.mxu0 0.0
        %2489 = vmatpush1.msra.mxu0 0.0
        %2490 = vmatprep.subr.mxu0 0.0
        %2491 = vmatpush1.msra.mxu0 0.0
        %2492 = vmatprep.subr.mxu0 0.0
        %2493 = vmatpush1.msra.mxu0 0.0
        %2494 = vmatprep.subr.mxu0 0.0
        %2495 = vmatpush1.msra.mxu0 0.0
        %2496 = vmatprep.subr.mxu0 0.0
        %2497 = vmatpush1.msra.mxu0 0.0
        %2498 = vmatprep.subr.mxu0 0.0
        %2499 = vmatpush1.msra.mxu0 0.0
        %2500 = vmatprep.subr.mxu0 0.0
        %2501 = vmatpush1.msra.mxu0 0.0
        %2502 = vmatprep.mubr.f32.mxu0 0.0
        %2503 = vmatmul.mubr.f32.gmra.mrb[0].mxu0 %v2365
        %v2504 = vpop.f32.mrb[0].mxu0
        %v2505 = vadd.f32 0.0, %v2504
        %v2506 = vpop.f32.mrb[0].mxu0
        %v2507 = vadd.f32 0.0, %v2506
        %2508 = vdwg.mxu0
        %v2513 = vcombine.low %v2434, %v2436
        %v2514 = vcombine.low %v2505, %v2507
        %v2516 = vunpack.c.l.s4 1983009808
        %v2517 = vunpack.c.0.s8 %v2516
        %v2518 = vlaneseq
        %v2519 = vshrl.u32 %v2518, 7
        %v2520 = vsub.s32 %v2517, %v2519
        %v2521 = vrot.slane %v2513, %v2520
        %v2523 = vunpack.c.l.s4 1983009808
        %v2524 = vunpack.c.0.s8 %v2523
        %v2525 = vlaneseq
        %v2526 = vshrl.u32 %v2525, 7
        %v2527 = vsub.s32 %v2524, %v2526
        %v2528 = vrot.slane %v2514, %v2527
        %v2529 = vcombine.low %v2521, %v2528
        %v2531 = vadd.f32 %v2299, %v2529
        %v2532 = vld [vmem:[%s446 + $0xc00] sm:$0xff]
        %v2533 = vld [vmem:[%s446 + $0xc08] sm:$0xff]
        %v2534 = vld [vmem:[%s446 + $0xc10] sm:$0xff]
        %v2535 = vld [vmem:[%s446 + $0xc18] sm:$0xff]
        %v2536 = vld [vmem:[%s446 + $0xc20] sm:$0xff]
        %v2537 = vld [vmem:[%s446 + $0xc28] sm:$0xff]
        %v2538 = vld [vmem:[%s446 + $0xc30] sm:$0xff]
        %v2539 = vld [vmem:[%s446 + $0xc38] sm:$0xff]
        %v2540 = vld [vmem:[%s446 + $0xc40] sm:$0xff]
        %v2541 = vld [vmem:[%s446 + $0xc48] sm:$0xff]
        %v2542 = vld [vmem:[%s446 + $0xc50] sm:$0xff]
        %v2543 = vld [vmem:[%s446 + $0xc58] sm:$0xff]
        %v2544 = vld [vmem:[%s446 + $0xc60] sm:$0xff]
        %v2545 = vld [vmem:[%s446 + $0xc68] sm:$0xff]
        %v2546 = vld [vmem:[%s446 + $0xc70] sm:$0xff]
        %v2547 = vld [vmem:[%s446 + $0xc78] sm:$0xff]
        %v2548 = vld [vmem:[%s446 + $0xc80] sm:$0xff]
        %v2549 = vld [vmem:[%s446 + $0xc88] sm:$0xff]
        %v2550 = vld [vmem:[%s446 + $0xc90] sm:$0xff]
        %v2551 = vld [vmem:[%s446 + $0xc98] sm:$0xff]
        %v2552 = vld [vmem:[%s446 + $0xca0] sm:$0xff]
        %v2553 = vld [vmem:[%s446 + $0xca8] sm:$0xff]
        %v2554 = vld [vmem:[%s446 + $0xcb0] sm:$0xff]
        %v2555 = vld [vmem:[%s446 + $0xcb8] sm:$0xff]
        %v2556 = vld [vmem:[%s446 + $0xcc0] sm:$0xff]
        %v2557 = vld [vmem:[%s446 + $0xcc8] sm:$0xff]
        %v2558 = vld [vmem:[%s446 + $0xcd0] sm:$0xff]
        %v2559 = vld [vmem:[%s446 + $0xcd8] sm:$0xff]
        %v2560 = vld [vmem:[%s446 + $0xce0] sm:$0xff]
        %v2561 = vld [vmem:[%s446 + $0xce8] sm:$0xff]
        %v2562 = vld [vmem:[%s446 + $0xcf0] sm:$0xff]
        %v2563 = vld [vmem:[%s446 + $0xcf8] sm:$0xff]
        %v2564 = vld [vmem:[%s446 + $0xd00] sm:$0xff]
        %v2565 = vld [vmem:[%s446 + $0xd08] sm:$0xff]
        %v2566 = vld [vmem:[%s446 + $0xd10] sm:$0xff]
        %v2567 = vld [vmem:[%s446 + $0xd18] sm:$0xff]
        %v2568 = vld [vmem:[%s446 + $0xd20] sm:$0xff]
        %v2569 = vld [vmem:[%s446 + $0xd28] sm:$0xff]
        %v2570 = vld [vmem:[%s446 + $0xd30] sm:$0xff]
        %v2571 = vld [vmem:[%s446 + $0xd38] sm:$0xff]
        %v2572 = vld [vmem:[%s446 + $0xd40] sm:$0xff]
        %v2573 = vld [vmem:[%s446 + $0xd48] sm:$0xff]
        %v2574 = vld [vmem:[%s446 + $0xd50] sm:$0xff]
        %v2575 = vld [vmem:[%s446 + $0xd58] sm:$0xff]
        %v2576 = vld [vmem:[%s446 + $0xd60] sm:$0xff]
        %v2577 = vld [vmem:[%s446 + $0xd68] sm:$0xff]
        %v2578 = vld [vmem:[%s446 + $0xd70] sm:$0xff]
        %v2579 = vld [vmem:[%s446 + $0xd78] sm:$0xff]
        %v2580 = vld [vmem:[%s446 + $0xd80] sm:$0xff]
        %v2581 = vld [vmem:[%s446 + $0xd88] sm:$0xff]
        %v2582 = vld [vmem:[%s446 + $0xd90] sm:$0xff]
        %v2583 = vld [vmem:[%s446 + $0xd98] sm:$0xff]
        %v2584 = vld [vmem:[%s446 + $0xda0] sm:$0xff]
        %v2585 = vld [vmem:[%s446 + $0xda8] sm:$0xff]
        %v2586 = vld [vmem:[%s446 + $0xdb0] sm:$0xff]
        %v2587 = vld [vmem:[%s446 + $0xdb8] sm:$0xff]
        %v2588 = vld [vmem:[%s446 + $0xdc0] sm:$0xff]
        %v2589 = vld [vmem:[%s446 + $0xdc8] sm:$0xff]
        %v2590 = vld [vmem:[%s446 + $0xdd0] sm:$0xff]
        %v2591 = vld [vmem:[%s446 + $0xdd8] sm:$0xff]
        %v2592 = vld [vmem:[%s446 + $0xde0] sm:$0xff]
        %v2593 = vld [vmem:[%s446 + $0xde8] sm:$0xff]
        %v2594 = vld [vmem:[%s446 + $0xdf0] sm:$0xff]
        %v2595 = vld [vmem:[%s446 + $0xdf8] sm:$0xff]
        %v2596 = vrot.slane %v1144, 4
        %2598 = vmatprep.subr.mxu0 %v2533
        %2599 = vmatpush1.msra.mxu0 %v2532
        %2600 = vmatprep.subr.mxu0 %v2537
        %2601 = vmatpush1.msra.mxu0 %v2536
        %2602 = vmatprep.subr.mxu0 %v2541
        %2603 = vmatpush1.msra.mxu0 %v2540
        %2604 = vmatprep.subr.mxu0 %v2545
        %2605 = vmatpush1.msra.mxu0 %v2544
        %2606 = vmatprep.subr.mxu0 %v2549
        %2607 = vmatpush1.msra.mxu0 %v2548
        %2608 = vmatprep.subr.mxu0 %v2553
        %2609 = vmatpush1.msra.mxu0 %v2552
        %2610 = vmatprep.subr.mxu0 %v2557
        %2611 = vmatpush1.msra.mxu0 %v2556
        %2612 = vmatprep.subr.mxu0 %v2561
        %2613 = vmatpush1.msra.mxu0 %v2560
        %2614 = vmatprep.subr.mxu0 %v2565
        %2615 = vmatpush1.msra.mxu0 %v2564
        %2616 = vmatprep.subr.mxu0 %v2569
        %2617 = vmatpush1.msra.mxu0 %v2568
        %2618 = vmatprep.subr.mxu0 %v2573
        %2619 = vmatpush1.msra.mxu0 %v2572
        %2620 = vmatprep.subr.mxu0 %v2577
        %2621 = vmatpush1.msra.mxu0 %v2576
        %2622 = vmatprep.subr.mxu0 %v2581
        %2623 = vmatpush1.msra.mxu0 %v2580
        %2624 = vmatprep.subr.mxu0 %v2585
        %2625 = vmatpush1.msra.mxu0 %v2584
        %2626 = vmatprep.subr.mxu0 %v2589
        %2627 = vmatpush1.msra.mxu0 %v2588
        %2628 = vmatprep.subr.mxu0 %v2593
        %2629 = vmatpush1.msra.mxu0 %v2592
        %2630 = vmatprep.subr.mxu0 0.0
        %2631 = vmatpush1.msra.mxu0 0.0
        %2632 = vmatprep.subr.mxu0 0.0
        %2633 = vmatpush1.msra.mxu0 0.0
        %2634 = vmatprep.subr.mxu0 0.0
        %2635 = vmatpush1.msra.mxu0 0.0
        %2636 = vmatprep.subr.mxu0 0.0
        %2637 = vmatpush1.msra.mxu0 0.0
        %2638 = vmatprep.subr.mxu0 0.0
        %2639 = vmatpush1.msra.mxu0 0.0
        %2640 = vmatprep.subr.mxu0 0.0
        %2641 = vmatpush1.msra.mxu0 0.0
        %2642 = vmatprep.subr.mxu0 0.0
        %2643 = vmatpush1.msra.mxu0 0.0
        %2644 = vmatprep.subr.mxu0 0.0
        %2645 = vmatpush1.msra.mxu0 0.0
        %2646 = vmatprep.subr.mxu0 0.0
        %2647 = vmatpush1.msra.mxu0 0.0
        %2648 = vmatprep.subr.mxu0 0.0
        %2649 = vmatpush1.msra.mxu0 0.0
        %2650 = vmatprep.subr.mxu0 0.0
        %2651 = vmatpush1.msra.mxu0 0.0
        %2652 = vmatprep.subr.mxu0 0.0
        %2653 = vmatpush1.msra.mxu0 0.0
        %2654 = vmatprep.subr.mxu0 0.0
        %2655 = vmatpush1.msra.mxu0 0.0
        %2656 = vmatprep.subr.mxu0 0.0
        %2657 = vmatpush1.msra.mxu0 0.0
        %2658 = vmatprep.subr.mxu0 0.0
        %2659 = vmatpush1.msra.mxu0 0.0
        %2660 = vmatprep.subr.mxu0 0.0
        %2661 = vmatpush1.msra.mxu0 0.0
        %2662 = vmatprep.mubr.f32.mxu0 0.0
        %2663 = vmatmul.mubr.f32.gmra.mrb[0].mxu0 %v2596
        %v2664 = vpop.f32.mrb[0].mxu0
        %v2665 = vadd.f32 0.0, %v2664
        %v2666 = vpop.f32.mrb[0].mxu0
        %v2667 = vadd.f32 0.0, %v2666
        %2668 = vdwg.mxu0
        %2669 = vmatprep.subr.mxu0 %v2535
        %2670 = vmatpush1.msra.mxu0 %v2534
        %2671 = vmatprep.subr.mxu0 %v2539
        %2672 = vmatpush1.msra.mxu0 %v2538
        %2673 = vmatprep.subr.mxu0 %v2543
        %2674 = vmatpush1.msra.mxu0 %v2542
        %2675 = vmatprep.subr.mxu0 %v2547
        %2676 = vmatpush1.msra.mxu0 %v2546
        %2677 = vmatprep.subr.mxu0 %v2551
        %2678 = vmatpush1.msra.mxu0 %v2550
        %2679 = vmatprep.subr.mxu0 %v2555
        %2680 = vmatpush1.msra.mxu0 %v2554
        %2681 = vmatprep.subr.mxu0 %v2559
        %2682 = vmatpush1.msra.mxu0 %v2558
        %2683 = vmatprep.subr.mxu0 %v2563
        %2684 = vmatpush1.msra.mxu0 %v2562
        %2685 = vmatprep.subr.mxu0 %v2567
        %2686 = vmatpush1.msra.mxu0 %v2566
        %2687 = vmatprep.subr.mxu0 %v2571
        %2688 = vmatpush1.msra.mxu0 %v2570
        %2689 = vmatprep.subr.mxu0 %v2575
        %2690 = vmatpush1.msra.mxu0 %v2574
        %2691 = vmatprep.subr.mxu0 %v2579
        %2692 = vmatpush1.msra.mxu0 %v2578
        %2693 = vmatprep.subr.mxu0 %v2583
        %2694 = vmatpush1.msra.mxu0 %v2582
        %2695 = vmatprep.subr.mxu0 %v2587
        %2696 = vmatpush1.msra.mxu0 %v2586
        %2697 = vmatprep.subr.mxu0 %v2591
        %2698 = vmatpush1.msra.mxu0 %v2590
        %2699 = vmatprep.subr.mxu0 %v2595
        %2700 = vmatpush1.msra.mxu0 %v2594
        %2701 = vmatprep.subr.mxu0 0.0
        %2702 = vmatpush1.msra.mxu0 0.0
        %2703 = vmatprep.subr.mxu0 0.0
        %2704 = vmatpush1.msra.mxu0 0.0
        %2705 = vmatprep.subr.mxu0 0.0
        %2706 = vmatpush1.msra.mxu0 0.0
        %2707 = vmatprep.subr.mxu0 0.0
        %2708 = vmatpush1.msra.mxu0 0.0
        %2709 = vmatprep.subr.mxu0 0.0
        %2710 = vmatpush1.msra.mxu0 0.0
        %2711 = vmatprep.subr.mxu0 0.0
        %2712 = vmatpush1.msra.mxu0 0.0
        %2713 = vmatprep.subr.mxu0 0.0
        %2714 = vmatpush1.msra.mxu0 0.0
        %2715 = vmatprep.subr.mxu0 0.0
        %2716 = vmatpush1.msra.mxu0 0.0
        %2717 = vmatprep.subr.mxu0 0.0
        %2718 = vmatpush1.msra.mxu0 0.0
        %2719 = vmatprep.subr.mxu0 0.0
        %2720 = vmatpush1.msra.mxu0 0.0
        %2721 = vmatprep.subr.mxu0 0.0
        %2722 = vmatpush1.msra.mxu0 0.0
        %2723 = vmatprep.subr.mxu0 0.0
        %2724 = vmatpush1.msra.mxu0 0.0
        %2725 = vmatprep.subr.mxu0 0.0
        %2726 = vmatpush1.msra.mxu0 0.0
        %2727 = vmatprep.subr.mxu0 0.0
        %2728 = vmatpush1.msra.mxu0 0.0
        %2729 = vmatprep.subr.mxu0 0.0
        %2730 = vmatpush1.msra.mxu0 0.0
        %2731 = vmatprep.subr.mxu0 0.0
        %2732 = vmatpush1.msra.mxu0 0.0
        %2733 = vmatprep.mubr.f32.mxu0 0.0
        %2734 = vmatmul.mubr.f32.gmra.mrb[0].mxu0 %v2596
        %v2735 = vpop.f32.mrb[0].mxu0
        %v2736 = vadd.f32 0.0, %v2735
        %v2737 = vpop.f32.mrb[0].mxu0
        %v2738 = vadd.f32 0.0, %v2737
        %2739 = vdwg.mxu0
        %v2744 = vcombine.low %v2665, %v2667
        %v2745 = vcombine.low %v2736, %v2738
        %v2747 = vunpack.c.l.s4 1983009808
        %v2748 = vunpack.c.0.s8 %v2747
        %v2749 = vlaneseq
        %v2750 = vshrl.u32 %v2749, 7
        %v2751 = vsub.s32 %v2748, %v2750
        %v2752 = vrot.slane %v2744, %v2751
        %v2754 = vunpack.c.l.s4 1983009808
        %v2755 = vunpack.c.0.s8 %v2754
        %v2756 = vlaneseq
        %v2757 = vshrl.u32 %v2756, 7
        %v2758 = vsub.s32 %v2755, %v2757
        %v2759 = vrot.slane %v2745, %v2758
        %v2760 = vcombine.low %v2752, %v2759
        %v2762 = vadd.f32 %v2531, %v2760
        %v2763 = vld [vmem:[%s446 + $0xe00] sm:$0xff]
        %v2764 = vld [vmem:[%s446 + $0xe08] sm:$0xff]
        %v2765 = vld [vmem:[%s446 + $0xe10] sm:$0xff]
        %v2766 = vld [vmem:[%s446 + $0xe18] sm:$0xff]
        %v2767 = vld [vmem:[%s446 + $0xe20] sm:$0xff]
        %v2768 = vld [vmem:[%s446 + $0xe28] sm:$0xff]
        %v2769 = vld [vmem:[%s446 + $0xe30] sm:$0xff]
        %v2770 = vld [vmem:[%s446 + $0xe38] sm:$0xff]
        %v2771 = vld [vmem:[%s446 + $0xe40] sm:$0xff]
        %v2772 = vld [vmem:[%s446 + $0xe48] sm:$0xff]
        %v2773 = vld [vmem:[%s446 + $0xe50] sm:$0xff]
        %v2774 = vld [vmem:[%s446 + $0xe58] sm:$0xff]
        %v2775 = vld [vmem:[%s446 + $0xe60] sm:$0xff]
        %v2776 = vld [vmem:[%s446 + $0xe68] sm:$0xff]
        %v2777 = vld [vmem:[%s446 + $0xe70] sm:$0xff]
        %v2778 = vld [vmem:[%s446 + $0xe78] sm:$0xff]
        %v2779 = vld [vmem:[%s446 + $0xe80] sm:$0xff]
        %v2780 = vld [vmem:[%s446 + $0xe88] sm:$0xff]
        %v2781 = vld [vmem:[%s446 + $0xe90] sm:$0xff]
        %v2782 = vld [vmem:[%s446 + $0xe98] sm:$0xff]
        %v2783 = vld [vmem:[%s446 + $0xea0] sm:$0xff]
        %v2784 = vld [vmem:[%s446 + $0xea8] sm:$0xff]
        %v2785 = vld [vmem:[%s446 + $0xeb0] sm:$0xff]
        %v2786 = vld [vmem:[%s446 + $0xeb8] sm:$0xff]
        %v2787 = vld [vmem:[%s446 + $0xec0] sm:$0xff]
        %v2788 = vld [vmem:[%s446 + $0xec8] sm:$0xff]
        %v2789 = vld [vmem:[%s446 + $0xed0] sm:$0xff]
        %v2790 = vld [vmem:[%s446 + $0xed8] sm:$0xff]
        %v2791 = vld [vmem:[%s446 + $0xee0] sm:$0xff]
        %v2792 = vld [vmem:[%s446 + $0xee8] sm:$0xff]
        %v2793 = vld [vmem:[%s446 + $0xef0] sm:$0xff]
        %v2794 = vld [vmem:[%s446 + $0xef8] sm:$0xff]
        %v2795 = vld [vmem:[%s446 + $0xf00] sm:$0xff]
        %v2796 = vld [vmem:[%s446 + $0xf08] sm:$0xff]
        %v2797 = vld [vmem:[%s446 + $0xf10] sm:$0xff]
        %v2798 = vld [vmem:[%s446 + $0xf18] sm:$0xff]
        %v2799 = vld [vmem:[%s446 + $0xf20] sm:$0xff]
        %v2800 = vld [vmem:[%s446 + $0xf28] sm:$0xff]
        %v2801 = vld [vmem:[%s446 + $0xf30] sm:$0xff]
        %v2802 = vld [vmem:[%s446 + $0xf38] sm:$0xff]
        %v2803 = vld [vmem:[%s446 + $0xf40] sm:$0xff]
        %v2804 = vld [vmem:[%s446 + $0xf48] sm:$0xff]
        %v2805 = vld [vmem:[%s446 + $0xf50] sm:$0xff]
        %v2806 = vld [vmem:[%s446 + $0xf58] sm:$0xff]
        %v2807 = vld [vmem:[%s446 + $0xf60] sm:$0xff]
        %v2808 = vld [vmem:[%s446 + $0xf68] sm:$0xff]
        %v2809 = vld [vmem:[%s446 + $0xf70] sm:$0xff]
        %v2810 = vld [vmem:[%s446 + $0xf78] sm:$0xff]
        %v2811 = vld [vmem:[%s446 + $0xf80] sm:$0xff]
        %v2812 = vld [vmem:[%s446 + $0xf88] sm:$0xff]
        %v2813 = vld [vmem:[%s446 + $0xf90] sm:$0xff]
        %v2814 = vld [vmem:[%s446 + $0xf98] sm:$0xff]
        %v2815 = vld [vmem:[%s446 + $0xfa0] sm:$0xff]
        %v2816 = vld [vmem:[%s446 + $0xfa8] sm:$0xff]
        %v2817 = vld [vmem:[%s446 + $0xfb0] sm:$0xff]
        %v2818 = vld [vmem:[%s446 + $0xfb8] sm:$0xff]
        %v2819 = vld [vmem:[%s446 + $0xfc0] sm:$0xff]
        %v2820 = vld [vmem:[%s446 + $0xfc8] sm:$0xff]
        %v2821 = vld [vmem:[%s446 + $0xfd0] sm:$0xff]
        %v2822 = vld [vmem:[%s446 + $0xfd8] sm:$0xff]
        %v2823 = vld [vmem:[%s446 + $0xfe0] sm:$0xff]
        %v2824 = vld [vmem:[%s446 + $0xfe8] sm:$0xff]
        %v2825 = vld [vmem:[%s446 + $0xff0] sm:$0xff]
        %v2826 = vld [vmem:[%s446 + $0xff8] sm:$0xff]
        %v2827 = vrot.slane %v1144, 6
        %2829 = vmatprep.subr.mxu0 %v2764
        %2830 = vmatpush1.msra.mxu0 %v2763
        %2831 = vmatprep.subr.mxu0 %v2768
        %2832 = vmatpush1.msra.mxu0 %v2767
        %2833 = vmatprep.subr.mxu0 %v2772
        %2834 = vmatpush1.msra.mxu0 %v2771
        %2835 = vmatprep.subr.mxu0 %v2776
        %2836 = vmatpush1.msra.mxu0 %v2775
        %2837 = vmatprep.subr.mxu0 %v2780
        %2838 = vmatpush1.msra.mxu0 %v2779
        %2839 = vmatprep.subr.mxu0 %v2784
        %2840 = vmatpush1.msra.mxu0 %v2783
        %2841 = vmatprep.subr.mxu0 %v2788
        %2842 = vmatpush1.msra.mxu0 %v2787
        %2843 = vmatprep.subr.mxu0 %v2792
        %2844 = vmatpush1.msra.mxu0 %v2791
        %2845 = vmatprep.subr.mxu0 %v2796
        %2846 = vmatpush1.msra.mxu0 %v2795
        %2847 = vmatprep.subr.mxu0 %v2800
        %2848 = vmatpush1.msra.mxu0 %v2799
        %2849 = vmatprep.subr.mxu0 %v2804
        %2850 = vmatpush1.msra.mxu0 %v2803
        %2851 = vmatprep.subr.mxu0 %v2808
        %2852 = vmatpush1.msra.mxu0 %v2807
        %2853 = vmatprep.subr.mxu0 %v2812
        %2854 = vmatpush1.msra.mxu0 %v2811
        %2855 = vmatprep.subr.mxu0 %v2816
        %2856 = vmatpush1.msra.mxu0 %v2815
        %2857 = vmatprep.subr.mxu0 %v2820
        %2858 = vmatpush1.msra.mxu0 %v2819
        %2859 = vmatprep.subr.mxu0 %v2824
        %2860 = vmatpush1.msra.mxu0 %v2823
        %2861 = vmatprep.subr.mxu0 0.0
        %2862 = vmatpush1.msra.mxu0 0.0
        %2863 = vmatprep.subr.mxu0 0.0
        %2864 = vmatpush1.msra.mxu0 0.0
        %2865 = vmatprep.subr.mxu0 0.0
        %2866 = vmatpush1.msra.mxu0 0.0
        %2867 = vmatprep.subr.mxu0 0.0
        %2868 = vmatpush1.msra.mxu0 0.0
        %2869 = vmatprep.subr.mxu0 0.0
        %2870 = vmatpush1.msra.mxu0 0.0
        %2871 = vmatprep.subr.mxu0 0.0
        %2872 = vmatpush1.msra.mxu0 0.0
        %2873 = vmatprep.subr.mxu0 0.0
        %2874 = vmatpush1.msra.mxu0 0.0
        %2875 = vmatprep.subr.mxu0 0.0
        %2876 = vmatpush1.msra.mxu0 0.0
        %2877 = vmatprep.subr.mxu0 0.0
        %2878 = vmatpush1.msra.mxu0 0.0
        %2879 = vmatprep.subr.mxu0 0.0
        %2880 = vmatpush1.msra.mxu0 0.0
        %2881 = vmatprep.subr.mxu0 0.0
        %2882 = vmatpush1.msra.mxu0 0.0
        %2883 = vmatprep.subr.mxu0 0.0
        %2884 = vmatpush1.msra.mxu0 0.0
        %2885 = vmatprep.subr.mxu0 0.0
        %2886 = vmatpush1.msra.mxu0 0.0
        %2887 = vmatprep.subr.mxu0 0.0
        %2888 = vmatpush1.msra.mxu0 0.0
        %2889 = vmatprep.subr.mxu0 0.0
        %2890 = vmatpush1.msra.mxu0 0.0
        %2891 = vmatprep.subr.mxu0 0.0
        %2892 = vmatpush1.msra.mxu0 0.0
        %2893 = vmatprep.mubr.f32.mxu0 0.0
        %2894 = vmatmul.mubr.f32.gmra.mrb[0].mxu0 %v2827
        %v2895 = vpop.f32.mrb[0].mxu0
        %v2896 = vadd.f32 0.0, %v2895
        %v2897 = vpop.f32.mrb[0].mxu0
        %v2898 = vadd.f32 0.0, %v2897
        %2899 = vdwg.mxu0
        %2900 = vmatprep.subr.mxu0 %v2766
        %2901 = vmatpush1.msra.mxu0 %v2765
        %2902 = vmatprep.subr.mxu0 %v2770
        %2903 = vmatpush1.msra.mxu0 %v2769
        %2904 = vmatprep.subr.mxu0 %v2774
        %2905 = vmatpush1.msra.mxu0 %v2773
        %2906 = vmatprep.subr.mxu0 %v2778
        %2907 = vmatpush1.msra.mxu0 %v2777
        %2908 = vmatprep.subr.mxu0 %v2782
        %2909 = vmatpush1.msra.mxu0 %v2781
        %2910 = vmatprep.subr.mxu0 %v2786
        %2911 = vmatpush1.msra.mxu0 %v2785
        %2912 = vmatprep.subr.mxu0 %v2790
        %2913 = vmatpush1.msra.mxu0 %v2789
        %2914 = vmatprep.subr.mxu0 %v2794
        %2915 = vmatpush1.msra.mxu0 %v2793
        %2916 = vmatprep.subr.mxu0 %v2798
        %2917 = vmatpush1.msra.mxu0 %v2797
        %2918 = vmatprep.subr.mxu0 %v2802
        %2919 = vmatpush1.msra.mxu0 %v2801
        %2920 = vmatprep.subr.mxu0 %v2806
        %2921 = vmatpush1.msra.mxu0 %v2805
        %2922 = vmatprep.subr.mxu0 %v2810
        %2923 = vmatpush1.msra.mxu0 %v2809
        %2924 = vmatprep.subr.mxu0 %v2814
        %2925 = vmatpush1.msra.mxu0 %v2813
        %2926 = vmatprep.subr.mxu0 %v2818
        %2927 = vmatpush1.msra.mxu0 %v2817
        %2928 = vmatprep.subr.mxu0 %v2822
        %2929 = vmatpush1.msra.mxu0 %v2821
        %2930 = vmatprep.subr.mxu0 %v2826
        %2931 = vmatpush1.msra.mxu0 %v2825
        %2932 = vmatprep.subr.mxu0 0.0
        %2933 = vmatpush1.msra.mxu0 0.0
        %2934 = vmatprep.subr.mxu0 0.0
        %2935 = vmatpush1.msra.mxu0 0.0
        %2936 = vmatprep.subr.mxu0 0.0
        %2937 = vmatpush1.msra.mxu0 0.0
        %2938 = vmatprep.subr.mxu0 0.0
        %2939 = vmatpush1.msra.mxu0 0.0
        %2940 = vmatprep.subr.mxu0 0.0
        %2941 = vmatpush1.msra.mxu0 0.0
        %2942 = vmatprep.subr.mxu0 0.0
        %2943 = vmatpush1.msra.mxu0 0.0
        %2944 = vmatprep.subr.mxu0 0.0
        %2945 = vmatpush1.msra.mxu0 0.0
        %2946 = vmatprep.subr.mxu0 0.0
        %2947 = vmatpush1.msra.mxu0 0.0
        %2948 = vmatprep.subr.mxu0 0.0
        %2949 = vmatpush1.msra.mxu0 0.0
        %2950 = vmatprep.subr.mxu0 0.0
        %2951 = vmatpush1.msra.mxu0 0.0
        %2952 = vmatprep.subr.mxu0 0.0
        %2953 = vmatpush1.msra.mxu0 0.0
        %2954 = vmatprep.subr.mxu0 0.0
        %2955 = vmatpush1.msra.mxu0 0.0
        %2956 = vmatprep.subr.mxu0 0.0
        %2957 = vmatpush1.msra.mxu0 0.0
        %2958 = vmatprep.subr.mxu0 0.0
        %2959 = vmatpush1.msra.mxu0 0.0
        %2960 = vmatprep.subr.mxu0 0.0
        %2961 = vmatpush1.msra.mxu0 0.0
        %2962 = vmatprep.subr.mxu0 0.0
        %2963 = vmatpush1.msra.mxu0 0.0
        %2964 = vmatprep.mubr.f32.mxu0 0.0
        %2965 = vmatmul.mubr.f32.gmra.mrb[0].mxu0 %v2827
        %v2966 = vpop.f32.mrb[0].mxu0
        %v2967 = vadd.f32 0.0, %v2966
        %v2968 = vpop.f32.mrb[0].mxu0
        %v2969 = vadd.f32 0.0, %v2968
        %2970 = vdwg.mxu0
        %v2975 = vcombine.low %v2896, %v2898
        %v2976 = vcombine.low %v2967, %v2969
        %v2978 = vunpack.c.l.s4 1983009808
        %v2979 = vunpack.c.0.s8 %v2978
        %v2980 = vlaneseq
        %v2981 = vshrl.u32 %v2980, 7
        %v2982 = vsub.s32 %v2979, %v2981
        %v2983 = vrot.slane %v2975, %v2982
        %v2985 = vunpack.c.l.s4 1983009808
        %v2986 = vunpack.c.0.s8 %v2985
        %v2987 = vlaneseq
        %v2988 = vshrl.u32 %v2987, 7
        %v2989 = vsub.s32 %v2986, %v2988
        %v2990 = vrot.slane %v2976, %v2989
        %v2991 = vcombine.low %v2983, %v2990
        %v2993 = vadd.f32 %v2762, %v2991
        %v2994 = vld [vmem:[%s446 + $0x1000] sm:$0xff]
        %v2995 = vld [vmem:[%s446 + $0x1008] sm:$0xff]
        %v2996 = vld [vmem:[%s446 + $0x1010] sm:$0xff]
        %v2997 = vld [vmem:[%s446 + $0x1018] sm:$0xff]
        %v2998 = vld [vmem:[%s446 + $0x1020] sm:$0xff]
        %v2999 = vld [vmem:[%s446 + $0x1028] sm:$0xff]
        %v3000 = vld [vmem:[%s446 + $0x1030] sm:$0xff]
        %v3001 = vld [vmem:[%s446 + $0x1038] sm:$0xff]
        %v3002 = vld [vmem:[%s446 + $0x1040] sm:$0xff]
        %v3003 = vld [vmem:[%s446 + $0x1048] sm:$0xff]
        %v3004 = vld [vmem:[%s446 + $0x1050] sm:$0xff]
        %v3005 = vld [vmem:[%s446 + $0x1058] sm:$0xff]
        %v3006 = vld [vmem:[%s446 + $0x1060] sm:$0xff]
        %v3007 = vld [vmem:[%s446 + $0x1068] sm:$0xff]
        %v3008 = vld [vmem:[%s446 + $0x1070] sm:$0xff]
        %v3009 = vld [vmem:[%s446 + $0x1078] sm:$0xff]
        %v3010 = vld [vmem:[%s446 + $0x1080] sm:$0xff]
        %v3011 = vld [vmem:[%s446 + $0x1088] sm:$0xff]
        %v3012 = vld [vmem:[%s446 + $0x1090] sm:$0xff]
        %v3013 = vld [vmem:[%s446 + $0x1098] sm:$0xff]
        %v3014 = vld [vmem:[%s446 + $0x10a0] sm:$0xff]
        %v3015 = vld [vmem:[%s446 + $0x10a8] sm:$0xff]
        %v3016 = vld [vmem:[%s446 + $0x10b0] sm:$0xff]
        %v3017 = vld [vmem:[%s446 + $0x10b8] sm:$0xff]
        %v3018 = vld [vmem:[%s446 + $0x10c0] sm:$0xff]
        %v3019 = vld [vmem:[%s446 + $0x10c8] sm:$0xff]
        %v3020 = vld [vmem:[%s446 + $0x10d0] sm:$0xff]
        %v3021 = vld [vmem:[%s446 + $0x10d8] sm:$0xff]
        %v3022 = vld [vmem:[%s446 + $0x10e0] sm:$0xff]
        %v3023 = vld [vmem:[%s446 + $0x10e8] sm:$0xff]
        %v3024 = vld [vmem:[%s446 + $0x10f0] sm:$0xff]
        %v3025 = vld [vmem:[%s446 + $0x10f8] sm:$0xff]
        %v3026 = vld [vmem:[%s446 + $0x1100] sm:$0xff]
        %v3027 = vld [vmem:[%s446 + $0x1108] sm:$0xff]
        %v3028 = vld [vmem:[%s446 + $0x1110] sm:$0xff]
        %v3029 = vld [vmem:[%s446 + $0x1118] sm:$0xff]
        %v3030 = vld [vmem:[%s446 + $0x1120] sm:$0xff]
        %v3031 = vld [vmem:[%s446 + $0x1128] sm:$0xff]
        %v3032 = vld [vmem:[%s446 + $0x1130] sm:$0xff]
        %v3033 = vld [vmem:[%s446 + $0x1138] sm:$0xff]
        %v3034 = vld [vmem:[%s446 + $0x1140] sm:$0xff]
        %v3035 = vld [vmem:[%s446 + $0x1148] sm:$0xff]
        %v3036 = vld [vmem:[%s446 + $0x1150] sm:$0xff]
        %v3037 = vld [vmem:[%s446 + $0x1158] sm:$0xff]
        %v3038 = vld [vmem:[%s446 + $0x1160] sm:$0xff]
        %v3039 = vld [vmem:[%s446 + $0x1168] sm:$0xff]
        %v3040 = vld [vmem:[%s446 + $0x1170] sm:$0xff]
        %v3041 = vld [vmem:[%s446 + $0x1178] sm:$0xff]
        %v3042 = vld [vmem:[%s446 + $0x1180] sm:$0xff]
        %v3043 = vld [vmem:[%s446 + $0x1188] sm:$0xff]
        %v3044 = vld [vmem:[%s446 + $0x1190] sm:$0xff]
        %v3045 = vld [vmem:[%s446 + $0x1198] sm:$0xff]
        %v3046 = vld [vmem:[%s446 + $0x11a0] sm:$0xff]
        %v3047 = vld [vmem:[%s446 + $0x11a8] sm:$0xff]
        %v3048 = vld [vmem:[%s446 + $0x11b0] sm:$0xff]
        %v3049 = vld [vmem:[%s446 + $0x11b8] sm:$0xff]
        %v3050 = vld [vmem:[%s446 + $0x11c0] sm:$0xff]
        %v3051 = vld [vmem:[%s446 + $0x11c8] sm:$0xff]
        %v3052 = vld [vmem:[%s446 + $0x11d0] sm:$0xff]
        %v3053 = vld [vmem:[%s446 + $0x11d8] sm:$0xff]
        %v3054 = vld [vmem:[%s446 + $0x11e0] sm:$0xff]
        %v3055 = vld [vmem:[%s446 + $0x11e8] sm:$0xff]
        %v3056 = vld [vmem:[%s446 + $0x11f0] sm:$0xff]
        %v3057 = vld [vmem:[%s446 + $0x11f8] sm:$0xff]
        %3058 = vmatprep.subr.mxu0 %v2995
        %3059 = vmatpush1.msra.mxu0 %v2994
        %3060 = vmatprep.subr.mxu0 %v2999
        %3061 = vmatpush1.msra.mxu0 %v2998
        %3062 = vmatprep.subr.mxu0 %v3003
        %3063 = vmatpush1.msra.mxu0 %v3002
        %3064 = vmatprep.subr.mxu0 %v3007
        %3065 = vmatpush1.msra.mxu0 %v3006
        %3066 = vmatprep.subr.mxu0 %v3011
        %3067 = vmatpush1.msra.mxu0 %v3010
        %3068 = vmatprep.subr.mxu0 %v3015
        %3069 = vmatpush1.msra.mxu0 %v3014
        %3070 = vmatprep.subr.mxu0 %v3019
        %3071 = vmatpush1.msra.mxu0 %v3018
        %3072 = vmatprep.subr.mxu0 %v3023
        %3073 = vmatpush1.msra.mxu0 %v3022
        %3074 = vmatprep.subr.mxu0 %v3027
        %3075 = vmatpush1.msra.mxu0 %v3026
        %3076 = vmatprep.subr.mxu0 %v3031
        %3077 = vmatpush1.msra.mxu0 %v3030
        %3078 = vmatprep.subr.mxu0 %v3035
        %3079 = vmatpush1.msra.mxu0 %v3034
        %3080 = vmatprep.subr.mxu0 %v3039
        %3081 = vmatpush1.msra.mxu0 %v3038
        %3082 = vmatprep.subr.mxu0 %v3043
        %3083 = vmatpush1.msra.mxu0 %v3042
        %3084 = vmatprep.subr.mxu0 %v3047
        %3085 = vmatpush1.msra.mxu0 %v3046
        %3086 = vmatprep.subr.mxu0 %v3051
        %3087 = vmatpush1.msra.mxu0 %v3050
        %3088 = vmatprep.subr.mxu0 %v3055
        %3089 = vmatpush1.msra.mxu0 %v3054
        %3090 = vmatprep.subr.mxu0 0.0
        %3091 = vmatpush1.msra.mxu0 0.0
        %3092 = vmatprep.subr.mxu0 0.0
        %3093 = vmatpush1.msra.mxu0 0.0
        %3094 = vmatprep.subr.mxu0 0.0
        %3095 = vmatpush1.msra.mxu0 0.0
        %3096 = vmatprep.subr.mxu0 0.0
        %3097 = vmatpush1.msra.mxu0 0.0
        %3098 = vmatprep.subr.mxu0 0.0
        %3099 = vmatpush1.msra.mxu0 0.0
        %3100 = vmatprep.subr.mxu0 0.0
        %3101 = vmatpush1.msra.mxu0 0.0
        %3102 = vmatprep.subr.mxu0 0.0
        %3103 = vmatpush1.msra.mxu0 0.0
        %3104 = vmatprep.subr.mxu0 0.0
        %3105 = vmatpush1.msra.mxu0 0.0
        %3106 = vmatprep.subr.mxu0 0.0
        %3107 = vmatpush1.msra.mxu0 0.0
        %3108 = vmatprep.subr.mxu0 0.0
        %3109 = vmatpush1.msra.mxu0 0.0
        %3110 = vmatprep.subr.mxu0 0.0
        %3111 = vmatpush1.msra.mxu0 0.0
        %3112 = vmatprep.subr.mxu0 0.0
        %3113 = vmatpush1.msra.mxu0 0.0
        %3114 = vmatprep.subr.mxu0 0.0
        %3115 = vmatpush1.msra.mxu0 0.0
        %3116 = vmatprep.subr.mxu0 0.0
        %3117 = vmatpush1.msra.mxu0 0.0
        %3118 = vmatprep.subr.mxu0 0.0
        %3119 = vmatpush1.msra.mxu0 0.0
        %3120 = vmatprep.subr.mxu0 0.0
        %3121 = vmatpush1.msra.mxu0 0.0
        %3122 = vmatprep.mubr.f32.mxu0 0.0
        %3123 = vmatmul.mubr.f32.gmra.mrb[0].mxu0 %v1145
        %v3124 = vpop.f32.mrb[0].mxu0
        %v3125 = vadd.f32 0.0, %v3124
        %v3126 = vpop.f32.mrb[0].mxu0
        %v3127 = vadd.f32 0.0, %v3126
        %3128 = vdwg.mxu0
        %3129 = vmatprep.subr.mxu0 %v2997
        %3130 = vmatpush1.msra.mxu0 %v2996
        %3131 = vmatprep.subr.mxu0 %v3001
        %3132 = vmatpush1.msra.mxu0 %v3000
        %3133 = vmatprep.subr.mxu0 %v3005
        %3134 = vmatpush1.msra.mxu0 %v3004
        %3135 = vmatprep.subr.mxu0 %v3009
        %3136 = vmatpush1.msra.mxu0 %v3008
        %3137 = vmatprep.subr.mxu0 %v3013
        %3138 = vmatpush1.msra.mxu0 %v3012
        %3139 = vmatprep.subr.mxu0 %v3017
        %3140 = vmatpush1.msra.mxu0 %v3016
        %3141 = vmatprep.subr.mxu0 %v3021
        %3142 = vmatpush1.msra.mxu0 %v3020
        %3143 = vmatprep.subr.mxu0 %v3025
        %3144 = vmatpush1.msra.mxu0 %v3024
        %3145 = vmatprep.subr.mxu0 %v3029
        %3146 = vmatpush1.msra.mxu0 %v3028
        %3147 = vmatprep.subr.mxu0 %v3033
        %3148 = vmatpush1.msra.mxu0 %v3032
        %3149 = vmatprep.subr.mxu0 %v3037
        %3150 = vmatpush1.msra.mxu0 %v3036
        %3151 = vmatprep.subr.mxu0 %v3041
        %3152 = vmatpush1.msra.mxu0 %v3040
        %3153 = vmatprep.subr.mxu0 %v3045
        %3154 = vmatpush1.msra.mxu0 %v3044
        %3155 = vmatprep.subr.mxu0 %v3049
        %3156 = vmatpush1.msra.mxu0 %v3048
        %3157 = vmatprep.subr.mxu0 %v3053
        %3158 = vmatpush1.msra.mxu0 %v3052
        %3159 = vmatprep.subr.mxu0 %v3057
        %3160 = vmatpush1.msra.mxu0 %v3056
        %3161 = vmatprep.subr.mxu0 0.0
        %3162 = vmatpush1.msra.mxu0 0.0
        %3163 = vmatprep.subr.mxu0 0.0
        %3164 = vmatpush1.msra.mxu0 0.0
        %3165 = vmatprep.subr.mxu0 0.0
        %3166 = vmatpush1.msra.mxu0 0.0
        %3167 = vmatprep.subr.mxu0 0.0
        %3168 = vmatpush1.msra.mxu0 0.0
        %3169 = vmatprep.subr.mxu0 0.0
        %3170 = vmatpush1.msra.mxu0 0.0
        %3171 = vmatprep.subr.mxu0 0.0
        %3172 = vmatpush1.msra.mxu0 0.0
        %3173 = vmatprep.subr.mxu0 0.0
        %3174 = vmatpush1.msra.mxu0 0.0
        %3175 = vmatprep.subr.mxu0 0.0
        %3176 = vmatpush1.msra.mxu0 0.0
        %3177 = vmatprep.subr.mxu0 0.0
        %3178 = vmatpush1.msra.mxu0 0.0
        %3179 = vmatprep.subr.mxu0 0.0
        %3180 = vmatpush1.msra.mxu0 0.0
        %3181 = vmatprep.subr.mxu0 0.0
        %3182 = vmatpush1.msra.mxu0 0.0
        %3183 = vmatprep.subr.mxu0 0.0
        %3184 = vmatpush1.msra.mxu0 0.0
        %3185 = vmatprep.subr.mxu0 0.0
        %3186 = vmatpush1.msra.mxu0 0.0
        %3187 = vmatprep.subr.mxu0 0.0
        %3188 = vmatpush1.msra.mxu0 0.0
        %3189 = vmatprep.subr.mxu0 0.0
        %3190 = vmatpush1.msra.mxu0 0.0
        %3191 = vmatprep.subr.mxu0 0.0
        %3192 = vmatpush1.msra.mxu0 0.0
        %3193 = vmatprep.mubr.f32.mxu0 0.0
        %3194 = vmatmul.mubr.f32.gmra.mrb[0].mxu0 %v1145
        %v3195 = vpop.f32.mrb[0].mxu0
        %v3196 = vadd.f32 0.0, %v3195
        %v3197 = vpop.f32.mrb[0].mxu0
        %v3198 = vadd.f32 0.0, %v3197
        %3199 = vdwg.mxu0
        %v3204 = vcombine.low %v3125, %v3127
        %v3205 = vcombine.low %v3196, %v3198
        %v3207 = vunpack.c.l.s4 1983009808
        %v3208 = vunpack.c.0.s8 %v3207
        %v3209 = vlaneseq
        %v3210 = vshrl.u32 %v3209, 7
        %v3211 = vsub.s32 %v3208, %v3210
        %v3212 = vrot.slane %v3204, %v3211
        %v3214 = vunpack.c.l.s4 1983009808
        %v3215 = vunpack.c.0.s8 %v3214
        %v3216 = vlaneseq
        %v3217 = vshrl.u32 %v3216, 7
        %v3218 = vsub.s32 %v3215, %v3217
        %v3219 = vrot.slane %v3205, %v3218
        %v3220 = vcombine.low %v3212, %v3219
        %v3222 = vadd.f32 %v2993, %v3220
        %v3223 = vld [vmem:[%s446 + $0x1200] sm:$0xff]
        %v3224 = vld [vmem:[%s446 + $0x1208] sm:$0xff]
        %v3225 = vld [vmem:[%s446 + $0x1210] sm:$0xff]
        %v3226 = vld [vmem:[%s446 + $0x1218] sm:$0xff]
        %v3227 = vld [vmem:[%s446 + $0x1220] sm:$0xff]
        %v3228 = vld [vmem:[%s446 + $0x1228] sm:$0xff]
        %v3229 = vld [vmem:[%s446 + $0x1230] sm:$0xff]
        %v3230 = vld [vmem:[%s446 + $0x1238] sm:$0xff]
        %v3231 = vld [vmem:[%s446 + $0x1240] sm:$0xff]
        %v3232 = vld [vmem:[%s446 + $0x1248] sm:$0xff]
        %v3233 = vld [vmem:[%s446 + $0x1250] sm:$0xff]
        %v3234 = vld [vmem:[%s446 + $0x1258] sm:$0xff]
        %v3235 = vld [vmem:[%s446 + $0x1260] sm:$0xff]
        %v3236 = vld [vmem:[%s446 + $0x1268] sm:$0xff]
        %v3237 = vld [vmem:[%s446 + $0x1270] sm:$0xff]
        %v3238 = vld [vmem:[%s446 + $0x1278] sm:$0xff]
        %v3239 = vld [vmem:[%s446 + $0x1280] sm:$0xff]
        %v3240 = vld [vmem:[%s446 + $0x1288] sm:$0xff]
        %v3241 = vld [vmem:[%s446 + $0x1290] sm:$0xff]
        %v3242 = vld [vmem:[%s446 + $0x1298] sm:$0xff]
        %v3243 = vld [vmem:[%s446 + $0x12a0] sm:$0xff]
        %v3244 = vld [vmem:[%s446 + $0x12a8] sm:$0xff]
        %v3245 = vld [vmem:[%s446 + $0x12b0] sm:$0xff]
        %v3246 = vld [vmem:[%s446 + $0x12b8] sm:$0xff]
        %v3247 = vld [vmem:[%s446 + $0x12c0] sm:$0xff]
        %v3248 = vld [vmem:[%s446 + $0x12c8] sm:$0xff]
        %v3249 = vld [vmem:[%s446 + $0x12d0] sm:$0xff]
        %v3250 = vld [vmem:[%s446 + $0x12d8] sm:$0xff]
        %v3251 = vld [vmem:[%s446 + $0x12e0] sm:$0xff]
        %v3252 = vld [vmem:[%s446 + $0x12e8] sm:$0xff]
        %v3253 = vld [vmem:[%s446 + $0x12f0] sm:$0xff]
        %v3254 = vld [vmem:[%s446 + $0x12f8] sm:$0xff]
        %v3255 = vld [vmem:[%s446 + $0x1300] sm:$0xff]
        %v3256 = vld [vmem:[%s446 + $0x1308] sm:$0xff]
        %v3257 = vld [vmem:[%s446 + $0x1310] sm:$0xff]
        %v3258 = vld [vmem:[%s446 + $0x1318] sm:$0xff]
        %v3259 = vld [vmem:[%s446 + $0x1320] sm:$0xff]
        %v3260 = vld [vmem:[%s446 + $0x1328] sm:$0xff]
        %v3261 = vld [vmem:[%s446 + $0x1330] sm:$0xff]
        %v3262 = vld [vmem:[%s446 + $0x1338] sm:$0xff]
        %v3263 = vld [vmem:[%s446 + $0x1340] sm:$0xff]
        %v3264 = vld [vmem:[%s446 + $0x1348] sm:$0xff]
        %v3265 = vld [vmem:[%s446 + $0x1350] sm:$0xff]
        %v3266 = vld [vmem:[%s446 + $0x1358] sm:$0xff]
        %v3267 = vld [vmem:[%s446 + $0x1360] sm:$0xff]
        %v3268 = vld [vmem:[%s446 + $0x1368] sm:$0xff]
        %v3269 = vld [vmem:[%s446 + $0x1370] sm:$0xff]
        %v3270 = vld [vmem:[%s446 + $0x1378] sm:$0xff]
        %v3271 = vld [vmem:[%s446 + $0x1380] sm:$0xff]
        %v3272 = vld [vmem:[%s446 + $0x1388] sm:$0xff]
        %v3273 = vld [vmem:[%s446 + $0x1390] sm:$0xff]
        %v3274 = vld [vmem:[%s446 + $0x1398] sm:$0xff]
        %v3275 = vld [vmem:[%s446 + $0x13a0] sm:$0xff]
        %v3276 = vld [vmem:[%s446 + $0x13a8] sm:$0xff]
        %v3277 = vld [vmem:[%s446 + $0x13b0] sm:$0xff]
        %v3278 = vld [vmem:[%s446 + $0x13b8] sm:$0xff]
        %v3279 = vld [vmem:[%s446 + $0x13c0] sm:$0xff]
        %v3280 = vld [vmem:[%s446 + $0x13c8] sm:$0xff]
        %v3281 = vld [vmem:[%s446 + $0x13d0] sm:$0xff]
        %v3282 = vld [vmem:[%s446 + $0x13d8] sm:$0xff]
        %v3283 = vld [vmem:[%s446 + $0x13e0] sm:$0xff]
        %v3284 = vld [vmem:[%s446 + $0x13e8] sm:$0xff]
        %v3285 = vld [vmem:[%s446 + $0x13f0] sm:$0xff]
        %v3286 = vld [vmem:[%s446 + $0x13f8] sm:$0xff]
        %v3288 = vrot.slane %v1145, 2
        %3290 = vmatprep.subr.mxu0 %v3224
        %3291 = vmatpush1.msra.mxu0 %v3223
        %3292 = vmatprep.subr.mxu0 %v3228
        %3293 = vmatpush1.msra.mxu0 %v3227
        %3294 = vmatprep.subr.mxu0 %v3232
        %3295 = vmatpush1.msra.mxu0 %v3231
        %3296 = vmatprep.subr.mxu0 %v3236
        %3297 = vmatpush1.msra.mxu0 %v3235
        %3298 = vmatprep.subr.mxu0 %v3240
        %3299 = vmatpush1.msra.mxu0 %v3239
        %3300 = vmatprep.subr.mxu0 %v3244
        %3301 = vmatpush1.msra.mxu0 %v3243
        %3302 = vmatprep.subr.mxu0 %v3248
        %3303 = vmatpush1.msra.mxu0 %v3247
        %3304 = vmatprep.subr.mxu0 %v3252
        %3305 = vmatpush1.msra.mxu0 %v3251
        %3306 = vmatprep.subr.mxu0 %v3256
        %3307 = vmatpush1.msra.mxu0 %v3255
        %3308 = vmatprep.subr.mxu0 %v3260
        %3309 = vmatpush1.msra.mxu0 %v3259
        %3310 = vmatprep.subr.mxu0 %v3264
        %3311 = vmatpush1.msra.mxu0 %v3263
        %3312 = vmatprep.subr.mxu0 %v3268
        %3313 = vmatpush1.msra.mxu0 %v3267
        %3314 = vmatprep.subr.mxu0 %v3272
        %3315 = vmatpush1.msra.mxu0 %v3271
        %3316 = vmatprep.subr.mxu0 %v3276
        %3317 = vmatpush1.msra.mxu0 %v3275
        %3318 = vmatprep.subr.mxu0 %v3280
        %3319 = vmatpush1.msra.mxu0 %v3279
        %3320 = vmatprep.subr.mxu0 %v3284
        %3321 = vmatpush1.msra.mxu0 %v3283
        %3322 = vmatprep.subr.mxu0 0.0
        %3323 = vmatpush1.msra.mxu0 0.0
        %3324 = vmatprep.subr.mxu0 0.0
        %3325 = vmatpush1.msra.mxu0 0.0
        %3326 = vmatprep.subr.mxu0 0.0
        %3327 = vmatpush1.msra.mxu0 0.0
        %3328 = vmatprep.subr.mxu0 0.0
        %3329 = vmatpush1.msra.mxu0 0.0
        %3330 = vmatprep.subr.mxu0 0.0
        %3331 = vmatpush1.msra.mxu0 0.0
        %3332 = vmatprep.subr.mxu0 0.0
        %3333 = vmatpush1.msra.mxu0 0.0
        %3334 = vmatprep.subr.mxu0 0.0
        %3335 = vmatpush1.msra.mxu0 0.0
        %3336 = vmatprep.subr.mxu0 0.0
        %3337 = vmatpush1.msra.mxu0 0.0
        %3338 = vmatprep.subr.mxu0 0.0
        %3339 = vmatpush1.msra.mxu0 0.0
        %3340 = vmatprep.subr.mxu0 0.0
        %3341 = vmatpush1.msra.mxu0 0.0
        %3342 = vmatprep.subr.mxu0 0.0
        %3343 = vmatpush1.msra.mxu0 0.0
        %3344 = vmatprep.subr.mxu0 0.0
        %3345 = vmatpush1.msra.mxu0 0.0
        %3346 = vmatprep.subr.mxu0 0.0
        %3347 = vmatpush1.msra.mxu0 0.0
        %3348 = vmatprep.subr.mxu0 0.0
        %3349 = vmatpush1.msra.mxu0 0.0
        %3350 = vmatprep.subr.mxu0 0.0
        %3351 = vmatpush1.msra.mxu0 0.0
        %3352 = vmatprep.subr.mxu0 0.0
        %3353 = vmatpush1.msra.mxu0 0.0
        %3354 = vmatprep.mubr.f32.mxu0 0.0
        %3355 = vmatmul.mubr.f32.gmra.mrb[0].mxu0 %v3288
        %v3356 = vpop.f32.mrb[0].mxu0
        %v3357 = vadd.f32 0.0, %v3356
        %v3358 = vpop.f32.mrb[0].mxu0
        %v3359 = vadd.f32 0.0, %v3358
        %3360 = vdwg.mxu0
        %3361 = vmatprep.subr.mxu0 %v3226
        %3362 = vmatpush1.msra.mxu0 %v3225
        %3363 = vmatprep.subr.mxu0 %v3230
        %3364 = vmatpush1.msra.mxu0 %v3229
        %3365 = vmatprep.subr.mxu0 %v3234
        %3366 = vmatpush1.msra.mxu0 %v3233
        %3367 = vmatprep.subr.mxu0 %v3238
        %3368 = vmatpush1.msra.mxu0 %v3237
        %3369 = vmatprep.subr.mxu0 %v3242
        %3370 = vmatpush1.msra.mxu0 %v3241
        %3371 = vmatprep.subr.mxu0 %v3246
        %3372 = vmatpush1.msra.mxu0 %v3245
        %3373 = vmatprep.subr.mxu0 %v3250
        %3374 = vmatpush1.msra.mxu0 %v3249
        %3375 = vmatprep.subr.mxu0 %v3254
        %3376 = vmatpush1.msra.mxu0 %v3253
        %3377 = vmatprep.subr.mxu0 %v3258
        %3378 = vmatpush1.msra.mxu0 %v3257
        %3379 = vmatprep.subr.mxu0 %v3262
        %3380 = vmatpush1.msra.mxu0 %v3261
        %3381 = vmatprep.subr.mxu0 %v3266
        %3382 = vmatpush1.msra.mxu0 %v3265
        %3383 = vmatprep.subr.mxu0 %v3270
        %3384 = vmatpush1.msra.mxu0 %v3269
        %3385 = vmatprep.subr.mxu0 %v3274
        %3386 = vmatpush1.msra.mxu0 %v3273
        %3387 = vmatprep.subr.mxu0 %v3278
        %3388 = vmatpush1.msra.mxu0 %v3277
        %3389 = vmatprep.subr.mxu0 %v3282
        %3390 = vmatpush1.msra.mxu0 %v3281
        %3391 = vmatprep.subr.mxu0 %v3286
        %3392 = vmatpush1.msra.mxu0 %v3285
        %3393 = vmatprep.subr.mxu0 0.0
        %3394 = vmatpush1.msra.mxu0 0.0
        %3395 = vmatprep.subr.mxu0 0.0
        %3396 = vmatpush1.msra.mxu0 0.0
        %3397 = vmatprep.subr.mxu0 0.0
        %3398 = vmatpush1.msra.mxu0 0.0
        %3399 = vmatprep.subr.mxu0 0.0
        %3400 = vmatpush1.msra.mxu0 0.0
        %3401 = vmatprep.subr.mxu0 0.0
        %3402 = vmatpush1.msra.mxu0 0.0
        %3403 = vmatprep.subr.mxu0 0.0
        %3404 = vmatpush1.msra.mxu0 0.0
        %3405 = vmatprep.subr.mxu0 0.0
        %3406 = vmatpush1.msra.mxu0 0.0
        %3407 = vmatprep.subr.mxu0 0.0
        %3408 = vmatpush1.msra.mxu0 0.0
        %3409 = vmatprep.subr.mxu0 0.0
        %3410 = vmatpush1.msra.mxu0 0.0
        %3411 = vmatprep.subr.mxu0 0.0
        %3412 = vmatpush1.msra.mxu0 0.0
        %3413 = vmatprep.subr.mxu0 0.0
        %3414 = vmatpush1.msra.mxu0 0.0
        %3415 = vmatprep.subr.mxu0 0.0
        %3416 = vmatpush1.msra.mxu0 0.0
        %3417 = vmatprep.subr.mxu0 0.0
        %3418 = vmatpush1.msra.mxu0 0.0
        %3419 = vmatprep.subr.mxu0 0.0
        %3420 = vmatpush1.msra.mxu0 0.0
        %3421 = vmatprep.subr.mxu0 0.0
        %3422 = vmatpush1.msra.mxu0 0.0
        %3423 = vmatprep.subr.mxu0 0.0
        %3424 = vmatpush1.msra.mxu0 0.0
        %3425 = vmatprep.mubr.f32.mxu0 0.0
        %3426 = vmatmul.mubr.f32.gmra.mrb[0].mxu0 %v3288
        %v3427 = vpop.f32.mrb[0].mxu0
        %v3428 = vadd.f32 0.0, %v3427
        %v3429 = vpop.f32.mrb[0].mxu0
        %v3430 = vadd.f32 0.0, %v3429
        %3431 = vdwg.mxu0
        %v3436 = vcombine.low %v3357, %v3359
        %v3437 = vcombine.low %v3428, %v3430
        %v3439 = vunpack.c.l.s4 1983009808
        %v3440 = vunpack.c.0.s8 %v3439
        %v3441 = vlaneseq
        %v3442 = vshrl.u32 %v3441, 7
        %v3443 = vsub.s32 %v3440, %v3442
        %v3444 = vrot.slane %v3436, %v3443
        %v3446 = vunpack.c.l.s4 1983009808
        %v3447 = vunpack.c.0.s8 %v3446
        %v3448 = vlaneseq
        %v3449 = vshrl.u32 %v3448, 7
        %v3450 = vsub.s32 %v3447, %v3449
        %v3451 = vrot.slane %v3437, %v3450
        %v3452 = vcombine.low %v3444, %v3451
        %v3454 = vadd.f32 %v3222, %v3452
        %v3455 = vld [vmem:[%s446 + $0x1400] sm:$0xff]
        %v3456 = vld [vmem:[%s446 + $0x1408] sm:$0xff]
        %v3457 = vld [vmem:[%s446 + $0x1410] sm:$0xff]
        %v3458 = vld [vmem:[%s446 + $0x1418] sm:$0xff]
        %v3459 = vld [vmem:[%s446 + $0x1420] sm:$0xff]
        %v3460 = vld [vmem:[%s446 + $0x1428] sm:$0xff]
        %v3461 = vld [vmem:[%s446 + $0x1430] sm:$0xff]
        %v3462 = vld [vmem:[%s446 + $0x1438] sm:$0xff]
        %v3463 = vld [vmem:[%s446 + $0x1440] sm:$0xff]
        %v3464 = vld [vmem:[%s446 + $0x1448] sm:$0xff]
        %v3465 = vld [vmem:[%s446 + $0x1450] sm:$0xff]
        %v3466 = vld [vmem:[%s446 + $0x1458] sm:$0xff]
        %v3467 = vld [vmem:[%s446 + $0x1460] sm:$0xff]
        %v3468 = vld [vmem:[%s446 + $0x1468] sm:$0xff]
        %v3469 = vld [vmem:[%s446 + $0x1470] sm:$0xff]
        %v3470 = vld [vmem:[%s446 + $0x1478] sm:$0xff]
        %v3471 = vld [vmem:[%s446 + $0x1480] sm:$0xff]
        %v3472 = vld [vmem:[%s446 + $0x1488] sm:$0xff]
        %v3473 = vld [vmem:[%s446 + $0x1490] sm:$0xff]
        %v3474 = vld [vmem:[%s446 + $0x1498] sm:$0xff]
        %v3475 = vld [vmem:[%s446 + $0x14a0] sm:$0xff]
        %v3476 = vld [vmem:[%s446 + $0x14a8] sm:$0xff]
        %v3477 = vld [vmem:[%s446 + $0x14b0] sm:$0xff]
        %v3478 = vld [vmem:[%s446 + $0x14b8] sm:$0xff]
        %v3479 = vld [vmem:[%s446 + $0x14c0] sm:$0xff]
        %v3480 = vld [vmem:[%s446 + $0x14c8] sm:$0xff]
        %v3481 = vld [vmem:[%s446 + $0x14d0] sm:$0xff]
        %v3482 = vld [vmem:[%s446 + $0x14d8] sm:$0xff]
        %v3483 = vld [vmem:[%s446 + $0x14e0] sm:$0xff]
        %v3484 = vld [vmem:[%s446 + $0x14e8] sm:$0xff]
        %v3485 = vld [vmem:[%s446 + $0x14f0] sm:$0xff]
        %v3486 = vld [vmem:[%s446 + $0x14f8] sm:$0xff]
        %v3487 = vld [vmem:[%s446 + $0x1500] sm:$0xff]
        %v3488 = vld [vmem:[%s446 + $0x1508] sm:$0xff]
        %v3489 = vld [vmem:[%s446 + $0x1510] sm:$0xff]
        %v3490 = vld [vmem:[%s446 + $0x1518] sm:$0xff]
        %v3491 = vld [vmem:[%s446 + $0x1520] sm:$0xff]
        %v3492 = vld [vmem:[%s446 + $0x1528] sm:$0xff]
        %v3493 = vld [vmem:[%s446 + $0x1530] sm:$0xff]
        %v3494 = vld [vmem:[%s446 + $0x1538] sm:$0xff]
        %v3495 = vld [vmem:[%s446 + $0x1540] sm:$0xff]
        %v3496 = vld [vmem:[%s446 + $0x1548] sm:$0xff]
        %v3497 = vld [vmem:[%s446 + $0x1550] sm:$0xff]
        %v3498 = vld [vmem:[%s446 + $0x1558] sm:$0xff]
        %v3499 = vld [vmem:[%s446 + $0x1560] sm:$0xff]
        %v3500 = vld [vmem:[%s446 + $0x1568] sm:$0xff]
        %v3501 = vld [vmem:[%s446 + $0x1570] sm:$0xff]
        %v3502 = vld [vmem:[%s446 + $0x1578] sm:$0xff]
        %v3503 = vld [vmem:[%s446 + $0x1580] sm:$0xff]
        %v3504 = vld [vmem:[%s446 + $0x1588] sm:$0xff]
        %v3505 = vld [vmem:[%s446 + $0x1590] sm:$0xff]
        %v3506 = vld [vmem:[%s446 + $0x1598] sm:$0xff]
        %v3507 = vld [vmem:[%s446 + $0x15a0] sm:$0xff]
        %v3508 = vld [vmem:[%s446 + $0x15a8] sm:$0xff]
        %v3509 = vld [vmem:[%s446 + $0x15b0] sm:$0xff]
        %v3510 = vld [vmem:[%s446 + $0x15b8] sm:$0xff]
        %v3511 = vld [vmem:[%s446 + $0x15c0] sm:$0xff]
        %v3512 = vld [vmem:[%s446 + $0x15c8] sm:$0xff]
        %v3513 = vld [vmem:[%s446 + $0x15d0] sm:$0xff]
        %v3514 = vld [vmem:[%s446 + $0x15d8] sm:$0xff]
        %v3515 = vld [vmem:[%s446 + $0x15e0] sm:$0xff]
        %v3516 = vld [vmem:[%s446 + $0x15e8] sm:$0xff]
        %v3517 = vld [vmem:[%s446 + $0x15f0] sm:$0xff]
        %v3518 = vld [vmem:[%s446 + $0x15f8] sm:$0xff]
        %v3519 = vrot.slane %v1145, 4
        %3521 = vmatprep.subr.mxu0 %v3456
        %3522 = vmatpush1.msra.mxu0 %v3455
        %3523 = vmatprep.subr.mxu0 %v3460
        %3524 = vmatpush1.msra.mxu0 %v3459
        %3525 = vmatprep.subr.mxu0 %v3464
        %3526 = vmatpush1.msra.mxu0 %v3463
        %3527 = vmatprep.subr.mxu0 %v3468
        %3528 = vmatpush1.msra.mxu0 %v3467
        %3529 = vmatprep.subr.mxu0 %v3472
        %3530 = vmatpush1.msra.mxu0 %v3471
        %3531 = vmatprep.subr.mxu0 %v3476
        %3532 = vmatpush1.msra.mxu0 %v3475
        %3533 = vmatprep.subr.mxu0 %v3480
        %3534 = vmatpush1.msra.mxu0 %v3479
        %3535 = vmatprep.subr.mxu0 %v3484
        %3536 = vmatpush1.msra.mxu0 %v3483
        %3537 = vmatprep.subr.mxu0 %v3488
        %3538 = vmatpush1.msra.mxu0 %v3487
        %3539 = vmatprep.subr.mxu0 %v3492
        %3540 = vmatpush1.msra.mxu0 %v3491
        %3541 = vmatprep.subr.mxu0 %v3496
        %3542 = vmatpush1.msra.mxu0 %v3495
        %3543 = vmatprep.subr.mxu0 %v3500
        %3544 = vmatpush1.msra.mxu0 %v3499
        %3545 = vmatprep.subr.mxu0 %v3504
        %3546 = vmatpush1.msra.mxu0 %v3503
        %3547 = vmatprep.subr.mxu0 %v3508
        %3548 = vmatpush1.msra.mxu0 %v3507
        %3549 = vmatprep.subr.mxu0 %v3512
        %3550 = vmatpush1.msra.mxu0 %v3511
        %3551 = vmatprep.subr.mxu0 %v3516
        %3552 = vmatpush1.msra.mxu0 %v3515
        %3553 = vmatprep.subr.mxu0 0.0
        %3554 = vmatpush1.msra.mxu0 0.0
        %3555 = vmatprep.subr.mxu0 0.0
        %3556 = vmatpush1.msra.mxu0 0.0
        %3557 = vmatprep.subr.mxu0 0.0
        %3558 = vmatpush1.msra.mxu0 0.0
        %3559 = vmatprep.subr.mxu0 0.0
        %3560 = vmatpush1.msra.mxu0 0.0
        %3561 = vmatprep.subr.mxu0 0.0
        %3562 = vmatpush1.msra.mxu0 0.0
        %3563 = vmatprep.subr.mxu0 0.0
        %3564 = vmatpush1.msra.mxu0 0.0
        %3565 = vmatprep.subr.mxu0 0.0
        %3566 = vmatpush1.msra.mxu0 0.0
        %3567 = vmatprep.subr.mxu0 0.0
        %3568 = vmatpush1.msra.mxu0 0.0
        %3569 = vmatprep.subr.mxu0 0.0
        %3570 = vmatpush1.msra.mxu0 0.0
        %3571 = vmatprep.subr.mxu0 0.0
        %3572 = vmatpush1.msra.mxu0 0.0
        %3573 = vmatprep.subr.mxu0 0.0
        %3574 = vmatpush1.msra.mxu0 0.0
        %3575 = vmatprep.subr.mxu0 0.0
        %3576 = vmatpush1.msra.mxu0 0.0
        %3577 = vmatprep.subr.mxu0 0.0
        %3578 = vmatpush1.msra.mxu0 0.0
        %3579 = vmatprep.subr.mxu0 0.0
        %3580 = vmatpush1.msra.mxu0 0.0
        %3581 = vmatprep.subr.mxu0 0.0
        %3582 = vmatpush1.msra.mxu0 0.0
        %3583 = vmatprep.subr.mxu0 0.0
        %3584 = vmatpush1.msra.mxu0 0.0
        %3585 = vmatprep.mubr.f32.mxu0 0.0
        %3586 = vmatmul.mubr.f32.gmra.mrb[0].mxu0 %v3519
        %v3587 = vpop.f32.mrb[0].mxu0
        %v3588 = vadd.f32 0.0, %v3587
        %v3589 = vpop.f32.mrb[0].mxu0
        %v3590 = vadd.f32 0.0, %v3589
        %3591 = vdwg.mxu0
        %3592 = vmatprep.subr.mxu0 %v3458
        %3593 = vmatpush1.msra.mxu0 %v3457
        %3594 = vmatprep.subr.mxu0 %v3462
        %3595 = vmatpush1.msra.mxu0 %v3461
        %3596 = vmatprep.subr.mxu0 %v3466
        %3597 = vmatpush1.msra.mxu0 %v3465
        %3598 = vmatprep.subr.mxu0 %v3470
        %3599 = vmatpush1.msra.mxu0 %v3469
        %3600 = vmatprep.subr.mxu0 %v3474
        %3601 = vmatpush1.msra.mxu0 %v3473
        %3602 = vmatprep.subr.mxu0 %v3478
        %3603 = vmatpush1.msra.mxu0 %v3477
        %3604 = vmatprep.subr.mxu0 %v3482
        %3605 = vmatpush1.msra.mxu0 %v3481
        %3606 = vmatprep.subr.mxu0 %v3486
        %3607 = vmatpush1.msra.mxu0 %v3485
        %3608 = vmatprep.subr.mxu0 %v3490
        %3609 = vmatpush1.msra.mxu0 %v3489
        %3610 = vmatprep.subr.mxu0 %v3494
        %3611 = vmatpush1.msra.mxu0 %v3493
        %3612 = vmatprep.subr.mxu0 %v3498
        %3613 = vmatpush1.msra.mxu0 %v3497
        %3614 = vmatprep.subr.mxu0 %v3502
        %3615 = vmatpush1.msra.mxu0 %v3501
        %3616 = vmatprep.subr.mxu0 %v3506
        %3617 = vmatpush1.msra.mxu0 %v3505
        %3618 = vmatprep.subr.mxu0 %v3510
        %3619 = vmatpush1.msra.mxu0 %v3509
        %3620 = vmatprep.subr.mxu0 %v3514
        %3621 = vmatpush1.msra.mxu0 %v3513
        %3622 = vmatprep.subr.mxu0 %v3518
        %3623 = vmatpush1.msra.mxu0 %v3517
        %3624 = vmatprep.subr.mxu0 0.0
        %3625 = vmatpush1.msra.mxu0 0.0
        %3626 = vmatprep.subr.mxu0 0.0
        %3627 = vmatpush1.msra.mxu0 0.0
        %3628 = vmatprep.subr.mxu0 0.0
        %3629 = vmatpush1.msra.mxu0 0.0
        %3630 = vmatprep.subr.mxu0 0.0
        %3631 = vmatpush1.msra.mxu0 0.0
        %3632 = vmatprep.subr.mxu0 0.0
        %3633 = vmatpush1.msra.mxu0 0.0
        %3634 = vmatprep.subr.mxu0 0.0
        %3635 = vmatpush1.msra.mxu0 0.0
        %3636 = vmatprep.subr.mxu0 0.0
        %3637 = vmatpush1.msra.mxu0 0.0
        %3638 = vmatprep.subr.mxu0 0.0
        %3639 = vmatpush1.msra.mxu0 0.0
        %3640 = vmatprep.subr.mxu0 0.0
        %3641 = vmatpush1.msra.mxu0 0.0
        %3642 = vmatprep.subr.mxu0 0.0
        %3643 = vmatpush1.msra.mxu0 0.0
        %3644 = vmatprep.subr.mxu0 0.0
        %3645 = vmatpush1.msra.mxu0 0.0
        %3646 = vmatprep.subr.mxu0 0.0
        %3647 = vmatpush1.msra.mxu0 0.0
        %3648 = vmatprep.subr.mxu0 0.0
        %3649 = vmatpush1.msra.mxu0 0.0
        %3650 = vmatprep.subr.mxu0 0.0
        %3651 = vmatpush1.msra.mxu0 0.0
        %3652 = vmatprep.subr.mxu0 0.0
        %3653 = vmatpush1.msra.mxu0 0.0
        %3654 = vmatprep.subr.mxu0 0.0
        %3655 = vmatpush1.msra.mxu0 0.0
        %3656 = vmatprep.mubr.f32.mxu0 0.0
        %3657 = vmatmul.mubr.f32.gmra.mrb[0].mxu0 %v3519
        %v3658 = vpop.f32.mrb[0].mxu0
        %v3659 = vadd.f32 0.0, %v3658
        %v3660 = vpop.f32.mrb[0].mxu0
        %v3661 = vadd.f32 0.0, %v3660
        %3662 = vdwg.mxu0
        %v3667 = vcombine.low %v3588, %v3590
        %v3668 = vcombine.low %v3659, %v3661
        %v3670 = vunpack.c.l.s4 1983009808
        %v3671 = vunpack.c.0.s8 %v3670
        %v3672 = vlaneseq
        %v3673 = vshrl.u32 %v3672, 7
        %v3674 = vsub.s32 %v3671, %v3673
        %v3675 = vrot.slane %v3667, %v3674
        %v3677 = vunpack.c.l.s4 1983009808
        %v3678 = vunpack.c.0.s8 %v3677
        %v3679 = vlaneseq
        %v3680 = vshrl.u32 %v3679, 7
        %v3681 = vsub.s32 %v3678, %v3680
        %v3682 = vrot.slane %v3668, %v3681
        %v3683 = vcombine.low %v3675, %v3682
        %v3685 = vadd.f32 %v3454, %v3683
        %v3686 = vld [vmem:[%s446 + $0x1600] sm:$0xff]
        %v3687 = vld [vmem:[%s446 + $0x1608] sm:$0xff]
        %v3688 = vld [vmem:[%s446 + $0x1610] sm:$0xff]
        %v3689 = vld [vmem:[%s446 + $0x1618] sm:$0xff]
        %v3690 = vld [vmem:[%s446 + $0x1620] sm:$0xff]
        %v3691 = vld [vmem:[%s446 + $0x1628] sm:$0xff]
        %v3692 = vld [vmem:[%s446 + $0x1630] sm:$0xff]
        %v3693 = vld [vmem:[%s446 + $0x1638] sm:$0xff]
        %v3694 = vld [vmem:[%s446 + $0x1640] sm:$0xff]
        %v3695 = vld [vmem:[%s446 + $0x1648] sm:$0xff]
        %v3696 = vld [vmem:[%s446 + $0x1650] sm:$0xff]
        %v3697 = vld [vmem:[%s446 + $0x1658] sm:$0xff]
        %v3698 = vld [vmem:[%s446 + $0x1660] sm:$0xff]
        %v3699 = vld [vmem:[%s446 + $0x1668] sm:$0xff]
        %v3700 = vld [vmem:[%s446 + $0x1670] sm:$0xff]
        %v3701 = vld [vmem:[%s446 + $0x1678] sm:$0xff]
        %v3702 = vld [vmem:[%s446 + $0x1680] sm:$0xff]
        %v3703 = vld [vmem:[%s446 + $0x1688] sm:$0xff]
        %v3704 = vld [vmem:[%s446 + $0x1690] sm:$0xff]
        %v3705 = vld [vmem:[%s446 + $0x1698] sm:$0xff]
        %v3706 = vld [vmem:[%s446 + $0x16a0] sm:$0xff]
        %v3707 = vld [vmem:[%s446 + $0x16a8] sm:$0xff]
        %v3708 = vld [vmem:[%s446 + $0x16b0] sm:$0xff]
        %v3709 = vld [vmem:[%s446 + $0x16b8] sm:$0xff]
        %v3710 = vld [vmem:[%s446 + $0x16c0] sm:$0xff]
        %v3711 = vld [vmem:[%s446 + $0x16c8] sm:$0xff]
        %v3712 = vld [vmem:[%s446 + $0x16d0] sm:$0xff]
        %v3713 = vld [vmem:[%s446 + $0x16d8] sm:$0xff]
        %v3714 = vld [vmem:[%s446 + $0x16e0] sm:$0xff]
        %v3715 = vld [vmem:[%s446 + $0x16e8] sm:$0xff]
        %v3716 = vld [vmem:[%s446 + $0x16f0] sm:$0xff]
        %v3717 = vld [vmem:[%s446 + $0x16f8] sm:$0xff]
        %v3718 = vld [vmem:[%s446 + $0x1700] sm:$0xff]
        %v3719 = vld [vmem:[%s446 + $0x1708] sm:$0xff]
        %v3720 = vld [vmem:[%s446 + $0x1710] sm:$0xff]
        %v3721 = vld [vmem:[%s446 + $0x1718] sm:$0xff]
        %v3722 = vld [vmem:[%s446 + $0x1720] sm:$0xff]
        %v3723 = vld [vmem:[%s446 + $0x1728] sm:$0xff]
        %v3724 = vld [vmem:[%s446 + $0x1730] sm:$0xff]
        %v3725 = vld [vmem:[%s446 + $0x1738] sm:$0xff]
        %v3726 = vld [vmem:[%s446 + $0x1740] sm:$0xff]
        %v3727 = vld [vmem:[%s446 + $0x1748] sm:$0xff]
        %v3728 = vld [vmem:[%s446 + $0x1750] sm:$0xff]
        %v3729 = vld [vmem:[%s446 + $0x1758] sm:$0xff]
        %v3730 = vld [vmem:[%s446 + $0x1760] sm:$0xff]
        %v3731 = vld [vmem:[%s446 + $0x1768] sm:$0xff]
        %v3732 = vld [vmem:[%s446 + $0x1770] sm:$0xff]
        %v3733 = vld [vmem:[%s446 + $0x1778] sm:$0xff]
        %v3734 = vld [vmem:[%s446 + $0x1780] sm:$0xff]
        %v3735 = vld [vmem:[%s446 + $0x1788] sm:$0xff]
        %v3736 = vld [vmem:[%s446 + $0x1790] sm:$0xff]
        %v3737 = vld [vmem:[%s446 + $0x1798] sm:$0xff]
        %v3738 = vld [vmem:[%s446 + $0x17a0] sm:$0xff]
        %v3739 = vld [vmem:[%s446 + $0x17a8] sm:$0xff]
        %v3740 = vld [vmem:[%s446 + $0x17b0] sm:$0xff]
        %v3741 = vld [vmem:[%s446 + $0x17b8] sm:$0xff]
        %v3742 = vld [vmem:[%s446 + $0x17c0] sm:$0xff]
        %v3743 = vld [vmem:[%s446 + $0x17c8] sm:$0xff]
        %v3744 = vld [vmem:[%s446 + $0x17d0] sm:$0xff]
        %v3745 = vld [vmem:[%s446 + $0x17d8] sm:$0xff]
        %v3746 = vld [vmem:[%s446 + $0x17e0] sm:$0xff]
        %v3747 = vld [vmem:[%s446 + $0x17e8] sm:$0xff]
        %v3748 = vld [vmem:[%s446 + $0x17f0] sm:$0xff]
        %v3749 = vld [vmem:[%s446 + $0x17f8] sm:$0xff]
        %v3750 = vrot.slane %v1145, 6
        %3752 = vmatprep.subr.mxu0 %v3687
        %3753 = vmatpush1.msra.mxu0 %v3686
        %3754 = vmatprep.subr.mxu0 %v3691
        %3755 = vmatpush1.msra.mxu0 %v3690
        %3756 = vmatprep.subr.mxu0 %v3695
        %3757 = vmatpush1.msra.mxu0 %v3694
        %3758 = vmatprep.subr.mxu0 %v3699
        %3759 = vmatpush1.msra.mxu0 %v3698
        %3760 = vmatprep.subr.mxu0 %v3703
        %3761 = vmatpush1.msra.mxu0 %v3702
        %3762 = vmatprep.subr.mxu0 %v3707
        %3763 = vmatpush1.msra.mxu0 %v3706
        %3764 = vmatprep.subr.mxu0 %v3711
        %3765 = vmatpush1.msra.mxu0 %v3710
        %3766 = vmatprep.subr.mxu0 %v3715
        %3767 = vmatpush1.msra.mxu0 %v3714
        %3768 = vmatprep.subr.mxu0 %v3719
        %3769 = vmatpush1.msra.mxu0 %v3718
        %3770 = vmatprep.subr.mxu0 %v3723
        %3771 = vmatpush1.msra.mxu0 %v3722
        %3772 = vmatprep.subr.mxu0 %v3727
        %3773 = vmatpush1.msra.mxu0 %v3726
        %3774 = vmatprep.subr.mxu0 %v3731
        %3775 = vmatpush1.msra.mxu0 %v3730
        %3776 = vmatprep.subr.mxu0 %v3735
        %3777 = vmatpush1.msra.mxu0 %v3734
        %3778 = vmatprep.subr.mxu0 %v3739
        %3779 = vmatpush1.msra.mxu0 %v3738
        %3780 = vmatprep.subr.mxu0 %v3743
        %3781 = vmatpush1.msra.mxu0 %v3742
        %3782 = vmatprep.subr.mxu0 %v3747
        %3783 = vmatpush1.msra.mxu0 %v3746
        %3784 = vmatprep.subr.mxu0 0.0
        %3785 = vmatpush1.msra.mxu0 0.0
        %3786 = vmatprep.subr.mxu0 0.0
        %3787 = vmatpush1.msra.mxu0 0.0
        %3788 = vmatprep.subr.mxu0 0.0
        %3789 = vmatpush1.msra.mxu0 0.0
        %3790 = vmatprep.subr.mxu0 0.0
        %3791 = vmatpush1.msra.mxu0 0.0
        %3792 = vmatprep.subr.mxu0 0.0
        %3793 = vmatpush1.msra.mxu0 0.0
        %3794 = vmatprep.subr.mxu0 0.0
        %3795 = vmatpush1.msra.mxu0 0.0
        %3796 = vmatprep.subr.mxu0 0.0
        %3797 = vmatpush1.msra.mxu0 0.0
        %3798 = vmatprep.subr.mxu0 0.0
        %3799 = vmatpush1.msra.mxu0 0.0
        %3800 = vmatprep.subr.mxu0 0.0
        %3801 = vmatpush1.msra.mxu0 0.0
        %3802 = vmatprep.subr.mxu0 0.0
        %3803 = vmatpush1.msra.mxu0 0.0
        %3804 = vmatprep.subr.mxu0 0.0
        %3805 = vmatpush1.msra.mxu0 0.0
        %3806 = vmatprep.subr.mxu0 0.0
        %3807 = vmatpush1.msra.mxu0 0.0
        %3808 = vmatprep.subr.mxu0 0.0
        %3809 = vmatpush1.msra.mxu0 0.0
        %3810 = vmatprep.subr.mxu0 0.0
        %3811 = vmatpush1.msra.mxu0 0.0
        %3812 = vmatprep.subr.mxu0 0.0
        %3813 = vmatpush1.msra.mxu0 0.0
        %3814 = vmatprep.subr.mxu0 0.0
        %3815 = vmatpush1.msra.mxu0 0.0
        %3816 = vmatprep.mubr.f32.mxu0 0.0
        %3817 = vmatmul.mubr.f32.gmra.mrb[0].mxu0 %v3750
        %v3818 = vpop.f32.mrb[0].mxu0
        %v3819 = vadd.f32 0.0, %v3818
        %v3820 = vpop.f32.mrb[0].mxu0
        %v3821 = vadd.f32 0.0, %v3820
        %3822 = vdwg.mxu0
        %3823 = vmatprep.subr.mxu0 %v3689
        %3824 = vmatpush1.msra.mxu0 %v3688
        %3825 = vmatprep.subr.mxu0 %v3693
        %3826 = vmatpush1.msra.mxu0 %v3692
        %3827 = vmatprep.subr.mxu0 %v3697
        %3828 = vmatpush1.msra.mxu0 %v3696
        %3829 = vmatprep.subr.mxu0 %v3701
        %3830 = vmatpush1.msra.mxu0 %v3700
        %3831 = vmatprep.subr.mxu0 %v3705
        %3832 = vmatpush1.msra.mxu0 %v3704
        %3833 = vmatprep.subr.mxu0 %v3709
        %3834 = vmatpush1.msra.mxu0 %v3708
        %3835 = vmatprep.subr.mxu0 %v3713
        %3836 = vmatpush1.msra.mxu0 %v3712
        %3837 = vmatprep.subr.mxu0 %v3717
        %3838 = vmatpush1.msra.mxu0 %v3716
        %3839 = vmatprep.subr.mxu0 %v3721
        %3840 = vmatpush1.msra.mxu0 %v3720
        %3841 = vmatprep.subr.mxu0 %v3725
        %3842 = vmatpush1.msra.mxu0 %v3724
        %3843 = vmatprep.subr.mxu0 %v3729
        %3844 = vmatpush1.msra.mxu0 %v3728
        %3845 = vmatprep.subr.mxu0 %v3733
        %3846 = vmatpush1.msra.mxu0 %v3732
        %3847 = vmatprep.subr.mxu0 %v3737
        %3848 = vmatpush1.msra.mxu0 %v3736
        %3849 = vmatprep.subr.mxu0 %v3741
        %3850 = vmatpush1.msra.mxu0 %v3740
        %3851 = vmatprep.subr.mxu0 %v3745
        %3852 = vmatpush1.msra.mxu0 %v3744
        %3853 = vmatprep.subr.mxu0 %v3749
        %3854 = vmatpush1.msra.mxu0 %v3748
        %3855 = vmatprep.subr.mxu0 0.0
        %3856 = vmatpush1.msra.mxu0 0.0
        %3857 = vmatprep.subr.mxu0 0.0
        %3858 = vmatpush1.msra.mxu0 0.0
        %3859 = vmatprep.subr.mxu0 0.0
        %3860 = vmatpush1.msra.mxu0 0.0
        %3861 = vmatprep.subr.mxu0 0.0
        %3862 = vmatpush1.msra.mxu0 0.0
        %3863 = vmatprep.subr.mxu0 0.0
        %3864 = vmatpush1.msra.mxu0 0.0
        %3865 = vmatprep.subr.mxu0 0.0
        %3866 = vmatpush1.msra.mxu0 0.0
        %3867 = vmatprep.subr.mxu0 0.0
        %3868 = vmatpush1.msra.mxu0 0.0
        %3869 = vmatprep.subr.mxu0 0.0
        %3870 = vmatpush1.msra.mxu0 0.0
        %3871 = vmatprep.subr.mxu0 0.0
        %3872 = vmatpush1.msra.mxu0 0.0
        %3873 = vmatprep.subr.mxu0 0.0
        %3874 = vmatpush1.msra.mxu0 0.0
        %3875 = vmatprep.subr.mxu0 0.0
        %3876 = vmatpush1.msra.mxu0 0.0
        %3877 = vmatprep.subr.mxu0 0.0
        %3878 = vmatpush1.msra.mxu0 0.0
        %3879 = vmatprep.subr.mxu0 0.0
        %3880 = vmatpush1.msra.mxu0 0.0
        %3881 = vmatprep.subr.mxu0 0.0
        %3882 = vmatpush1.msra.mxu0 0.0
        %3883 = vmatprep.subr.mxu0 0.0
        %3884 = vmatpush1.msra.mxu0 0.0
        %3885 = vmatprep.subr.mxu0 0.0
        %3886 = vmatpush1.msra.mxu0 0.0
        %3887 = vmatprep.mubr.f32.mxu0 0.0
        %3888 = vmatmul.mubr.f32.gmra.mrb[0].mxu0 %v3750
        %v3889 = vpop.f32.mrb[0].mxu0
        %v3890 = vadd.f32 0.0, %v3889
        %v3891 = vpop.f32.mrb[0].mxu0
        %v3892 = vadd.f32 0.0, %v3891
        %3893 = vdwg.mxu0
        %v3898 = vcombine.low %v3819, %v3821
        %v3899 = vcombine.low %v3890, %v3892
        %v3901 = vunpack.c.l.s4 1983009808
        %v3902 = vunpack.c.0.s8 %v3901
        %v3903 = vlaneseq
        %v3904 = vshrl.u32 %v3903, 7
        %v3905 = vsub.s32 %v3902, %v3904
        %v3906 = vrot.slane %v3898, %v3905
        %v3908 = vunpack.c.l.s4 1983009808
        %v3909 = vunpack.c.0.s8 %v3908
        %v3910 = vlaneseq
        %v3911 = vshrl.u32 %v3910, 7
        %v3912 = vsub.s32 %v3909, %v3911
        %v3913 = vrot.slane %v3899, %v3912
        %v3914 = vcombine.low %v3906, %v3913
        %v3916 = vadd.f32 %v3685, %v3914
        %v3917 = vld [vmem:[%s446 + $0x1800] sm:$0xff]
        %v3918 = vld [vmem:[%s446 + $0x1808] sm:$0xff]
        %v3919 = vld [vmem:[%s446 + $0x1810] sm:$0xff]
        %v3920 = vld [vmem:[%s446 + $0x1818] sm:$0xff]
        %v3921 = vld [vmem:[%s446 + $0x1820] sm:$0xff]
        %v3922 = vld [vmem:[%s446 + $0x1828] sm:$0xff]
        %v3923 = vld [vmem:[%s446 + $0x1830] sm:$0xff]
        %v3924 = vld [vmem:[%s446 + $0x1838] sm:$0xff]
        %v3925 = vld [vmem:[%s446 + $0x1840] sm:$0xff]
        %v3926 = vld [vmem:[%s446 + $0x1848] sm:$0xff]
        %v3927 = vld [vmem:[%s446 + $0x1850] sm:$0xff]
        %v3928 = vld [vmem:[%s446 + $0x1858] sm:$0xff]
        %v3929 = vld [vmem:[%s446 + $0x1860] sm:$0xff]
        %v3930 = vld [vmem:[%s446 + $0x1868] sm:$0xff]
        %v3931 = vld [vmem:[%s446 + $0x1870] sm:$0xff]
        %v3932 = vld [vmem:[%s446 + $0x1878] sm:$0xff]
        %v3933 = vld [vmem:[%s446 + $0x1880] sm:$0xff]
        %v3934 = vld [vmem:[%s446 + $0x1888] sm:$0xff]
        %v3935 = vld [vmem:[%s446 + $0x1890] sm:$0xff]
        %v3936 = vld [vmem:[%s446 + $0x1898] sm:$0xff]
        %v3937 = vld [vmem:[%s446 + $0x18a0] sm:$0xff]
        %v3938 = vld [vmem:[%s446 + $0x18a8] sm:$0xff]
        %v3939 = vld [vmem:[%s446 + $0x18b0] sm:$0xff]
        %v3940 = vld [vmem:[%s446 + $0x18b8] sm:$0xff]
        %v3941 = vld [vmem:[%s446 + $0x18c0] sm:$0xff]
        %v3942 = vld [vmem:[%s446 + $0x18c8] sm:$0xff]
        %v3943 = vld [vmem:[%s446 + $0x18d0] sm:$0xff]
        %v3944 = vld [vmem:[%s446 + $0x18d8] sm:$0xff]
        %v3945 = vld [vmem:[%s446 + $0x18e0] sm:$0xff]
        %v3946 = vld [vmem:[%s446 + $0x18e8] sm:$0xff]
        %v3947 = vld [vmem:[%s446 + $0x18f0] sm:$0xff]
        %v3948 = vld [vmem:[%s446 + $0x18f8] sm:$0xff]
        %v3949 = vld [vmem:[%s446 + $0x1900] sm:$0xff]
        %v3950 = vld [vmem:[%s446 + $0x1908] sm:$0xff]
        %v3951 = vld [vmem:[%s446 + $0x1910] sm:$0xff]
        %v3952 = vld [vmem:[%s446 + $0x1918] sm:$0xff]
        %v3953 = vld [vmem:[%s446 + $0x1920] sm:$0xff]
        %v3954 = vld [vmem:[%s446 + $0x1928] sm:$0xff]
        %v3955 = vld [vmem:[%s446 + $0x1930] sm:$0xff]
        %v3956 = vld [vmem:[%s446 + $0x1938] sm:$0xff]
        %v3957 = vld [vmem:[%s446 + $0x1940] sm:$0xff]
        %v3958 = vld [vmem:[%s446 + $0x1948] sm:$0xff]
        %v3959 = vld [vmem:[%s446 + $0x1950] sm:$0xff]
        %v3960 = vld [vmem:[%s446 + $0x1958] sm:$0xff]
        %v3961 = vld [vmem:[%s446 + $0x1960] sm:$0xff]
        %v3962 = vld [vmem:[%s446 + $0x1968] sm:$0xff]
        %v3963 = vld [vmem:[%s446 + $0x1970] sm:$0xff]
        %v3964 = vld [vmem:[%s446 + $0x1978] sm:$0xff]
        %v3965 = vld [vmem:[%s446 + $0x1980] sm:$0xff]
        %v3966 = vld [vmem:[%s446 + $0x1988] sm:$0xff]
        %v3967 = vld [vmem:[%s446 + $0x1990] sm:$0xff]
        %v3968 = vld [vmem:[%s446 + $0x1998] sm:$0xff]
        %v3969 = vld [vmem:[%s446 + $0x19a0] sm:$0xff]
        %v3970 = vld [vmem:[%s446 + $0x19a8] sm:$0xff]
        %v3971 = vld [vmem:[%s446 + $0x19b0] sm:$0xff]
        %v3972 = vld [vmem:[%s446 + $0x19b8] sm:$0xff]
        %v3973 = vld [vmem:[%s446 + $0x19c0] sm:$0xff]
        %v3974 = vld [vmem:[%s446 + $0x19c8] sm:$0xff]
        %v3975 = vld [vmem:[%s446 + $0x19d0] sm:$0xff]
        %v3976 = vld [vmem:[%s446 + $0x19d8] sm:$0xff]
        %v3977 = vld [vmem:[%s446 + $0x19e0] sm:$0xff]
        %v3978 = vld [vmem:[%s446 + $0x19e8] sm:$0xff]
        %v3979 = vld [vmem:[%s446 + $0x19f0] sm:$0xff]
        %v3980 = vld [vmem:[%s446 + $0x19f8] sm:$0xff]
        %3981 = vmatprep.subr.mxu0 %v3918
        %3982 = vmatpush1.msra.mxu0 %v3917
        %3983 = vmatprep.subr.mxu0 %v3922
        %3984 = vmatpush1.msra.mxu0 %v3921
        %3985 = vmatprep.subr.mxu0 %v3926
        %3986 = vmatpush1.msra.mxu0 %v3925
        %3987 = vmatprep.subr.mxu0 %v3930
        %3988 = vmatpush1.msra.mxu0 %v3929
        %3989 = vmatprep.subr.mxu0 %v3934
        %3990 = vmatpush1.msra.mxu0 %v3933
        %3991 = vmatprep.subr.mxu0 %v3938
        %3992 = vmatpush1.msra.mxu0 %v3937
        %3993 = vmatprep.subr.mxu0 %v3942
        %3994 = vmatpush1.msra.mxu0 %v3941
        %3995 = vmatprep.subr.mxu0 %v3946
        %3996 = vmatpush1.msra.mxu0 %v3945
        %3997 = vmatprep.subr.mxu0 %v3950
        %3998 = vmatpush1.msra.mxu0 %v3949
        %3999 = vmatprep.subr.mxu0 %v3954
        %4000 = vmatpush1.msra.mxu0 %v3953
        %4001 = vmatprep.subr.mxu0 %v3958
        %4002 = vmatpush1.msra.mxu0 %v3957
        %4003 = vmatprep.subr.mxu0 %v3962
        %4004 = vmatpush1.msra.mxu0 %v3961
        %4005 = vmatprep.subr.mxu0 %v3966
        %4006 = vmatpush1.msra.mxu0 %v3965
        %4007 = vmatprep.subr.mxu0 %v3970
        %4008 = vmatpush1.msra.mxu0 %v3969
        %4009 = vmatprep.subr.mxu0 %v3974
        %4010 = vmatpush1.msra.mxu0 %v3973
        %4011 = vmatprep.subr.mxu0 %v3978
        %4012 = vmatpush1.msra.mxu0 %v3977
        %4013 = vmatprep.subr.mxu0 0.0
        %4014 = vmatpush1.msra.mxu0 0.0
        %4015 = vmatprep.subr.mxu0 0.0
        %4016 = vmatpush1.msra.mxu0 0.0
        %4017 = vmatprep.subr.mxu0 0.0
        %4018 = vmatpush1.msra.mxu0 0.0
        %4019 = vmatprep.subr.mxu0 0.0
        %4020 = vmatpush1.msra.mxu0 0.0
        %4021 = vmatprep.subr.mxu0 0.0
        %4022 = vmatpush1.msra.mxu0 0.0
        %4023 = vmatprep.subr.mxu0 0.0
        %4024 = vmatpush1.msra.mxu0 0.0
        %4025 = vmatprep.subr.mxu0 0.0
        %4026 = vmatpush1.msra.mxu0 0.0
        %4027 = vmatprep.subr.mxu0 0.0
        %4028 = vmatpush1.msra.mxu0 0.0
        %4029 = vmatprep.subr.mxu0 0.0
        %4030 = vmatpush1.msra.mxu0 0.0
        %4031 = vmatprep.subr.mxu0 0.0
        %4032 = vmatpush1.msra.mxu0 0.0
        %4033 = vmatprep.subr.mxu0 0.0
        %4034 = vmatpush1.msra.mxu0 0.0
        %4035 = vmatprep.subr.mxu0 0.0
        %4036 = vmatpush1.msra.mxu0 0.0
        %4037 = vmatprep.subr.mxu0 0.0
        %4038 = vmatpush1.msra.mxu0 0.0
        %4039 = vmatprep.subr.mxu0 0.0
        %4040 = vmatpush1.msra.mxu0 0.0
        %4041 = vmatprep.subr.mxu0 0.0
        %4042 = vmatpush1.msra.mxu0 0.0
        %4043 = vmatprep.subr.mxu0 0.0
        %4044 = vmatpush1.msra.mxu0 0.0
        %4045 = vmatprep.mubr.f32.mxu0 0.0
        %4046 = vmatmul.mubr.f32.gmra.mrb[0].mxu0 %v1146
        %v4047 = vpop.f32.mrb[0].mxu0
        %v4048 = vadd.f32 0.0, %v4047
        %v4049 = vpop.f32.mrb[0].mxu0
        %v4050 = vadd.f32 0.0, %v4049
        %4051 = vdwg.mxu0
        %4052 = vmatprep.subr.mxu0 %v3920
        %4053 = vmatpush1.msra.mxu0 %v3919
        %4054 = vmatprep.subr.mxu0 %v3924
        %4055 = vmatpush1.msra.mxu0 %v3923
        %4056 = vmatprep.subr.mxu0 %v3928
        %4057 = vmatpush1.msra.mxu0 %v3927
        %4058 = vmatprep.subr.mxu0 %v3932
        %4059 = vmatpush1.msra.mxu0 %v3931
        %4060 = vmatprep.subr.mxu0 %v3936
        %4061 = vmatpush1.msra.mxu0 %v3935
        %4062 = vmatprep.subr.mxu0 %v3940
        %4063 = vmatpush1.msra.mxu0 %v3939
        %4064 = vmatprep.subr.mxu0 %v3944
        %4065 = vmatpush1.msra.mxu0 %v3943
        %4066 = vmatprep.subr.mxu0 %v3948
        %4067 = vmatpush1.msra.mxu0 %v3947
        %4068 = vmatprep.subr.mxu0 %v3952
        %4069 = vmatpush1.msra.mxu0 %v3951
        %4070 = vmatprep.subr.mxu0 %v3956
        %4071 = vmatpush1.msra.mxu0 %v3955
        %4072 = vmatprep.subr.mxu0 %v3960
        %4073 = vmatpush1.msra.mxu0 %v3959
        %4074 = vmatprep.subr.mxu0 %v3964
        %4075 = vmatpush1.msra.mxu0 %v3963
        %4076 = vmatprep.subr.mxu0 %v3968
        %4077 = vmatpush1.msra.mxu0 %v3967
        %4078 = vmatprep.subr.mxu0 %v3972
        %4079 = vmatpush1.msra.mxu0 %v3971
        %4080 = vmatprep.subr.mxu0 %v3976
        %4081 = vmatpush1.msra.mxu0 %v3975
        %4082 = vmatprep.subr.mxu0 %v3980
        %4083 = vmatpush1.msra.mxu0 %v3979
        %4084 = vmatprep.subr.mxu0 0.0
        %4085 = vmatpush1.msra.mxu0 0.0
        %4086 = vmatprep.subr.mxu0 0.0
        %4087 = vmatpush1.msra.mxu0 0.0
        %4088 = vmatprep.subr.mxu0 0.0
        %4089 = vmatpush1.msra.mxu0 0.0
        %4090 = vmatprep.subr.mxu0 0.0
        %4091 = vmatpush1.msra.mxu0 0.0
        %4092 = vmatprep.subr.mxu0 0.0
        %4093 = vmatpush1.msra.mxu0 0.0
        %4094 = vmatprep.subr.mxu0 0.0
        %4095 = vmatpush1.msra.mxu0 0.0
        %4096 = vmatprep.subr.mxu0 0.0
        %4097 = vmatpush1.msra.mxu0 0.0
        %4098 = vmatprep.subr.mxu0 0.0
        %4099 = vmatpush1.msra.mxu0 0.0
        %4100 = vmatprep.subr.mxu0 0.0
        %4101 = vmatpush1.msra.mxu0 0.0
        %4102 = vmatprep.subr.mxu0 0.0
        %4103 = vmatpush1.msra.mxu0 0.0
        %4104 = vmatprep.subr.mxu0 0.0
        %4105 = vmatpush1.msra.mxu0 0.0
        %4106 = vmatprep.subr.mxu0 0.0
        %4107 = vmatpush1.msra.mxu0 0.0
        %4108 = vmatprep.subr.mxu0 0.0
        %4109 = vmatpush1.msra.mxu0 0.0
        %4110 = vmatprep.subr.mxu0 0.0
        %4111 = vmatpush1.msra.mxu0 0.0
        %4112 = vmatprep.subr.mxu0 0.0
        %4113 = vmatpush1.msra.mxu0 0.0
        %4114 = vmatprep.subr.mxu0 0.0
        %4115 = vmatpush1.msra.mxu0 0.0
        %4116 = vmatprep.mubr.f32.mxu0 0.0
        %4117 = vmatmul.mubr.f32.gmra.mrb[0].mxu0 %v1146
        %v4118 = vpop.f32.mrb[0].mxu0
        %v4119 = vadd.f32 0.0, %v4118
        %v4120 = vpop.f32.mrb[0].mxu0
        %v4121 = vadd.f32 0.0, %v4120
        %4122 = vdwg.mxu0
        %v4127 = vcombine.low %v4048, %v4050
        %v4128 = vcombine.low %v4119, %v4121
        %v4130 = vunpack.c.l.s4 1983009808
        %v4131 = vunpack.c.0.s8 %v4130
        %v4132 = vlaneseq
        %v4133 = vshrl.u32 %v4132, 7
        %v4134 = vsub.s32 %v4131, %v4133
        %v4135 = vrot.slane %v4127, %v4134
        %v4137 = vunpack.c.l.s4 1983009808
        %v4138 = vunpack.c.0.s8 %v4137
        %v4139 = vlaneseq
        %v4140 = vshrl.u32 %v4139, 7
        %v4141 = vsub.s32 %v4138, %v4140
        %v4142 = vrot.slane %v4128, %v4141
        %v4143 = vcombine.low %v4135, %v4142
        %v4145 = vadd.f32 %v3916, %v4143
        %v4146 = vld [vmem:[%s446 + $0x1a00] sm:$0xff]
        %v4147 = vld [vmem:[%s446 + $0x1a08] sm:$0xff]
        %v4148 = vld [vmem:[%s446 + $0x1a10] sm:$0xff]
        %v4149 = vld [vmem:[%s446 + $0x1a18] sm:$0xff]
        %v4150 = vld [vmem:[%s446 + $0x1a20] sm:$0xff]
        %v4151 = vld [vmem:[%s446 + $0x1a28] sm:$0xff]
        %v4152 = vld [vmem:[%s446 + $0x1a30] sm:$0xff]
        %v4153 = vld [vmem:[%s446 + $0x1a38] sm:$0xff]
        %v4154 = vld [vmem:[%s446 + $0x1a40] sm:$0xff]
        %v4155 = vld [vmem:[%s446 + $0x1a48] sm:$0xff]
        %v4156 = vld [vmem:[%s446 + $0x1a50] sm:$0xff]
        %v4157 = vld [vmem:[%s446 + $0x1a58] sm:$0xff]
        %v4158 = vld [vmem:[%s446 + $0x1a60] sm:$0xff]
        %v4159 = vld [vmem:[%s446 + $0x1a68] sm:$0xff]
        %v4160 = vld [vmem:[%s446 + $0x1a70] sm:$0xff]
        %v4161 = vld [vmem:[%s446 + $0x1a78] sm:$0xff]
        %v4162 = vld [vmem:[%s446 + $0x1a80] sm:$0xff]
        %v4163 = vld [vmem:[%s446 + $0x1a88] sm:$0xff]
        %v4164 = vld [vmem:[%s446 + $0x1a90] sm:$0xff]
        %v4165 = vld [vmem:[%s446 + $0x1a98] sm:$0xff]
        %v4166 = vld [vmem:[%s446 + $0x1aa0] sm:$0xff]
        %v4167 = vld [vmem:[%s446 + $0x1aa8] sm:$0xff]
        %v4168 = vld [vmem:[%s446 + $0x1ab0] sm:$0xff]
        %v4169 = vld [vmem:[%s446 + $0x1ab8] sm:$0xff]
        %v4170 = vld [vmem:[%s446 + $0x1ac0] sm:$0xff]
        %v4171 = vld [vmem:[%s446 + $0x1ac8] sm:$0xff]
        %v4172 = vld [vmem:[%s446 + $0x1ad0] sm:$0xff]
        %v4173 = vld [vmem:[%s446 + $0x1ad8] sm:$0xff]
        %v4174 = vld [vmem:[%s446 + $0x1ae0] sm:$0xff]
        %v4175 = vld [vmem:[%s446 + $0x1ae8] sm:$0xff]
        %v4176 = vld [vmem:[%s446 + $0x1af0] sm:$0xff]
        %v4177 = vld [vmem:[%s446 + $0x1af8] sm:$0xff]
        %v4178 = vld [vmem:[%s446 + $0x1b00] sm:$0xff]
        %v4179 = vld [vmem:[%s446 + $0x1b08] sm:$0xff]
        %v4180 = vld [vmem:[%s446 + $0x1b10] sm:$0xff]
        %v4181 = vld [vmem:[%s446 + $0x1b18] sm:$0xff]
        %v4182 = vld [vmem:[%s446 + $0x1b20] sm:$0xff]
        %v4183 = vld [vmem:[%s446 + $0x1b28] sm:$0xff]
        %v4184 = vld [vmem:[%s446 + $0x1b30] sm:$0xff]
        %v4185 = vld [vmem:[%s446 + $0x1b38] sm:$0xff]
        %v4186 = vld [vmem:[%s446 + $0x1b40] sm:$0xff]
        %v4187 = vld [vmem:[%s446 + $0x1b48] sm:$0xff]
        %v4188 = vld [vmem:[%s446 + $0x1b50] sm:$0xff]
        %v4189 = vld [vmem:[%s446 + $0x1b58] sm:$0xff]
        %v4190 = vld [vmem:[%s446 + $0x1b60] sm:$0xff]
        %v4191 = vld [vmem:[%s446 + $0x1b68] sm:$0xff]
        %v4192 = vld [vmem:[%s446 + $0x1b70] sm:$0xff]
        %v4193 = vld [vmem:[%s446 + $0x1b78] sm:$0xff]
        %v4194 = vld [vmem:[%s446 + $0x1b80] sm:$0xff]
        %v4195 = vld [vmem:[%s446 + $0x1b88] sm:$0xff]
        %v4196 = vld [vmem:[%s446 + $0x1b90] sm:$0xff]
        %v4197 = vld [vmem:[%s446 + $0x1b98] sm:$0xff]
        %v4198 = vld [vmem:[%s446 + $0x1ba0] sm:$0xff]
        %v4199 = vld [vmem:[%s446 + $0x1ba8] sm:$0xff]
        %v4200 = vld [vmem:[%s446 + $0x1bb0] sm:$0xff]
        %v4201 = vld [vmem:[%s446 + $0x1bb8] sm:$0xff]
        %v4202 = vld [vmem:[%s446 + $0x1bc0] sm:$0xff]
        %v4203 = vld [vmem:[%s446 + $0x1bc8] sm:$0xff]
        %v4204 = vld [vmem:[%s446 + $0x1bd0] sm:$0xff]
        %v4205 = vld [vmem:[%s446 + $0x1bd8] sm:$0xff]
        %v4206 = vld [vmem:[%s446 + $0x1be0] sm:$0xff]
        %v4207 = vld [vmem:[%s446 + $0x1be8] sm:$0xff]
        %v4208 = vld [vmem:[%s446 + $0x1bf0] sm:$0xff]
        %v4209 = vld [vmem:[%s446 + $0x1bf8] sm:$0xff]
        %v4211 = vrot.slane %v1146, 2
        %4213 = vmatprep.subr.mxu0 %v4147
        %4214 = vmatpush1.msra.mxu0 %v4146
        %4215 = vmatprep.subr.mxu0 %v4151
        %4216 = vmatpush1.msra.mxu0 %v4150
        %4217 = vmatprep.subr.mxu0 %v4155
        %4218 = vmatpush1.msra.mxu0 %v4154
        %4219 = vmatprep.subr.mxu0 %v4159
        %4220 = vmatpush1.msra.mxu0 %v4158
        %4221 = vmatprep.subr.mxu0 %v4163
        %4222 = vmatpush1.msra.mxu0 %v4162
        %4223 = vmatprep.subr.mxu0 %v4167
        %4224 = vmatpush1.msra.mxu0 %v4166
        %4225 = vmatprep.subr.mxu0 %v4171
        %4226 = vmatpush1.msra.mxu0 %v4170
        %4227 = vmatprep.subr.mxu0 %v4175
        %4228 = vmatpush1.msra.mxu0 %v4174
        %4229 = vmatprep.subr.mxu0 %v4179
        %4230 = vmatpush1.msra.mxu0 %v4178
        %4231 = vmatprep.subr.mxu0 %v4183
        %4232 = vmatpush1.msra.mxu0 %v4182
        %4233 = vmatprep.subr.mxu0 %v4187
        %4234 = vmatpush1.msra.mxu0 %v4186
        %4235 = vmatprep.subr.mxu0 %v4191
        %4236 = vmatpush1.msra.mxu0 %v4190
        %4237 = vmatprep.subr.mxu0 %v4195
        %4238 = vmatpush1.msra.mxu0 %v4194
        %4239 = vmatprep.subr.mxu0 %v4199
        %4240 = vmatpush1.msra.mxu0 %v4198
        %4241 = vmatprep.subr.mxu0 %v4203
        %4242 = vmatpush1.msra.mxu0 %v4202
        %4243 = vmatprep.subr.mxu0 %v4207
        %4244 = vmatpush1.msra.mxu0 %v4206
        %4245 = vmatprep.subr.mxu0 0.0
        %4246 = vmatpush1.msra.mxu0 0.0
        %4247 = vmatprep.subr.mxu0 0.0
        %4248 = vmatpush1.msra.mxu0 0.0
        %4249 = vmatprep.subr.mxu0 0.0
        %4250 = vmatpush1.msra.mxu0 0.0
        %4251 = vmatprep.subr.mxu0 0.0
        %4252 = vmatpush1.msra.mxu0 0.0
        %4253 = vmatprep.subr.mxu0 0.0
        %4254 = vmatpush1.msra.mxu0 0.0
        %4255 = vmatprep.subr.mxu0 0.0
        %4256 = vmatpush1.msra.mxu0 0.0
        %4257 = vmatprep.subr.mxu0 0.0
        %4258 = vmatpush1.msra.mxu0 0.0
        %4259 = vmatprep.subr.mxu0 0.0
        %4260 = vmatpush1.msra.mxu0 0.0
        %4261 = vmatprep.subr.mxu0 0.0
        %4262 = vmatpush1.msra.mxu0 0.0
        %4263 = vmatprep.subr.mxu0 0.0
        %4264 = vmatpush1.msra.mxu0 0.0
        %4265 = vmatprep.subr.mxu0 0.0
        %4266 = vmatpush1.msra.mxu0 0.0
        %4267 = vmatprep.subr.mxu0 0.0
        %4268 = vmatpush1.msra.mxu0 0.0
        %4269 = vmatprep.subr.mxu0 0.0
        %4270 = vmatpush1.msra.mxu0 0.0
        %4271 = vmatprep.subr.mxu0 0.0
        %4272 = vmatpush1.msra.mxu0 0.0
        %4273 = vmatprep.subr.mxu0 0.0
        %4274 = vmatpush1.msra.mxu0 0.0
        %4275 = vmatprep.subr.mxu0 0.0
        %4276 = vmatpush1.msra.mxu0 0.0
        %4277 = vmatprep.mubr.f32.mxu0 0.0
        %4278 = vmatmul.mubr.f32.gmra.mrb[0].mxu0 %v4211
        %v4279 = vpop.f32.mrb[0].mxu0
        %v4280 = vadd.f32 0.0, %v4279
        %v4281 = vpop.f32.mrb[0].mxu0
        %v4282 = vadd.f32 0.0, %v4281
        %4283 = vdwg.mxu0
        %4284 = vmatprep.subr.mxu0 %v4149
        %4285 = vmatpush1.msra.mxu0 %v4148
        %4286 = vmatprep.subr.mxu0 %v4153
        %4287 = vmatpush1.msra.mxu0 %v4152
        %4288 = vmatprep.subr.mxu0 %v4157
        %4289 = vmatpush1.msra.mxu0 %v4156
        %4290 = vmatprep.subr.mxu0 %v4161
        %4291 = vmatpush1.msra.mxu0 %v4160
        %4292 = vmatprep.subr.mxu0 %v4165
        %4293 = vmatpush1.msra.mxu0 %v4164
        %4294 = vmatprep.subr.mxu0 %v4169
        %4295 = vmatpush1.msra.mxu0 %v4168
        %4296 = vmatprep.subr.mxu0 %v4173
        %4297 = vmatpush1.msra.mxu0 %v4172
        %4298 = vmatprep.subr.mxu0 %v4177
        %4299 = vmatpush1.msra.mxu0 %v4176
        %4300 = vmatprep.subr.mxu0 %v4181
        %4301 = vmatpush1.msra.mxu0 %v4180
        %4302 = vmatprep.subr.mxu0 %v4185
        %4303 = vmatpush1.msra.mxu0 %v4184
        %4304 = vmatprep.subr.mxu0 %v4189
        %4305 = vmatpush1.msra.mxu0 %v4188
        %4306 = vmatprep.subr.mxu0 %v4193
        %4307 = vmatpush1.msra.mxu0 %v4192
        %4308 = vmatprep.subr.mxu0 %v4197
        %4309 = vmatpush1.msra.mxu0 %v4196
        %4310 = vmatprep.subr.mxu0 %v4201
        %4311 = vmatpush1.msra.mxu0 %v4200
        %4312 = vmatprep.subr.mxu0 %v4205
        %4313 = vmatpush1.msra.mxu0 %v4204
        %4314 = vmatprep.subr.mxu0 %v4209
        %4315 = vmatpush1.msra.mxu0 %v4208
        %4316 = vmatprep.subr.mxu0 0.0
        %4317 = vmatpush1.msra.mxu0 0.0
        %4318 = vmatprep.subr.mxu0 0.0
        %4319 = vmatpush1.msra.mxu0 0.0
        %4320 = vmatprep.subr.mxu0 0.0
        %4321 = vmatpush1.msra.mxu0 0.0
        %4322 = vmatprep.subr.mxu0 0.0
        %4323 = vmatpush1.msra.mxu0 0.0
        %4324 = vmatprep.subr.mxu0 0.0
        %4325 = vmatpush1.msra.mxu0 0.0
        %4326 = vmatprep.subr.mxu0 0.0
        %4327 = vmatpush1.msra.mxu0 0.0
        %4328 = vmatprep.subr.mxu0 0.0
        %4329 = vmatpush1.msra.mxu0 0.0
        %4330 = vmatprep.subr.mxu0 0.0
        %4331 = vmatpush1.msra.mxu0 0.0
        %4332 = vmatprep.subr.mxu0 0.0
        %4333 = vmatpush1.msra.mxu0 0.0
        %4334 = vmatprep.subr.mxu0 0.0
        %4335 = vmatpush1.msra.mxu0 0.0
        %4336 = vmatprep.subr.mxu0 0.0
        %4337 = vmatpush1.msra.mxu0 0.0
        %4338 = vmatprep.subr.mxu0 0.0
        %4339 = vmatpush1.msra.mxu0 0.0
        %4340 = vmatprep.subr.mxu0 0.0
        %4341 = vmatpush1.msra.mxu0 0.0
        %4342 = vmatprep.subr.mxu0 0.0
        %4343 = vmatpush1.msra.mxu0 0.0
        %4344 = vmatprep.subr.mxu0 0.0
        %4345 = vmatpush1.msra.mxu0 0.0
        %4346 = vmatprep.subr.mxu0 0.0
        %4347 = vmatpush1.msra.mxu0 0.0
        %4348 = vmatprep.mubr.f32.mxu0 0.0
        %4349 = vmatmul.mubr.f32.gmra.mrb[0].mxu0 %v4211
        %v4350 = vpop.f32.mrb[0].mxu0
        %v4351 = vadd.f32 0.0, %v4350
        %v4352 = vpop.f32.mrb[0].mxu0
        %v4353 = vadd.f32 0.0, %v4352
        %4354 = vdwg.mxu0
        %v4359 = vcombine.low %v4280, %v4282
        %v4360 = vcombine.low %v4351, %v4353
        %v4362 = vunpack.c.l.s4 1983009808
        %v4363 = vunpack.c.0.s8 %v4362
        %v4364 = vlaneseq
        %v4365 = vshrl.u32 %v4364, 7
        %v4366 = vsub.s32 %v4363, %v4365
        %v4367 = vrot.slane %v4359, %v4366
        %v4369 = vunpack.c.l.s4 1983009808
        %v4370 = vunpack.c.0.s8 %v4369
        %v4371 = vlaneseq
        %v4372 = vshrl.u32 %v4371, 7
        %v4373 = vsub.s32 %v4370, %v4372
        %v4374 = vrot.slane %v4360, %v4373
        %v4375 = vcombine.low %v4367, %v4374
        %v4377 = vadd.f32 %v4145, %v4375
        %v4378 = vld [vmem:[%s446 + $0x1c00] sm:$0xff]
        %v4379 = vld [vmem:[%s446 + $0x1c08] sm:$0xff]
        %v4380 = vld [vmem:[%s446 + $0x1c10] sm:$0xff]
        %v4381 = vld [vmem:[%s446 + $0x1c18] sm:$0xff]
        %v4382 = vld [vmem:[%s446 + $0x1c20] sm:$0xff]
        %v4383 = vld [vmem:[%s446 + $0x1c28] sm:$0xff]
        %v4384 = vld [vmem:[%s446 + $0x1c30] sm:$0xff]
        %v4385 = vld [vmem:[%s446 + $0x1c38] sm:$0xff]
        %v4386 = vld [vmem:[%s446 + $0x1c40] sm:$0xff]
        %v4387 = vld [vmem:[%s446 + $0x1c48] sm:$0xff]
        %v4388 = vld [vmem:[%s446 + $0x1c50] sm:$0xff]
        %v4389 = vld [vmem:[%s446 + $0x1c58] sm:$0xff]
        %v4390 = vld [vmem:[%s446 + $0x1c60] sm:$0xff]
        %v4391 = vld [vmem:[%s446 + $0x1c68] sm:$0xff]
        %v4392 = vld [vmem:[%s446 + $0x1c70] sm:$0xff]
        %v4393 = vld [vmem:[%s446 + $0x1c78] sm:$0xff]
        %v4394 = vld [vmem:[%s446 + $0x1c80] sm:$0xff]
        %v4395 = vld [vmem:[%s446 + $0x1c88] sm:$0xff]
        %v4396 = vld [vmem:[%s446 + $0x1c90] sm:$0xff]
        %v4397 = vld [vmem:[%s446 + $0x1c98] sm:$0xff]
        %v4398 = vld [vmem:[%s446 + $0x1ca0] sm:$0xff]
        %v4399 = vld [vmem:[%s446 + $0x1ca8] sm:$0xff]
        %v4400 = vld [vmem:[%s446 + $0x1cb0] sm:$0xff]
        %v4401 = vld [vmem:[%s446 + $0x1cb8] sm:$0xff]
        %v4402 = vld [vmem:[%s446 + $0x1cc0] sm:$0xff]
        %v4403 = vld [vmem:[%s446 + $0x1cc8] sm:$0xff]
        %v4404 = vld [vmem:[%s446 + $0x1cd0] sm:$0xff]
        %v4405 = vld [vmem:[%s446 + $0x1cd8] sm:$0xff]
        %v4406 = vld [vmem:[%s446 + $0x1ce0] sm:$0xff]
        %v4407 = vld [vmem:[%s446 + $0x1ce8] sm:$0xff]
        %v4408 = vld [vmem:[%s446 + $0x1cf0] sm:$0xff]
        %v4409 = vld [vmem:[%s446 + $0x1cf8] sm:$0xff]
        %v4410 = vld [vmem:[%s446 + $0x1d00] sm:$0xff]
        %v4411 = vld [vmem:[%s446 + $0x1d08] sm:$0xff]
        %v4412 = vld [vmem:[%s446 + $0x1d10] sm:$0xff]
        %v4413 = vld [vmem:[%s446 + $0x1d18] sm:$0xff]
        %v4414 = vld [vmem:[%s446 + $0x1d20] sm:$0xff]
        %v4415 = vld [vmem:[%s446 + $0x1d28] sm:$0xff]
        %v4416 = vld [vmem:[%s446 + $0x1d30] sm:$0xff]
        %v4417 = vld [vmem:[%s446 + $0x1d38] sm:$0xff]
        %v4418 = vld [vmem:[%s446 + $0x1d40] sm:$0xff]
        %v4419 = vld [vmem:[%s446 + $0x1d48] sm:$0xff]
        %v4420 = vld [vmem:[%s446 + $0x1d50] sm:$0xff]
        %v4421 = vld [vmem:[%s446 + $0x1d58] sm:$0xff]
        %v4422 = vld [vmem:[%s446 + $0x1d60] sm:$0xff]
        %v4423 = vld [vmem:[%s446 + $0x1d68] sm:$0xff]
        %v4424 = vld [vmem:[%s446 + $0x1d70] sm:$0xff]
        %v4425 = vld [vmem:[%s446 + $0x1d78] sm:$0xff]
        %v4426 = vld [vmem:[%s446 + $0x1d80] sm:$0xff]
        %v4427 = vld [vmem:[%s446 + $0x1d88] sm:$0xff]
        %v4428 = vld [vmem:[%s446 + $0x1d90] sm:$0xff]
        %v4429 = vld [vmem:[%s446 + $0x1d98] sm:$0xff]
        %v4430 = vld [vmem:[%s446 + $0x1da0] sm:$0xff]
        %v4431 = vld [vmem:[%s446 + $0x1da8] sm:$0xff]
        %v4432 = vld [vmem:[%s446 + $0x1db0] sm:$0xff]
        %v4433 = vld [vmem:[%s446 + $0x1db8] sm:$0xff]
        %v4434 = vld [vmem:[%s446 + $0x1dc0] sm:$0xff]
        %v4435 = vld [vmem:[%s446 + $0x1dc8] sm:$0xff]
        %v4436 = vld [vmem:[%s446 + $0x1dd0] sm:$0xff]
        %v4437 = vld [vmem:[%s446 + $0x1dd8] sm:$0xff]
        %v4438 = vld [vmem:[%s446 + $0x1de0] sm:$0xff]
        %v4439 = vld [vmem:[%s446 + $0x1de8] sm:$0xff]
        %v4440 = vld [vmem:[%s446 + $0x1df0] sm:$0xff]
        %v4441 = vld [vmem:[%s446 + $0x1df8] sm:$0xff]
        %v4442 = vrot.slane %v1146, 4
        %4444 = vmatprep.subr.mxu0 %v4379
        %4445 = vmatpush1.msra.mxu0 %v4378
        %4446 = vmatprep.subr.mxu0 %v4383
        %4447 = vmatpush1.msra.mxu0 %v4382
        %4448 = vmatprep.subr.mxu0 %v4387
        %4449 = vmatpush1.msra.mxu0 %v4386
        %4450 = vmatprep.subr.mxu0 %v4391
        %4451 = vmatpush1.msra.mxu0 %v4390
        %4452 = vmatprep.subr.mxu0 %v4395
        %4453 = vmatpush1.msra.mxu0 %v4394
        %4454 = vmatprep.subr.mxu0 %v4399
        %4455 = vmatpush1.msra.mxu0 %v4398
        %4456 = vmatprep.subr.mxu0 %v4403
        %4457 = vmatpush1.msra.mxu0 %v4402
        %4458 = vmatprep.subr.mxu0 %v4407
        %4459 = vmatpush1.msra.mxu0 %v4406
        %4460 = vmatprep.subr.mxu0 %v4411
        %4461 = vmatpush1.msra.mxu0 %v4410
        %4462 = vmatprep.subr.mxu0 %v4415
        %4463 = vmatpush1.msra.mxu0 %v4414
        %4464 = vmatprep.subr.mxu0 %v4419
        %4465 = vmatpush1.msra.mxu0 %v4418
        %4466 = vmatprep.subr.mxu0 %v4423
        %4467 = vmatpush1.msra.mxu0 %v4422
        %4468 = vmatprep.subr.mxu0 %v4427
        %4469 = vmatpush1.msra.mxu0 %v4426
        %4470 = vmatprep.subr.mxu0 %v4431
        %4471 = vmatpush1.msra.mxu0 %v4430
        %4472 = vmatprep.subr.mxu0 %v4435
        %4473 = vmatpush1.msra.mxu0 %v4434
        %4474 = vmatprep.subr.mxu0 %v4439
        %4475 = vmatpush1.msra.mxu0 %v4438
        %4476 = vmatprep.subr.mxu0 0.0
        %4477 = vmatpush1.msra.mxu0 0.0
        %4478 = vmatprep.subr.mxu0 0.0
        %4479 = vmatpush1.msra.mxu0 0.0
        %4480 = vmatprep.subr.mxu0 0.0
        %4481 = vmatpush1.msra.mxu0 0.0
        %4482 = vmatprep.subr.mxu0 0.0
        %4483 = vmatpush1.msra.mxu0 0.0
        %4484 = vmatprep.subr.mxu0 0.0
        %4485 = vmatpush1.msra.mxu0 0.0
        %4486 = vmatprep.subr.mxu0 0.0
        %4487 = vmatpush1.msra.mxu0 0.0
        %4488 = vmatprep.subr.mxu0 0.0
        %4489 = vmatpush1.msra.mxu0 0.0
        %4490 = vmatprep.subr.mxu0 0.0
        %4491 = vmatpush1.msra.mxu0 0.0
        %4492 = vmatprep.subr.mxu0 0.0
        %4493 = vmatpush1.msra.mxu0 0.0
        %4494 = vmatprep.subr.mxu0 0.0
        %4495 = vmatpush1.msra.mxu0 0.0
        %4496 = vmatprep.subr.mxu0 0.0
        %4497 = vmatpush1.msra.mxu0 0.0
        %4498 = vmatprep.subr.mxu0 0.0
        %4499 = vmatpush1.msra.mxu0 0.0
        %4500 = vmatprep.subr.mxu0 0.0
        %4501 = vmatpush1.msra.mxu0 0.0
        %4502 = vmatprep.subr.mxu0 0.0
        %4503 = vmatpush1.msra.mxu0 0.0
        %4504 = vmatprep.subr.mxu0 0.0
        %4505 = vmatpush1.msra.mxu0 0.0
        %4506 = vmatprep.subr.mxu0 0.0
        %4507 = vmatpush1.msra.mxu0 0.0
        %4508 = vmatprep.mubr.f32.mxu0 0.0
        %4509 = vmatmul.mubr.f32.gmra.mrb[0].mxu0 %v4442
        %v4510 = vpop.f32.mrb[0].mxu0
        %v4511 = vadd.f32 0.0, %v4510
        %v4512 = vpop.f32.mrb[0].mxu0
        %v4513 = vadd.f32 0.0, %v4512
        %4514 = vdwg.mxu0
        %4515 = vmatprep.subr.mxu0 %v4381
        %4516 = vmatpush1.msra.mxu0 %v4380
        %4517 = vmatprep.subr.mxu0 %v4385
        %4518 = vmatpush1.msra.mxu0 %v4384
        %4519 = vmatprep.subr.mxu0 %v4389
        %4520 = vmatpush1.msra.mxu0 %v4388
        %4521 = vmatprep.subr.mxu0 %v4393
        %4522 = vmatpush1.msra.mxu0 %v4392
        %4523 = vmatprep.subr.mxu0 %v4397
        %4524 = vmatpush1.msra.mxu0 %v4396
        %4525 = vmatprep.subr.mxu0 %v4401
        %4526 = vmatpush1.msra.mxu0 %v4400
        %4527 = vmatprep.subr.mxu0 %v4405
        %4528 = vmatpush1.msra.mxu0 %v4404
        %4529 = vmatprep.subr.mxu0 %v4409
        %4530 = vmatpush1.msra.mxu0 %v4408
        %4531 = vmatprep.subr.mxu0 %v4413
        %4532 = vmatpush1.msra.mxu0 %v4412
        %4533 = vmatprep.subr.mxu0 %v4417
        %4534 = vmatpush1.msra.mxu0 %v4416
        %4535 = vmatprep.subr.mxu0 %v4421
        %4536 = vmatpush1.msra.mxu0 %v4420
        %4537 = vmatprep.subr.mxu0 %v4425
        %4538 = vmatpush1.msra.mxu0 %v4424
        %4539 = vmatprep.subr.mxu0 %v4429
        %4540 = vmatpush1.msra.mxu0 %v4428
        %4541 = vmatprep.subr.mxu0 %v4433
        %4542 = vmatpush1.msra.mxu0 %v4432
        %4543 = vmatprep.subr.mxu0 %v4437
        %4544 = vmatpush1.msra.mxu0 %v4436
        %4545 = vmatprep.subr.mxu0 %v4441
        %4546 = vmatpush1.msra.mxu0 %v4440
        %4547 = vmatprep.subr.mxu0 0.0
        %4548 = vmatpush1.msra.mxu0 0.0
        %4549 = vmatprep.subr.mxu0 0.0
        %4550 = vmatpush1.msra.mxu0 0.0
        %4551 = vmatprep.subr.mxu0 0.0
        %4552 = vmatpush1.msra.mxu0 0.0
        %4553 = vmatprep.subr.mxu0 0.0
        %4554 = vmatpush1.msra.mxu0 0.0
        %4555 = vmatprep.subr.mxu0 0.0
        %4556 = vmatpush1.msra.mxu0 0.0
        %4557 = vmatprep.subr.mxu0 0.0
        %4558 = vmatpush1.msra.mxu0 0.0
        %4559 = vmatprep.subr.mxu0 0.0
        %4560 = vmatpush1.msra.mxu0 0.0
        %4561 = vmatprep.subr.mxu0 0.0
        %4562 = vmatpush1.msra.mxu0 0.0
        %4563 = vmatprep.subr.mxu0 0.0
        %4564 = vmatpush1.msra.mxu0 0.0
        %4565 = vmatprep.subr.mxu0 0.0
        %4566 = vmatpush1.msra.mxu0 0.0
        %4567 = vmatprep.subr.mxu0 0.0
        %4568 = vmatpush1.msra.mxu0 0.0
        %4569 = vmatprep.subr.mxu0 0.0
        %4570 = vmatpush1.msra.mxu0 0.0
        %4571 = vmatprep.subr.mxu0 0.0
        %4572 = vmatpush1.msra.mxu0 0.0
        %4573 = vmatprep.subr.mxu0 0.0
        %4574 = vmatpush1.msra.mxu0 0.0
        %4575 = vmatprep.subr.mxu0 0.0
        %4576 = vmatpush1.msra.mxu0 0.0
        %4577 = vmatprep.subr.mxu0 0.0
        %4578 = vmatpush1.msra.mxu0 0.0
        %4579 = vmatprep.mubr.f32.mxu0 0.0
        %4580 = vmatmul.mubr.f32.gmra.mrb[0].mxu0 %v4442
        %v4581 = vpop.f32.mrb[0].mxu0
        %v4582 = vadd.f32 0.0, %v4581
        %v4583 = vpop.f32.mrb[0].mxu0
        %v4584 = vadd.f32 0.0, %v4583
        %4585 = vdwg.mxu0
        %v4590 = vcombine.low %v4511, %v4513
        %v4591 = vcombine.low %v4582, %v4584
        %v4593 = vunpack.c.l.s4 1983009808
        %v4594 = vunpack.c.0.s8 %v4593
        %v4595 = vlaneseq
        %v4596 = vshrl.u32 %v4595, 7
        %v4597 = vsub.s32 %v4594, %v4596
        %v4598 = vrot.slane %v4590, %v4597
        %v4600 = vunpack.c.l.s4 1983009808
        %v4601 = vunpack.c.0.s8 %v4600
        %v4602 = vlaneseq
        %v4603 = vshrl.u32 %v4602, 7
        %v4604 = vsub.s32 %v4601, %v4603
        %v4605 = vrot.slane %v4591, %v4604
        %v4606 = vcombine.low %v4598, %v4605
        %v4608 = vadd.f32 %v4377, %v4606
        %v4609 = vld [vmem:[%s446 + $0x1e00] sm:$0xff]
        %v4610 = vld [vmem:[%s446 + $0x1e08] sm:$0xff]
        %v4611 = vld [vmem:[%s446 + $0x1e10] sm:$0xff]
        %v4612 = vld [vmem:[%s446 + $0x1e18] sm:$0xff]
        %v4613 = vld [vmem:[%s446 + $0x1e20] sm:$0xff]
        %v4614 = vld [vmem:[%s446 + $0x1e28] sm:$0xff]
        %v4615 = vld [vmem:[%s446 + $0x1e30] sm:$0xff]
        %v4616 = vld [vmem:[%s446 + $0x1e38] sm:$0xff]
        %v4617 = vld [vmem:[%s446 + $0x1e40] sm:$0xff]
        %v4618 = vld [vmem:[%s446 + $0x1e48] sm:$0xff]
        %v4619 = vld [vmem:[%s446 + $0x1e50] sm:$0xff]
        %v4620 = vld [vmem:[%s446 + $0x1e58] sm:$0xff]
        %v4621 = vld [vmem:[%s446 + $0x1e60] sm:$0xff]
        %v4622 = vld [vmem:[%s446 + $0x1e68] sm:$0xff]
        %v4623 = vld [vmem:[%s446 + $0x1e70] sm:$0xff]
        %v4624 = vld [vmem:[%s446 + $0x1e78] sm:$0xff]
        %v4625 = vld [vmem:[%s446 + $0x1e80] sm:$0xff]
        %v4626 = vld [vmem:[%s446 + $0x1e88] sm:$0xff]
        %v4627 = vld [vmem:[%s446 + $0x1e90] sm:$0xff]
        %v4628 = vld [vmem:[%s446 + $0x1e98] sm:$0xff]
        %v4629 = vld [vmem:[%s446 + $0x1ea0] sm:$0xff]
        %v4630 = vld [vmem:[%s446 + $0x1ea8] sm:$0xff]
        %v4631 = vld [vmem:[%s446 + $0x1eb0] sm:$0xff]
        %v4632 = vld [vmem:[%s446 + $0x1eb8] sm:$0xff]
        %v4633 = vld [vmem:[%s446 + $0x1ec0] sm:$0xff]
        %v4634 = vld [vmem:[%s446 + $0x1ec8] sm:$0xff]
        %v4635 = vld [vmem:[%s446 + $0x1ed0] sm:$0xff]
        %v4636 = vld [vmem:[%s446 + $0x1ed8] sm:$0xff]
        %v4637 = vld [vmem:[%s446 + $0x1ee0] sm:$0xff]
        %v4638 = vld [vmem:[%s446 + $0x1ee8] sm:$0xff]
        %v4639 = vld [vmem:[%s446 + $0x1ef0] sm:$0xff]
        %v4640 = vld [vmem:[%s446 + $0x1ef8] sm:$0xff]
        %v4641 = vld [vmem:[%s446 + $0x1f00] sm:$0xff]
        %v4642 = vld [vmem:[%s446 + $0x1f08] sm:$0xff]
        %v4643 = vld [vmem:[%s446 + $0x1f10] sm:$0xff]
        %v4644 = vld [vmem:[%s446 + $0x1f18] sm:$0xff]
        %v4645 = vld [vmem:[%s446 + $0x1f20] sm:$0xff]
        %v4646 = vld [vmem:[%s446 + $0x1f28] sm:$0xff]
        %v4647 = vld [vmem:[%s446 + $0x1f30] sm:$0xff]
        %v4648 = vld [vmem:[%s446 + $0x1f38] sm:$0xff]
        %v4649 = vld [vmem:[%s446 + $0x1f40] sm:$0xff]
        %v4650 = vld [vmem:[%s446 + $0x1f48] sm:$0xff]
        %v4651 = vld [vmem:[%s446 + $0x1f50] sm:$0xff]
        %v4652 = vld [vmem:[%s446 + $0x1f58] sm:$0xff]
        %v4653 = vld [vmem:[%s446 + $0x1f60] sm:$0xff]
        %v4654 = vld [vmem:[%s446 + $0x1f68] sm:$0xff]
        %v4655 = vld [vmem:[%s446 + $0x1f70] sm:$0xff]
        %v4656 = vld [vmem:[%s446 + $0x1f78] sm:$0xff]
        %v4657 = vld [vmem:[%s446 + $0x1f80] sm:$0xff]
        %v4658 = vld [vmem:[%s446 + $0x1f88] sm:$0xff]
        %v4659 = vld [vmem:[%s446 + $0x1f90] sm:$0xff]
        %v4660 = vld [vmem:[%s446 + $0x1f98] sm:$0xff]
        %v4661 = vld [vmem:[%s446 + $0x1fa0] sm:$0xff]
        %v4662 = vld [vmem:[%s446 + $0x1fa8] sm:$0xff]
        %v4663 = vld [vmem:[%s446 + $0x1fb0] sm:$0xff]
        %v4664 = vld [vmem:[%s446 + $0x1fb8] sm:$0xff]
        %v4665 = vld [vmem:[%s446 + $0x1fc0] sm:$0xff]
        %v4666 = vld [vmem:[%s446 + $0x1fc8] sm:$0xff]
        %v4667 = vld [vmem:[%s446 + $0x1fd0] sm:$0xff]
        %v4668 = vld [vmem:[%s446 + $0x1fd8] sm:$0xff]
        %v4669 = vld [vmem:[%s446 + $0x1fe0] sm:$0xff]
        %v4670 = vld [vmem:[%s446 + $0x1fe8] sm:$0xff]
        %v4671 = vld [vmem:[%s446 + $0x1ff0] sm:$0xff]
        %v4672 = vld [vmem:[%s446 + $0x1ff8] sm:$0xff]
        %v4673 = vrot.slane %v1146, 6
        %4675 = vmatprep.subr.mxu0 %v4610
        %4676 = vmatpush1.msra.mxu0 %v4609
        %4677 = vmatprep.subr.mxu0 %v4614
        %4678 = vmatpush1.msra.mxu0 %v4613
        %4679 = vmatprep.subr.mxu0 %v4618
        %4680 = vmatpush1.msra.mxu0 %v4617
        %4681 = vmatprep.subr.mxu0 %v4622
        %4682 = vmatpush1.msra.mxu0 %v4621
        %4683 = vmatprep.subr.mxu0 %v4626
        %4684 = vmatpush1.msra.mxu0 %v4625
        %4685 = vmatprep.subr.mxu0 %v4630
        %4686 = vmatpush1.msra.mxu0 %v4629
        %4687 = vmatprep.subr.mxu0 %v4634
        %4688 = vmatpush1.msra.mxu0 %v4633
        %4689 = vmatprep.subr.mxu0 %v4638
        %4690 = vmatpush1.msra.mxu0 %v4637
        %4691 = vmatprep.subr.mxu0 %v4642
        %4692 = vmatpush1.msra.mxu0 %v4641
        %4693 = vmatprep.subr.mxu0 %v4646
        %4694 = vmatpush1.msra.mxu0 %v4645
        %4695 = vmatprep.subr.mxu0 %v4650
        %4696 = vmatpush1.msra.mxu0 %v4649
        %4697 = vmatprep.subr.mxu0 %v4654
        %4698 = vmatpush1.msra.mxu0 %v4653
        %4699 = vmatprep.subr.mxu0 %v4658
        %4700 = vmatpush1.msra.mxu0 %v4657
        %4701 = vmatprep.subr.mxu0 %v4662
        %4702 = vmatpush1.msra.mxu0 %v4661
        %4703 = vmatprep.subr.mxu0 %v4666
        %4704 = vmatpush1.msra.mxu0 %v4665
        %4705 = vmatprep.subr.mxu0 %v4670
        %4706 = vmatpush1.msra.mxu0 %v4669
        %4707 = vmatprep.subr.mxu0 0.0
        %4708 = vmatpush1.msra.mxu0 0.0
        %4709 = vmatprep.subr.mxu0 0.0
        %4710 = vmatpush1.msra.mxu0 0.0
        %4711 = vmatprep.subr.mxu0 0.0
        %4712 = vmatpush1.msra.mxu0 0.0
        %4713 = vmatprep.subr.mxu0 0.0
        %4714 = vmatpush1.msra.mxu0 0.0
        %4715 = vmatprep.subr.mxu0 0.0
        %4716 = vmatpush1.msra.mxu0 0.0
        %4717 = vmatprep.subr.mxu0 0.0
        %4718 = vmatpush1.msra.mxu0 0.0
        %4719 = vmatprep.subr.mxu0 0.0
        %4720 = vmatpush1.msra.mxu0 0.0
        %4721 = vmatprep.subr.mxu0 0.0
        %4722 = vmatpush1.msra.mxu0 0.0
        %4723 = vmatprep.subr.mxu0 0.0
        %4724 = vmatpush1.msra.mxu0 0.0
        %4725 = vmatprep.subr.mxu0 0.0
        %4726 = vmatpush1.msra.mxu0 0.0
        %4727 = vmatprep.subr.mxu0 0.0
        %4728 = vmatpush1.msra.mxu0 0.0
        %4729 = vmatprep.subr.mxu0 0.0
        %4730 = vmatpush1.msra.mxu0 0.0
        %4731 = vmatprep.subr.mxu0 0.0
        %4732 = vmatpush1.msra.mxu0 0.0
        %4733 = vmatprep.subr.mxu0 0.0
        %4734 = vmatpush1.msra.mxu0 0.0
        %4735 = vmatprep.subr.mxu0 0.0
        %4736 = vmatpush1.msra.mxu0 0.0
        %4737 = vmatprep.subr.mxu0 0.0
        %4738 = vmatpush1.msra.mxu0 0.0
        %4739 = vmatprep.mubr.f32.mxu0 0.0
        %4740 = vmatmul.mubr.f32.gmra.mrb[0].mxu0 %v4673
        %v4741 = vpop.f32.mrb[0].mxu0
        %v4742 = vadd.f32 0.0, %v4741
        %v4743 = vpop.f32.mrb[0].mxu0
        %v4744 = vadd.f32 0.0, %v4743
        %4745 = vdwg.mxu0
        %4746 = vmatprep.subr.mxu0 %v4612
        %4747 = vmatpush1.msra.mxu0 %v4611
        %4748 = vmatprep.subr.mxu0 %v4616
        %4749 = vmatpush1.msra.mxu0 %v4615
        %4750 = vmatprep.subr.mxu0 %v4620
        %4751 = vmatpush1.msra.mxu0 %v4619
        %4752 = vmatprep.subr.mxu0 %v4624
        %4753 = vmatpush1.msra.mxu0 %v4623
        %4754 = vmatprep.subr.mxu0 %v4628
        %4755 = vmatpush1.msra.mxu0 %v4627
        %4756 = vmatprep.subr.mxu0 %v4632
        %4757 = vmatpush1.msra.mxu0 %v4631
        %4758 = vmatprep.subr.mxu0 %v4636
        %4759 = vmatpush1.msra.mxu0 %v4635
        %4760 = vmatprep.subr.mxu0 %v4640
        %4761 = vmatpush1.msra.mxu0 %v4639
        %4762 = vmatprep.subr.mxu0 %v4644
        %4763 = vmatpush1.msra.mxu0 %v4643
        %4764 = vmatprep.subr.mxu0 %v4648
        %4765 = vmatpush1.msra.mxu0 %v4647
        %4766 = vmatprep.subr.mxu0 %v4652
        %4767 = vmatpush1.msra.mxu0 %v4651
        %4768 = vmatprep.subr.mxu0 %v4656
        %4769 = vmatpush1.msra.mxu0 %v4655
        %4770 = vmatprep.subr.mxu0 %v4660
        %4771 = vmatpush1.msra.mxu0 %v4659
        %4772 = vmatprep.subr.mxu0 %v4664
        %4773 = vmatpush1.msra.mxu0 %v4663
        %4774 = vmatprep.subr.mxu0 %v4668
        %4775 = vmatpush1.msra.mxu0 %v4667
        %4776 = vmatprep.subr.mxu0 %v4672
        %4777 = vmatpush1.msra.mxu0 %v4671
        %4778 = vmatprep.subr.mxu0 0.0
        %4779 = vmatpush1.msra.mxu0 0.0
        %4780 = vmatprep.subr.mxu0 0.0
        %4781 = vmatpush1.msra.mxu0 0.0
        %4782 = vmatprep.subr.mxu0 0.0
        %4783 = vmatpush1.msra.mxu0 0.0
        %4784 = vmatprep.subr.mxu0 0.0
        %4785 = vmatpush1.msra.mxu0 0.0
        %4786 = vmatprep.subr.mxu0 0.0
        %4787 = vmatpush1.msra.mxu0 0.0
        %4788 = vmatprep.subr.mxu0 0.0
        %4789 = vmatpush1.msra.mxu0 0.0
        %4790 = vmatprep.subr.mxu0 0.0
        %4791 = vmatpush1.msra.mxu0 0.0
        %4792 = vmatprep.subr.mxu0 0.0
        %4793 = vmatpush1.msra.mxu0 0.0
        %4794 = vmatprep.subr.mxu0 0.0
        %4795 = vmatpush1.msra.mxu0 0.0
        %4796 = vmatprep.subr.mxu0 0.0
        %4797 = vmatpush1.msra.mxu0 0.0
        %4798 = vmatprep.subr.mxu0 0.0
        %4799 = vmatpush1.msra.mxu0 0.0
        %4800 = vmatprep.subr.mxu0 0.0
        %4801 = vmatpush1.msra.mxu0 0.0
        %4802 = vmatprep.subr.mxu0 0.0
        %4803 = vmatpush1.msra.mxu0 0.0
        %4804 = vmatprep.subr.mxu0 0.0
        %4805 = vmatpush1.msra.mxu0 0.0
        %4806 = vmatprep.subr.mxu0 0.0
        %4807 = vmatpush1.msra.mxu0 0.0
        %4808 = vmatprep.subr.mxu0 0.0
        %4809 = vmatpush1.msra.mxu0 0.0
        %4810 = vmatprep.mubr.f32.mxu0 0.0
        %4811 = vmatmul.mubr.f32.gmra.mrb[0].mxu0 %v4673
        %v4812 = vpop.f32.mrb[0].mxu0
        %v4813 = vadd.f32 0.0, %v4812
        %v4814 = vpop.f32.mrb[0].mxu0
        %v4815 = vadd.f32 0.0, %v4814
        %4816 = vdwg.mxu0
        %v4821 = vcombine.low %v4742, %v4744
        %v4822 = vcombine.low %v4813, %v4815
        %v4824 = vunpack.c.l.s4 1983009808
        %v4825 = vunpack.c.0.s8 %v4824
        %v4826 = vlaneseq
        %v4827 = vshrl.u32 %v4826, 7
        %v4828 = vsub.s32 %v4825, %v4827
        %v4829 = vrot.slane %v4821, %v4828
        %v4831 = vunpack.c.l.s4 1983009808
        %v4832 = vunpack.c.0.s8 %v4831
        %v4833 = vlaneseq
        %v4834 = vshrl.u32 %v4833, 7
        %v4835 = vsub.s32 %v4832, %v4834
        %v4836 = vrot.slane %v4822, %v4835
        %v4837 = vcombine.low %v4829, %v4836
        %v4839 = vadd.f32 %v4608, %v4837
        %4840 = vst [vmem:[#allocation3] sm:$0xff] %v4839
        // Predicated region
        $region93: #{encoder_forward.3} parent=55 // pred_check
          %p4841 = pneg %p529
        $region94: #{encoder_forward.3} parent=55 // pred_check_branch
          %4843 = sbr.rel (%p4841) target = $region96
        $region95: #{encoder_forward.3} parent=55 // pred_region
          %v4845 = vcombine.high %v4839, %v4839
          %v4847 = vunpack.c.l.s4 1983009808
          %v4848 = vunpack.c.0.s8 %v4847
          %v4849 = vlaneseq
          %v4850 = vshrl.u32 %v4849, 7
          %v4851 = vsub.s32 %v4848, %v4850
          %v4852 = vrot.slane %v4839, %v4851
          %v4854 = vunpack.c.l.s4 1983009808
          %v4855 = vunpack.c.0.s8 %v4854
          %v4856 = vlaneseq
          %v4857 = vshrl.u32 %v4856, 7
          %v4858 = vsub.s32 %v4855, %v4857
          %v4859 = vrot.slane %v4845, %v4858
          %v4860 = vcombine.high %v4852, %v4852
          %v4861 = vcombine.high %v4859, %v4859
          %vm4866 = vcmask 1041408
          %v4867 = vsel %vm4866, %v4852, 0.0
          %v4868 = vrot.slane %v4867, 4
          %v4869 = vadd.f32 %v4867, %v4868
          %v4870 = vrot.slane %v4869, 2
          %v4871 = vadd.f32 %v4869, %v4870
          %v4872 = vrot.slane %v4871, 1
          %v4873 = vadd.f32 %v4871, %v4872
          %v4874 = vsel %vm4866, %v4860, 0.0
          %v4875 = vrot.slane %v4874, 4
          %v4876 = vadd.f32 %v4874, %v4875
          %v4877 = vrot.slane %v4876, 2
          %v4878 = vadd.f32 %v4876, %v4877
          %v4879 = vrot.slane %v4878, 1
          %v4880 = vadd.f32 %v4878, %v4879
          %v4881 = vsel %vm4866, %v4859, 0.0
          %v4882 = vrot.slane %v4881, 4
          %v4883 = vadd.f32 %v4881, %v4882
          %v4884 = vrot.slane %v4883, 2
          %v4885 = vadd.f32 %v4883, %v4884
          %v4886 = vrot.slane %v4885, 1
          %v4887 = vadd.f32 %v4885, %v4886
          %v4888 = vsel %vm4866, %v4861, 0.0
          %v4889 = vrot.slane %v4888, 4
          %v4890 = vadd.f32 %v4888, %v4889
          %v4891 = vrot.slane %v4890, 2
          %v4892 = vadd.f32 %v4890, %v4891
          %v4893 = vrot.slane %v4892, 1
          %v4894 = vadd.f32 %v4892, %v4893
          %v4895 = vrcp.pop 2.0
          %v4896 = vmul.f32 %v4873, %v4895
          %v4897 = vmul.f32 %v4880, %v4895
          %v4898 = vmul.f32 %v4887, %v4895
          %v4899 = vmul.f32 %v4894, %v4895
          %v4904 = vcombine.low %v4896, %v4897
          %v4905 = vcombine.low %v4898, %v4899
          %v4907 = vunpack.c.l.s4 1983009808
          %v4908 = vunpack.c.0.s8 %v4907
          %v4909 = vlaneseq
          %v4910 = vshrl.u32 %v4909, 7
          %v4911 = vsub.s32 %v4908, %v4910
          %v4912 = vrot.slane %v4904, %v4911
          %v4914 = vunpack.c.l.s4 1983009808
          %v4915 = vunpack.c.0.s8 %v4914
          %v4916 = vlaneseq
          %v4917 = vshrl.u32 %v4916, 7
          %v4918 = vsub.s32 %v4915, %v4917
          %v4919 = vrot.slane %v4905, %v4918
          %v4920 = vcombine.low %v4912, %v4919
          %v4922 = vsub.f32 %v4839, %v4920
          %v4923 = vmul.f32 %v4922, %v4922
          %v4925 = vcombine.high %v4923, %v4923
          %v4927 = vunpack.c.l.s4 1983009808
          %v4928 = vunpack.c.0.s8 %v4927
          %v4929 = vlaneseq
          %v4930 = vshrl.u32 %v4929, 7
          %v4931 = vsub.s32 %v4928, %v4930
          %v4932 = vrot.slane %v4923, %v4931
          %v4934 = vunpack.c.l.s4 1983009808
          %v4935 = vunpack.c.0.s8 %v4934
          %v4936 = vlaneseq
          %v4937 = vshrl.u32 %v4936, 7
          %v4938 = vsub.s32 %v4935, %v4937
          %v4939 = vrot.slane %v4925, %v4938
          %v4940 = vcombine.high %v4932, %v4932
          %v4941 = vcombine.high %v4939, %v4939
          %v4946 = vsel %vm4866, %v4932, 0.0
          %v4947 = vrot.slane %v4946, 4
          %v4948 = vadd.f32 %v4946, %v4947
          %v4949 = vrot.slane %v4948, 2
          %v4950 = vadd.f32 %v4948, %v4949
          %v4951 = vrot.slane %v4950, 1
          %v4952 = vadd.f32 %v4950, %v4951
          %v4953 = vsel %vm4866, %v4940, 0.0
          %v4954 = vrot.slane %v4953, 4
          %v4955 = vadd.f32 %v4953, %v4954
          %v4956 = vrot.slane %v4955, 2
          %v4957 = vadd.f32 %v4955, %v4956
          %v4958 = vrot.slane %v4957, 1
          %v4959 = vadd.f32 %v4957, %v4958
          %v4960 = vsel %vm4866, %v4939, 0.0
          %v4961 = vrot.slane %v4960, 4
          %v4962 = vadd.f32 %v4960, %v4961
          %v4963 = vrot.slane %v4962, 2
          %v4964 = vadd.f32 %v4962, %v4963
          %v4965 = vrot.slane %v4964, 1
          %v4966 = vadd.f32 %v4964, %v4965
          %v4967 = vsel %vm4866, %v4941, 0.0
          %v4968 = vrot.slane %v4967, 4
          %v4969 = vadd.f32 %v4967, %v4968
          %v4970 = vrot.slane %v4969, 2
          %v4971 = vadd.f32 %v4969, %v4970
          %v4972 = vrot.slane %v4971, 1
          %v4973 = vadd.f32 %v4971, %v4972
          %v4974 = vmul.f32 %v4952, %v4895
          %v4975 = vmul.f32 %v4959, %v4895
          %v4976 = vmul.f32 %v4966, %v4895
          %v4977 = vmul.f32 %v4973, %v4895
          %v4978 = vld [vmem:[%s464] sm:$0xf]
          %v4979 = vadd.f32 %v4974, 1e-05
          %v4980 = vadd.f32 %v4975, 1e-05
          %v4981 = vadd.f32 %v4976, 1e-05
          %v4982 = vadd.f32 %v4977, 1e-05
          %v4983 = vrsqrt.pop %v4979
          %v4984 = vrsqrt.pop %v4980
          %v4985 = vrsqrt.pop %v4981
          %v4986 = vrsqrt.pop %v4982
          %v4991 = vcombine.low %v4983, %v4984
          %v4992 = vcombine.low %v4985, %v4986
          %v4994 = vunpack.c.l.s4 1966171168
          %v4995 = vunpack.c.0.s8 %v4994
          %v4996 = vlaneseq
          %v4997 = vshrl.u32 %v4996, 7
          %v4998 = vsub.s32 %v4995, %v4997
          %v4999 = vrot.slane %v4991, %v4998
          %v5001 = vunpack.c.l.s4 1966171168
          %v5002 = vunpack.c.0.s8 %v5001
          %v5003 = vlaneseq
          %v5004 = vshrl.u32 %v5003, 7
          %v5005 = vsub.s32 %v5002, %v5004
          %v5006 = vrot.slane %v4992, %v5005
          %v5007 = vcombine.low %v4999, %v5006
          %v5009 = vunpack.c.l.s4 1966171168
          %v5010 = vunpack.c.0.s8 %v5009
          %v5011 = vlaneseq
          %v5012 = vshrl.u32 %v5011, 7
          %v5013 = vsub.s32 %v5010, %v5012
          %v5014 = vrot.slane %v5007, %v5013
          %v5016 = vmul.f32 %v4978, %v5014
          %v5017 = vld [vmem:[%s473] sm:$0xf]
          %v5019 = vlaneseq
          %v5020 = vshrl.u32 %v5019, 7
          %v5021 = vsub.s32 0, %v5020
          %v5022 = vrot.slane %v5016, %v5021
          %v5023 = vlaneseq
          %v5024 = vshrl.u32 %v5023, 7
          %v5025 = vsub.s32 1, %v5024
          %v5026 = vrot.slane %v5016, %v5025
          %v5027 = vlaneseq
          %v5028 = vshrl.u32 %v5027, 7
          %v5029 = vsub.s32 2, %v5028
          %v5030 = vrot.slane %v5016, %v5029
          %v5031 = vlaneseq
          %v5032 = vshrl.u32 %v5031, 7
          %v5033 = vsub.s32 3, %v5032
          %v5034 = vrot.slane %v5016, %v5033
          %v5039 = vmul.f32 %v4896, %v5022
          %v5040 = vmul.f32 %v4897, %v5026
          %v5041 = vmul.f32 %v4898, %v5030
          %v5042 = vmul.f32 %v4899, %v5034
          %v5047 = vcombine.low %v5039, %v5040
          %v5048 = vcombine.low %v5041, %v5042
          %v5050 = vunpack.c.l.s4 1966171168
          %v5051 = vunpack.c.0.s8 %v5050
          %v5052 = vlaneseq
          %v5053 = vshrl.u32 %v5052, 7
          %v5054 = vsub.s32 %v5051, %v5053
          %v5055 = vrot.slane %v5047, %v5054
          %v5057 = vunpack.c.l.s4 1966171168
          %v5058 = vunpack.c.0.s8 %v5057
          %v5059 = vlaneseq
          %v5060 = vshrl.u32 %v5059, 7
          %v5061 = vsub.s32 %v5058, %v5060
          %v5062 = vrot.slane %v5048, %v5061
          %v5063 = vcombine.low %v5055, %v5062
          %v5065 = vunpack.c.l.s4 1966171168
          %v5066 = vunpack.c.0.s8 %v5065
          %v5067 = vlaneseq
          %v5068 = vshrl.u32 %v5067, 7
          %v5069 = vsub.s32 %v5066, %v5068
          %v5070 = vrot.slane %v5063, %v5069
          %v5072 = vsub.f32 %v5017, %v5070
          %v5073 = vcombine.low %v5022, %v5026
          %v5074 = vcombine.low %v5030, %v5034
          %v5076 = vunpack.c.l.s4 1983009808
          %v5077 = vunpack.c.0.s8 %v5076
          %v5078 = vlaneseq
          %v5079 = vshrl.u32 %v5078, 7
          %v5080 = vsub.s32 %v5077, %v5079
          %v5081 = vrot.slane %v5073, %v5080
          %v5083 = vunpack.c.l.s4 1983009808
          %v5084 = vunpack.c.0.s8 %v5083
          %v5085 = vlaneseq
          %v5086 = vshrl.u32 %v5085, 7
          %v5087 = vsub.s32 %v5084, %v5086
          %v5088 = vrot.slane %v5074, %v5087
          %v5089 = vcombine.low %v5081, %v5088
          %v5091 = vmul.f32 %v4839, %v5089
          %v5093 = vlaneseq
          %v5094 = vshrl.u32 %v5093, 7
          %v5095 = vsub.s32 0, %v5094
          %v5096 = vrot.slane %v5072, %v5095
          %v5097 = vlaneseq
          %v5098 = vshrl.u32 %v5097, 7
          %v5099 = vsub.s32 1, %v5098
          %v5100 = vrot.slane %v5072, %v5099
          %v5101 = vlaneseq
          %v5102 = vshrl.u32 %v5101, 7
          %v5103 = vsub.s32 2, %v5102
          %v5104 = vrot.slane %v5072, %v5103
          %v5105 = vlaneseq
          %v5106 = vshrl.u32 %v5105, 7
          %v5107 = vsub.s32 3, %v5106
          %v5108 = vrot.slane %v5072, %v5107
          %v5109 = vcombine.low %v5096, %v5100
          %v5110 = vcombine.low %v5104, %v5108
          %v5112 = vunpack.c.l.s4 1983009808
          %v5113 = vunpack.c.0.s8 %v5112
          %v5114 = vlaneseq
          %v5115 = vshrl.u32 %v5114, 7
          %v5116 = vsub.s32 %v5113, %v5115
          %v5117 = vrot.slane %v5109, %v5116
          %v5119 = vunpack.c.l.s4 1983009808
          %v5120 = vunpack.c.0.s8 %v5119
          %v5121 = vlaneseq
          %v5122 = vshrl.u32 %v5121, 7
          %v5123 = vsub.s32 %v5120, %v5122
          %v5124 = vrot.slane %v5110, %v5123
          %v5125 = vcombine.low %v5117, %v5124
          %v5127 = vadd.f32 %v5091, %v5125
          %v5128 = vmax.f32 %v5127, 0.0
          %5129 = vst [vmem:[%s522] sm:$0xff] %v5128
        $region96: #{encoder_forward.3} parent=55 // pred_fallthru
          _
        %s5130 = sand.u32 %s257, 1
        %s5131 = scalar_lea.sflag [#allocation6], %s5130
        %s5132 = sand.u32 %s257, 1
        %s5133 = smul.addr %s5132, 8
        %s5134 = scalar_lea.vmem [#allocation16], %s5133
        // Predicated region
        $region97: #{encoder_forward.3} parent=55 // pred_check
          %p5135 = pneg %p267
        $region98: #{encoder_forward.3} parent=55 // pred_check_branch
          %5137 = sbr.rel (%p5135) target = $region100
        $region99: #{encoder_forward.3} parent=55 // pred_region
          %s5138 = smul.u32 4, %s30
          %s5140 = ssub.s32 128, 128
          %5141 = vsyncadd %s5131, %s5140
          %s5142 = smul.addr %s5138, 32
          %s5143 = scalar_lea.hbm %s9, %s5142
          %s5145 = sshll.u32 %s5134, 4
          %s5146 = int_to_ptr.vmem [resolvable:$true] %s5145
          %5148 = dma.vmem_to_hbm [thread:$0]  %s5146, 128, %s5143, %s5131
        $region100: #{encoder_forward.3} parent=55 // pred_fallthru
          _
      $region56: #{encoder_forward.3} parent=5 // pred_fallthru
        _
      %p5149 = scmp.le.s32.totalorder 2, %s21
      // Predicated region
      $region101: #{encoder_forward.3} parent=5 // pred_check
        %p5150 = pneg %p5149
      $region102: #{encoder_forward.3} parent=5 // pred_check_branch
        %5152 = sbr.rel (%p5150) target = $region104
      $region103: #{encoder_forward.3} parent=5 // pred_region
        %s5153 = ssub.s32 %s21, 2
        // Predicated region
        $region105: #{encoder_forward.3} parent=103 // pred_check
          %p5154 = pneg %p273
        $region106: #{encoder_forward.3} parent=103 // pred_check_branch
          %5156 = sbr.rel (%p5154) target = $region108
        $region107: #{encoder_forward.3} parent=103 // pred_region
          %s5157 = sand.u32 %s258, 1
          %s5158 = scalar_lea.sflag [#allocation6], %s5157
          %s5159 = sand.u32 %s258, 1
          %s5160 = smul.addr %s5159, 8
          %s5161 = scalar_lea.vmem [#allocation16], %s5160
          %5162 = dma.done %s5158, 128
        $region108: #{encoder_forward.3} parent=103 // pred_fallthru
          _
      $region104: #{encoder_forward.3} parent=5 // pred_fallthru
        _
    $region6: #{encoder_forward.3} parent=1 // loop_footer
      %s25 = sadd.s32 1, %s21
    $region7: #{encoder_forward.3} parent=1 // loop_footer_branch
      %20 = sbr.rel target = $region3
    $region8: #{encoder_forward.3} parent=1 // loop_exit
      _
    %5163 = vsyncpa [#allocation5], 1
    %s5164 = scalar_lea.sflag [#allocation5], 1
    %5165 = vsyncpa %s5164, 1
    %5166 = vsyncpa [#allocation8], 1
    %5167 = vsyncpa [#allocation11], 1
    %5168 = vsyncpa [#allocation6], 1
    %s5169 = scalar_lea.sflag [#allocation6], 1
    %5170 = vsyncpa %s5169, 1

</llo_original>
